<compile_context>
chip_gen: v5e
topology: v5e:2x2
jax: 0.10.0
libtpu: 0.0.40
codegen_flags: <defaults>
</compile_context>

<pallas_src>
import functools

import jax
import jax.numpy as jnp
from jax.experimental import pallas as pl
from jax.experimental.pallas import tpu as pltpu
from jax.scipy.linalg import block_diag

VMEM = pltpu.MemorySpace.VMEM
SMEM = pltpu.MemorySpace.SMEM


# ------------------------------------------------------------------
# In-kernel helpers (traced inside the single fused Pallas kernel)
# ------------------------------------------------------------------
def _vae_decode(z, dlw, dlb, dcw, dcb):
    # z: (N,1); dlw/dlb: (1, C*L) -> rank-1 broadcast (VPU, no MXU pass)
    dl = jnp.maximum(z * dlw + dlb, 0.0)                                # (N, C*L)
    return jnp.dot(dl, dcw, preferred_element_type=jnp.float32) + dcb   # (N, L)


def _vae_branch(xv, eps, encw, encb, mvw, mvb0, mvb1, dlw, dlb, dcw, dcb):
    # encoder conv (lowered to matmul with host-packed band matrix) + relu
    h = jnp.maximum(
        jnp.dot(xv, encw, preferred_element_type=jnp.float32) + encb, 0.0)
    # fused mean | log_var projection -> (N, 2)
    mv = jnp.dot(h, mvw, preferred_element_type=jnp.float32)
    mean = mv[:, 0:1] + mvb0
    log_var = mv[:, 1:2] + mvb1
    var = jnp.exp(log_var)
    z = mean + jnp.sqrt(var) * eps                                       # reparam
    out = _vae_decode(z, dlw, dlb, dcw, dcb)
    return out, z, mean, var, log_var


def _fused_forward_kernel(*refs, depth, num_layers):
    n_out = 7
    (yhat_ref, outx_ref, outy_ref, statsx_ref, statsy_ref,
     zz_ref, covar_ref) = refs[-n_out:]
    it = iter(refs[:-n_out])

    x_ref = next(it); y_ref = next(it)
    epsx_ref = next(it); epsy_ref = next(it)
    ls_ref = next(it); pw_ref = next(it)
    vae_x_refs = [next(it) for _ in range(8)]
    vae_y_refs = [next(it) for _ in range(8)]
    hw0_ref = next(it); hb0_ref = next(it)
    hidden_refs = [(next(it), next(it)) for _ in range(num_layers - 1)]
    hwout_ref = next(it); hbout_ref = next(it)

    x = x_ref[...]
    yv = y_ref[...]

    def unpack_vae(rs):
        encw_r, encb_r, mvw_r, mvb_r, dlw_r, dlb_r, dcw_r, dcb_r = rs
        return (encw_r[...], encb_r[...], mvw_r[...], mvb_r[0], mvb_r[1],
                dlw_r[...], dlb_r[...], dcw_r[...], dcb_r[0])

    # ---- CorVAEConv: x branch and y branch --------------------------------
    px = unpack_vae(vae_x_refs)
    out_x, z_x, mean_x, var_x, log_var_x = _vae_branch(x, epsx_ref[...], *px)
    py = unpack_vae(vae_y_refs)
    out_y, z_y, mean_y, var_y, log_var_y = _vae_branch(yv, epsy_ref[...], *py)

    # ---- 2*depth NNCoefficients heads as one packed matmul chain ----------
    h = jnp.maximum(
        jnp.dot(x, hw0_ref[...], preferred_element_type=jnp.float32)
        + hb0_ref[...], 0.0)
    for hw_ref, hb_ref in hidden_refs:
        h = jnp.maximum(
            jnp.dot(h, hw_ref[...], preferred_element_type=jnp.float32)
            + hb_ref[...], 0.0)
    ab = (jnp.dot(h, hwout_ref[...], preferred_element_type=jnp.float32)
          + hbout_ref[...])                       # (N, 2*depth): coeffs | biases
    cols = [ab[:, j:j + 1] for j in range(2 * depth)]

    # ---- depth coefficient chain (mirrors the PyTorch loop; last z1 unused)
    z_col = z_y                                                          # (N, 1)
    for i in range(depth):
        z1 = jnp.maximum(cols[i] * z_col + cols[depth + i], 0.0)
        if i < depth - 1:
            z_col = cols[i + 1] * z1 + cols[depth + i + 1] + z_col

    # ---- InverseDistanceWithParam + L1 row-normalize + matvec -------------
    xs = x / ls_ref[...]                                                 # (N, DX)
    xs_t = xs.T                                                          # (DX, N)
    n = xs.shape[0]
    d2 = jnp.zeros((n, n), jnp.float32)
    for d in range(xs.shape[1]):                 # exact pairwise distances (VPU)
        diff = xs[:, d:d + 1] - xs_t[d:d + 1, :]
        d2 = d2 + diff * diff
    power = pw_ref[0]
    # dist**power == (sqrt(d2 + 1e-12))**power, computed without the sqrt
    dist_pow = jnp.exp(0.5 * power * jnp.log(d2 + 1e-12))
    covar = pl.reciprocal(dist_pow + 1e-6, approx=True)
    covar_ref[...] = covar
    rowsum = jnp.sum(covar, axis=1, keepdims=True)     # covar > 0: no abs needed
    unnorm = jnp.dot(covar, z_col, preferred_element_type=jnp.float32)
    z_int = unnorm * pl.reciprocal(rowsum, approx=True)                  # (N, 1)

    # ---- y_hat = decoder_conv_y(z_int) fused in the same kernel -----------
    _, _, _, _, _, dlw_y, dlb_y, dcw_y, dcb_y = py
    y_hat = _vae_decode(z_int, dlw_y, dlb_y, dcw_y, dcb_y)

    # ---- lane-packed outputs ----------------------------------------------
    yhat_ref[...] = y_hat
    outx_ref[...] = out_x
    outy_ref[...] = out_y
    statsx_ref[...] = jnp.concatenate([z_x, mean_x, var_x, log_var_x], axis=1)
    statsy_ref[...] = jnp.concatenate([z_y, mean_y, var_y, log_var_y], axis=1)
    zz_ref[...] = jnp.concatenate([z_col, z_int], axis=1)


# ------------------------------------------------------------------
# Host-side parameter packing (done once; conv -> band matrix, heads packed)
# ------------------------------------------------------------------
def _shift_mats(L, K):
    pad = K // 2
    # S[k][l_in, l_out] = 1 where l_in == l_out + k - pad  ('same' conv taps)
    return [jnp.eye(L, k=pad - k, dtype=jnp.float32) for k in range(K)]


def pack_params(params, conv_ch, num_layers):
    K = 3

    def pack_vae(p, L):
        S = _shift_mats(L, K)
        encw = jnp.concatenate(
            [sum(p["ecw"][c, 0, k] * S[k] for k in range(K))
             for c in range(conv_ch)], axis=1)                    # (L, C*L)
        encb = jnp.repeat(p["ecb"], L)[None, :]                   # (1, C*L)
        mvw = jnp.concatenate([p["mw"], p["vw"]], axis=1)         # (C*L, 2)
        mvb = jnp.concatenate(
            [p["mb"].reshape(-1), p["vb"].reshape(-1)])           # (2,)  -> SMEM
        dcw = jnp.concatenate(
            [sum(p["dcw"][0, c, k] * S[k] for k in range(K))
             for c in range(conv_ch)], axis=0)                    # (C*L, L)
        dcb = p["dcb"].reshape(-1)                                # (1,)  -> SMEM
        return [encw, encb, mvw, mvb, p["dlw"], p["dlb"], dcw, dcb]

    heads = list(params["nn_coeff"]) + list(params["nn_bias"])    # 2*depth heads
    hw0 = jnp.concatenate([h["w0"] for h in heads], axis=1)
    hb0 = jnp.concatenate([h["b0"] for h in heads], axis=1)
    hidden = []
    for l in range(1, num_layers):
        hidden.append((block_diag(*[h[f"w{l}"] for h in heads]),
                       jnp.concatenate([h[f"b{l}"] for h in heads], axis=1)))
    hwout = block_diag(*[h["wout"] for h in heads])               # (2dH, 2d)
    hbout = jnp.concatenate([h["bout"] for h in heads], axis=1)   # (1, 2d)

    dx = params["lengthscale"].shape[1]
    dy = params["vae_y"]["dcw"].shape[1] * 0 + params["vae_y"]["mw"].shape[0] // conv_ch
    return dict(
        vae_x=pack_vae(params["vae_x"], dx),
        vae_y=pack_vae(params["vae_y"], dy),
        hw0=hw0, hb0=hb0, hidden=hidden, hwout=hwout, hbout=hbout,
        lengthscale=params["lengthscale"], power=params["power"],
    )


# ------------------------------------------------------------------
# Forward wrapper: ONE pallas_call, whole-array VMEM blocks (small shapes)
# ------------------------------------------------------------------
def deep_idw_autoencoder_conv_forward(packed, x, y, eps_x, eps_y,
                                      *, num_layers, depth):
    n, dx = x.shape
    dy = y.shape[1]

    inputs = [(x, VMEM), (y, VMEM), (eps_x, VMEM), (eps_y, VMEM),
              (packed["lengthscale"], VMEM), (packed["power"], SMEM)]
    for key in ("vae_x", "vae_y"):
        encw, encb, mvw, mvb, dlw, dlb, dcw, dcb = packed[key]
        inputs += [(encw, VMEM), (encb, VMEM), (mvw, VMEM), (mvb, SMEM),
                   (dlw, VMEM), (dlb, VMEM), (dcw, VMEM), (dcb, SMEM)]
    inputs += [(packed["hw0"], VMEM), (packed["hb0"], VMEM)]
    for hw, hb in packed["hidden"]:
        inputs += [(hw, VMEM), (hb, VMEM)]
    inputs += [(packed["hwout"], VMEM), (packed["hbout"], VMEM)]

    arrays = [a for a, _ in inputs]
    in_specs = [pl.BlockSpec(memory_space=ms) for _, ms in inputs]

    out_shape = (
        jax.ShapeDtypeStruct((n, dy), jnp.float32),   # y_hat
        jax.ShapeDtypeStruct((n, dx), jnp.float32),   # output_x
        jax.ShapeDtypeStruct((n, dy), jnp.float32),   # output_y
        jax.ShapeDtypeStruct((n, 4), jnp.float32),    # z_x|mean_x|var_x|log_var_x
        jax.ShapeDtypeStruct((n, 4), jnp.float32),    # z_y|mean_y|var_y|log_var_y
        jax.ShapeDtypeStruct((n, 2), jnp.float32),    # z_chain | z_int
        jax.ShapeDtypeStruct((n, n), jnp.float32),    # covar
    )
    out_specs = tuple(pl.BlockSpec(memory_space=VMEM) for _ in out_shape)

    outs = pl.pallas_call(
        functools.partial(_fused_forward_kernel, depth=depth,
                          num_layers=num_layers),
        out_shape=out_shape,
        in_specs=in_specs,
        out_specs=out_specs,
        compiler_params=pltpu.CompilerParams(vmem_limit_bytes=32 * 1024 * 1024),
    )(*arrays)

    y_hat, out_x, out_y, stats_x, stats_y, zz, covar = outs
    z_x, mean_x, var_x, log_var_x = (stats_x[:, i:i + 1] for i in range(4))
    z_y, mean_y, var_y, log_var_y = (stats_y[:, i:i + 1] for i in range(4))
    z_chain = zz[:, 0]
    z_int = zz[:, 1]
    return (y_hat, z_int, covar, z_chain,
            out_x, z_x, mean_x, var_x, log_var_x,
            out_y, z_y, mean_y, var_y, log_var_y)


# ------------------------------------------------------------------
# Deterministic synthetic parameter init (same structure as before)
# ------------------------------------------------------------------
def init_params(key, dx, dy, hidden, num_layers, depth, conv_ch):
    ks = iter(jax.random.split(key, 64))

    def w(shape, scale=0.2):
        return (scale * jax.random.normal(next(ks), shape)).astype(jnp.float32)

    def vae(d):
        return dict(
            ecw=w((conv_ch, 1, 3)), ecb=w((conv_ch,)),
            mw=w((conv_ch * d, 1)), mb=w((1, 1)),
            vw=w((conv_ch * d, 1)), vb=w((1, 1)),
            dlw=w((1, conv_ch * d)), dlb=w((1, conv_ch * d)),
            dcw=w((1, conv_ch, 3)), dcb=w((1,)),
        )

    def head():
        p = dict(w0=w((dx, hidden)), b0=w((1, hidden)))
        for l in range(1, num_layers):
            p[f"w{l}"] = w((hidden, hidden))
            p[f"b{l}"] = w((1, hidden))
        p["wout"] = w((hidden, 1))
        p["bout"] = w((1, 1))
        return p

    return dict(
        vae_x=vae(dx),
        vae_y=vae(dy),
        nn_coeff=[head() for _ in range(depth)],
        nn_bias=[head() for _ in range(depth)],
        lengthscale=jnp.ones((1, dx), jnp.float32),
        power=jnp.array([2.0], jnp.float32),
    )


if __name__ == "__main__":
    N, DX, DY = 64, 4, 16
    HIDDEN, NUM_LAYERS, DEPTH, CONV_CH = 32, 2, 3, 4

    root = jax.random.PRNGKey(0)
    kx, ky, kex, key_, kp = jax.random.split(root, 5)
    x = jax.random.normal(kx, (N, DX), jnp.float32)
    y = jax.random.normal(ky, (N, DY), jnp.float32)
    eps_x = jax.random.normal(kex, (N, 1), jnp.float32)   # deterministic reparam noise
    eps_y = jax.random.normal(key_, (N, 1), jnp.float32)

    params = init_params(kp, DX, DY, HIDDEN, NUM_LAYERS, DEPTH, CONV_CH)
    packed = pack_params(params, CONV_CH, NUM_LAYERS)

    fwd = jax.jit(functools.partial(deep_idw_autoencoder_conv_forward,
                                    num_layers=NUM_LAYERS, depth=DEPTH))
    outs = fwd(packed, x, y, eps_x, eps_y)
    jax.block_until_ready(outs)
    print("KERNEL_OK")
</pallas_src>

<mosaic_0001>
module attributes {stable_mosaic.version = 11 : i64} {
  func.func @_fused_forward_kernel(%arg0: memref<64x4xf32, #tpu.memory_space<vmem>>, %arg1: memref<64x16xf32, #tpu.memory_space<vmem>>, %arg2: memref<64x1xf32, #tpu.memory_space<vmem>>, %arg3: memref<64x1xf32, #tpu.memory_space<vmem>>, %arg4: memref<1x4xf32, #tpu.memory_space<vmem>>, %arg5: memref<1xf32, #tpu.memory_space<smem>>, %arg6: memref<4x16xf32, #tpu.memory_space<vmem>>, %arg7: memref<1x16xf32, #tpu.memory_space<vmem>>, %arg8: memref<16x2xf32, #tpu.memory_space<vmem>>, %arg9: memref<2xf32, #tpu.memory_space<smem>>, %arg10: memref<1x16xf32, #tpu.memory_space<vmem>>, %arg11: memref<1x16xf32, #tpu.memory_space<vmem>>, %arg12: memref<16x4xf32, #tpu.memory_space<vmem>>, %arg13: memref<1xf32, #tpu.memory_space<smem>>, %arg14: memref<16x64xf32, #tpu.memory_space<vmem>>, %arg15: memref<1x64xf32, #tpu.memory_space<vmem>>, %arg16: memref<64x2xf32, #tpu.memory_space<vmem>>, %arg17: memref<2xf32, #tpu.memory_space<smem>>, %arg18: memref<1x64xf32, #tpu.memory_space<vmem>>, %arg19: memref<1x64xf32, #tpu.memory_space<vmem>>, %arg20: memref<64x16xf32, #tpu.memory_space<vmem>>, %arg21: memref<1xf32, #tpu.memory_space<smem>>, %arg22: memref<4x192xf32, #tpu.memory_space<vmem>>, %arg23: memref<1x192xf32, #tpu.memory_space<vmem>>, %arg24: memref<192x192xf32, #tpu.memory_space<vmem>>, %arg25: memref<1x192xf32, #tpu.memory_space<vmem>>, %arg26: memref<192x6xf32, #tpu.memory_space<vmem>>, %arg27: memref<1x6xf32, #tpu.memory_space<vmem>>, %arg28: memref<64x16xf32, #tpu.memory_space<vmem>>, %arg29: memref<64x4xf32, #tpu.memory_space<vmem>>, %arg30: memref<64x16xf32, #tpu.memory_space<vmem>>, %arg31: memref<64x4xf32, #tpu.memory_space<vmem>>, %arg32: memref<64x4xf32, #tpu.memory_space<vmem>>, %arg33: memref<64x2xf32, #tpu.memory_space<vmem>>, %arg34: memref<64x64xf32, #tpu.memory_space<vmem>>) attributes {dimension_semantics = [], scalar_prefetch = 0 : i64, scratch_operands = 0 : i64, tpu.core_type = #tpu.core_type<tc>} {
    %c0 = arith.constant 0 : index
    %c0_0 = arith.constant 0 : index
    %0 = vector.load %arg0[%c0, %c0_0] : memref<64x4xf32, #tpu.memory_space<vmem>>, vector<64x4xf32>
    %c0_1 = arith.constant 0 : index
    %c0_2 = arith.constant 0 : index
    %1 = vector.load %arg1[%c0_1, %c0_2] : memref<64x16xf32, #tpu.memory_space<vmem>>, vector<64x16xf32>
    %c0_3 = arith.constant 0 : index
    %c0_4 = arith.constant 0 : index
    %2 = vector.load %arg6[%c0_3, %c0_4] : memref<4x16xf32, #tpu.memory_space<vmem>>, vector<4x16xf32>
    %c0_5 = arith.constant 0 : index
    %c0_6 = arith.constant 0 : index
    %3 = vector.load %arg7[%c0_5, %c0_6] : memref<1x16xf32, #tpu.memory_space<vmem>>, vector<1x16xf32>
    %c0_7 = arith.constant 0 : index
    %c0_8 = arith.constant 0 : index
    %4 = vector.load %arg8[%c0_7, %c0_8] : memref<16x2xf32, #tpu.memory_space<vmem>>, vector<16x2xf32>
    %c0_9 = arith.constant 0 : index
    %5 = memref.load %arg9[%c0_9] : memref<2xf32, #tpu.memory_space<smem>>
    %c1 = arith.constant 1 : index
    %6 = memref.load %arg9[%c1] : memref<2xf32, #tpu.memory_space<smem>>
    %c0_10 = arith.constant 0 : index
    %c0_11 = arith.constant 0 : index
    %7 = vector.load %arg10[%c0_10, %c0_11] : memref<1x16xf32, #tpu.memory_space<vmem>>, vector<1x16xf32>
    %c0_12 = arith.constant 0 : index
    %c0_13 = arith.constant 0 : index
    %8 = vector.load %arg11[%c0_12, %c0_13] : memref<1x16xf32, #tpu.memory_space<vmem>>, vector<1x16xf32>
    %c0_14 = arith.constant 0 : index
    %c0_15 = arith.constant 0 : index
    %9 = vector.load %arg12[%c0_14, %c0_15] : memref<16x4xf32, #tpu.memory_space<vmem>>, vector<16x4xf32>
    %c0_16 = arith.constant 0 : index
    %10 = memref.load %arg13[%c0_16] : memref<1xf32, #tpu.memory_space<smem>>
    %c0_17 = arith.constant 0 : index
    %c0_18 = arith.constant 0 : index
    %11 = vector.load %arg2[%c0_17, %c0_18] : memref<64x1xf32, #tpu.memory_space<vmem>>, vector<64x1xf32>
    %cst = arith.constant dense<0.000000e+00> : vector<64x16xf32>
    %12 = tpu.matmul %0, %2, %cst {dimension_numbers = #tpu.dot_dimension_numbers<[1], [0], [0], [1], [0, 0, 1, 1], [], []>} : vector<64x4xf32>, vector<4x16xf32>, vector<64x16xf32> -> vector<64x16xf32>
    %13 = vector.broadcast %3 : vector<1x16xf32> to vector<64x16xf32>
    %14 = arith.addf %12, %13 : vector<64x16xf32>
    %cst_19 = arith.constant 0.000000e+00 : f32
    %15 = vector.broadcast %cst_19 : f32 to vector<64x16xf32>
    %16 = arith.maximumf %14, %15 : vector<64x16xf32>
    %cst_20 = arith.constant dense<0.000000e+00> : vector<64x2xf32>
    %17 = tpu.matmul %16, %4, %cst_20 {dimension_numbers = #tpu.dot_dimension_numbers<[1], [0], [0], [1], [0, 0, 1, 1], [], []>} : vector<64x16xf32>, vector<16x2xf32>, vector<64x2xf32> -> vector<64x2xf32>
    %18 = vector.extract_strided_slice %17 {offsets = [0, 0], sizes = [64, 1], strides = [1, 1]} : vector<64x2xf32> to vector<64x1xf32>
    %19 = vector.broadcast %5 : f32 to vector<64x1xf32>
    %20 = arith.addf %18, %19 : vector<64x1xf32>
    %21 = vector.extract_strided_slice %17 {offsets = [0, 1], sizes = [64, 1], strides = [1, 1]} : vector<64x2xf32> to vector<64x1xf32>
    %22 = vector.broadcast %6 : f32 to vector<64x1xf32>
    %23 = arith.addf %21, %22 : vector<64x1xf32>
    %24 = math.exp %23 : vector<64x1xf32>
    %25 = math.sqrt %24 : vector<64x1xf32>
    %26 = arith.mulf %25, %11 : vector<64x1xf32>
    %27 = arith.addf %20, %26 : vector<64x1xf32>
    %28 = vector.broadcast %27 : vector<64x1xf32> to vector<64x16xf32>
    %29 = vector.broadcast %7 : vector<1x16xf32> to vector<64x16xf32>
    %30 = arith.mulf %28, %29 : vector<64x16xf32>
    %31 = vector.broadcast %8 : vector<1x16xf32> to vector<64x16xf32>
    %32 = arith.addf %30, %31 : vector<64x16xf32>
    %cst_21 = arith.constant 0.000000e+00 : f32
    %33 = vector.broadcast %cst_21 : f32 to vector<64x16xf32>
    %34 = arith.maximumf %32, %33 : vector<64x16xf32>
    %cst_22 = arith.constant dense<0.000000e+00> : vector<64x4xf32>
    %35 = tpu.matmul %34, %9, %cst_22 {dimension_numbers = #tpu.dot_dimension_numbers<[1], [0], [0], [1], [0, 0, 1, 1], [], []>} : vector<64x16xf32>, vector<16x4xf32>, vector<64x4xf32> -> vector<64x4xf32>
    %36 = vector.broadcast %10 : f32 to vector<64x4xf32>
    %37 = arith.addf %35, %36 : vector<64x4xf32>
    %c0_23 = arith.constant 0 : index
    %c0_24 = arith.constant 0 : index
    %38 = vector.load %arg14[%c0_23, %c0_24] : memref<16x64xf32, #tpu.memory_space<vmem>>, vector<16x64xf32>
    %c0_25 = arith.constant 0 : index
    %c0_26 = arith.constant 0 : index
    %39 = vector.load %arg15[%c0_25, %c0_26] : memref<1x64xf32, #tpu.memory_space<vmem>>, vector<1x64xf32>
    %c0_27 = arith.constant 0 : index
    %c0_28 = arith.constant 0 : index
    %40 = vector.load %arg16[%c0_27, %c0_28] : memref<64x2xf32, #tpu.memory_space<vmem>>, vector<64x2xf32>
    %c0_29 = arith.constant 0 : index
    %41 = memref.load %arg17[%c0_29] : memref<2xf32, #tpu.memory_space<smem>>
    %c1_30 = arith.constant 1 : index
    %42 = memref.load %arg17[%c1_30] : memref<2xf32, #tpu.memory_space<smem>>
    %c0_31 = arith.constant 0 : index
    %c0_32 = arith.constant 0 : index
    %43 = vector.load %arg18[%c0_31, %c0_32] : memref<1x64xf32, #tpu.memory_space<vmem>>, vector<1x64xf32>
    %c0_33 = arith.constant 0 : index
    %c0_34 = arith.constant 0 : index
    %44 = vector.load %arg19[%c0_33, %c0_34] : memref<1x64xf32, #tpu.memory_space<vmem>>, vector<1x64xf32>
    %c0_35 = arith.constant 0 : index
    %c0_36 = arith.constant 0 : index
    %45 = vector.load %arg20[%c0_35, %c0_36] : memref<64x16xf32, #tpu.memory_space<vmem>>, vector<64x16xf32>
    %c0_37 = arith.constant 0 : index
    %46 = memref.load %arg21[%c0_37] : memref<1xf32, #tpu.memory_space<smem>>
    %c0_38 = arith.constant 0 : index
    %c0_39 = arith.constant 0 : index
    %47 = vector.load %arg3[%c0_38, %c0_39] : memref<64x1xf32, #tpu.memory_space<vmem>>, vector<64x1xf32>
    %cst_40 = arith.constant dense<0.000000e+00> : vector<64x64xf32>
    %48 = tpu.matmul %1, %38, %cst_40 {dimension_numbers = #tpu.dot_dimension_numbers<[1], [0], [0], [1], [0, 0, 1, 1], [], []>} : vector<64x16xf32>, vector<16x64xf32>, vector<64x64xf32> -> vector<64x64xf32>
    %49 = vector.broadcast %39 : vector<1x64xf32> to vector<64x64xf32>
    %50 = arith.addf %48, %49 : vector<64x64xf32>
    %cst_41 = arith.constant 0.000000e+00 : f32
    %51 = vector.broadcast %cst_41 : f32 to vector<64x64xf32>
    %52 = arith.maximumf %50, %51 : vector<64x64xf32>
    %cst_42 = arith.constant dense<0.000000e+00> : vector<64x2xf32>
    %53 = tpu.matmul %52, %40, %cst_42 {dimension_numbers = #tpu.dot_dimension_numbers<[1], [0], [0], [1], [0, 0, 1, 1], [], []>} : vector<64x64xf32>, vector<64x2xf32>, vector<64x2xf32> -> vector<64x2xf32>
    %54 = vector.extract_strided_slice %53 {offsets = [0, 0], sizes = [64, 1], strides = [1, 1]} : vector<64x2xf32> to vector<64x1xf32>
    %55 = vector.broadcast %41 : f32 to vector<64x1xf32>
    %56 = arith.addf %54, %55 : vector<64x1xf32>
    %57 = vector.extract_strided_slice %53 {offsets = [0, 1], sizes = [64, 1], strides = [1, 1]} : vector<64x2xf32> to vector<64x1xf32>
    %58 = vector.broadcast %42 : f32 to vector<64x1xf32>
    %59 = arith.addf %57, %58 : vector<64x1xf32>
    %60 = math.exp %59 : vector<64x1xf32>
    %61 = math.sqrt %60 : vector<64x1xf32>
    %62 = arith.mulf %61, %47 : vector<64x1xf32>
    %63 = arith.addf %56, %62 : vector<64x1xf32>
    %64 = vector.broadcast %63 : vector<64x1xf32> to vector<64x64xf32>
    %65 = vector.broadcast %43 : vector<1x64xf32> to vector<64x64xf32>
    %66 = arith.mulf %64, %65 : vector<64x64xf32>
    %67 = vector.broadcast %44 : vector<1x64xf32> to vector<64x64xf32>
    %68 = arith.addf %66, %67 : vector<64x64xf32>
    %cst_43 = arith.constant 0.000000e+00 : f32
    %69 = vector.broadcast %cst_43 : f32 to vector<64x64xf32>
    %70 = arith.maximumf %68, %69 : vector<64x64xf32>
    %cst_44 = arith.constant dense<0.000000e+00> : vector<64x16xf32>
    %71 = tpu.matmul %70, %45, %cst_44 {dimension_numbers = #tpu.dot_dimension_numbers<[1], [0], [0], [1], [0, 0, 1, 1], [], []>} : vector<64x64xf32>, vector<64x16xf32>, vector<64x16xf32> -> vector<64x16xf32>
    %72 = vector.broadcast %46 : f32 to vector<64x16xf32>
    %73 = arith.addf %71, %72 : vector<64x16xf32>
    %c0_45 = arith.constant 0 : index
    %c0_46 = arith.constant 0 : index
    %74 = vector.load %arg22[%c0_45, %c0_46] : memref<4x192xf32, #tpu.memory_space<vmem>>, vector<4x192xf32>
    %cst_47 = arith.constant dense<0.000000e+00> : vector<64x192xf32>
    %75 = tpu.matmul %0, %74, %cst_47 {dimension_numbers = #tpu.dot_dimension_numbers<[1], [0], [0], [1], [0, 0, 1, 1], [], []>} : vector<64x4xf32>, vector<4x192xf32>, vector<64x192xf32> -> vector<64x192xf32>
    %c0_48 = arith.constant 0 : index
    %c0_49 = arith.constant 0 : index
    %76 = vector.load %arg23[%c0_48, %c0_49] : memref<1x192xf32, #tpu.memory_space<vmem>>, vector<1x192xf32>
    %77 = vector.broadcast %76 : vector<1x192xf32> to vector<64x192xf32>
    %78 = arith.addf %75, %77 : vector<64x192xf32>
    %cst_50 = arith.constant 0.000000e+00 : f32
    %79 = vector.broadcast %cst_50 : f32 to vector<64x192xf32>
    %80 = arith.maximumf %78, %79 : vector<64x192xf32>
    %c0_51 = arith.constant 0 : index
    %c0_52 = arith.constant 0 : index
    %81 = vector.load %arg24[%c0_51, %c0_52] : memref<192x192xf32, #tpu.memory_space<vmem>>, vector<192x192xf32>
    %cst_53 = arith.constant dense<0.000000e+00> : vector<64x192xf32>
    %82 = tpu.matmul %80, %81, %cst_53 {dimension_numbers = #tpu.dot_dimension_numbers<[1], [0], [0], [1], [0, 0, 1, 1], [], []>} : vector<64x192xf32>, vector<192x192xf32>, vector<64x192xf32> -> vector<64x192xf32>
    %c0_54 = arith.constant 0 : index
    %c0_55 = arith.constant 0 : index
    %83 = vector.load %arg25[%c0_54, %c0_55] : memref<1x192xf32, #tpu.memory_space<vmem>>, vector<1x192xf32>
    %84 = vector.broadcast %83 : vector<1x192xf32> to vector<64x192xf32>
    %85 = arith.addf %82, %84 : vector<64x192xf32>
    %cst_56 = arith.constant 0.000000e+00 : f32
    %86 = vector.broadcast %cst_56 : f32 to vector<64x192xf32>
    %87 = arith.maximumf %85, %86 : vector<64x192xf32>
    %c0_57 = arith.constant 0 : index
    %c0_58 = arith.constant 0 : index
    %88 = vector.load %arg26[%c0_57, %c0_58] : memref<192x6xf32, #tpu.memory_space<vmem>>, vector<192x6xf32>
    %cst_59 = arith.constant dense<0.000000e+00> : vector<64x6xf32>
    %89 = tpu.matmul %87, %88, %cst_59 {dimension_numbers = #tpu.dot_dimension_numbers<[1], [0], [0], [1], [0, 0, 1, 1], [], []>} : vector<64x192xf32>, vector<192x6xf32>, vector<64x6xf32> -> vector<64x6xf32>
    %c0_60 = arith.constant 0 : index
    %c0_61 = arith.constant 0 : index
    %90 = vector.load %arg27[%c0_60, %c0_61] : memref<1x6xf32, #tpu.memory_space<vmem>>, vector<1x6xf32>
    %91 = vector.broadcast %90 : vector<1x6xf32> to vector<64x6xf32>
    %92 = arith.addf %89, %91 : vector<64x6xf32>
    %93 = vector.extract_strided_slice %92 {offsets = [0, 0], sizes = [64, 1], strides = [1, 1]} : vector<64x6xf32> to vector<64x1xf32>
    %94 = vector.extract_strided_slice %92 {offsets = [0, 1], sizes = [64, 1], strides = [1, 1]} : vector<64x6xf32> to vector<64x1xf32>
    %95 = vector.extract_strided_slice %92 {offsets = [0, 2], sizes = [64, 1], strides = [1, 1]} : vector<64x6xf32> to vector<64x1xf32>
    %96 = vector.extract_strided_slice %92 {offsets = [0, 3], sizes = [64, 1], strides = [1, 1]} : vector<64x6xf32> to vector<64x1xf32>
    %97 = vector.extract_strided_slice %92 {offsets = [0, 4], sizes = [64, 1], strides = [1, 1]} : vector<64x6xf32> to vector<64x1xf32>
    %98 = vector.extract_strided_slice %92 {offsets = [0, 5], sizes = [64, 1], strides = [1, 1]} : vector<64x6xf32> to vector<64x1xf32>
    %99 = arith.mulf %93, %63 : vector<64x1xf32>
    %100 = arith.addf %99, %96 : vector<64x1xf32>
    %cst_62 = arith.constant 0.000000e+00 : f32
    %101 = vector.broadcast %cst_62 : f32 to vector<64x1xf32>
    %102 = arith.maximumf %100, %101 : vector<64x1xf32>
    %103 = arith.mulf %94, %102 : vector<64x1xf32>
    %104 = arith.addf %103, %97 : vector<64x1xf32>
    %105 = arith.addf %104, %63 : vector<64x1xf32>
    %106 = arith.mulf %94, %105 : vector<64x1xf32>
    %107 = arith.addf %106, %97 : vector<64x1xf32>
    %cst_63 = arith.constant 0.000000e+00 : f32
    %108 = vector.broadcast %cst_63 : f32 to vector<64x1xf32>
    %109 = arith.maximumf %107, %108 : vector<64x1xf32>
    %110 = arith.mulf %95, %109 : vector<64x1xf32>
    %111 = arith.addf %110, %98 : vector<64x1xf32>
    %112 = arith.addf %111, %105 : vector<64x1xf32>
    %c0_64 = arith.constant 0 : index
    %c0_65 = arith.constant 0 : index
    %113 = vector.load %arg4[%c0_64, %c0_65] : memref<1x4xf32, #tpu.memory_space<vmem>>, vector<1x4xf32>
    %114 = vector.broadcast %113 : vector<1x4xf32> to vector<64x4xf32>
    %115 = arith.divf %0, %114 : vector<64x4xf32>
    %116 = tpu.transpose %115, [1, 0] : vector<64x4xf32> -> vector<4x64xf32>
    %cst_66 = arith.constant 0.000000e+00 : f32
    %117 = vector.broadcast %cst_66 : f32 to vector<64x64xf32>
    %118 = vector.extract_strided_slice %115 {offsets = [0, 0], sizes = [64, 1], strides = [1, 1]} : vector<64x4xf32> to vector<64x1xf32>
    %119 = vector.extract_strided_slice %116 {offsets = [0, 0], sizes = [1, 64], strides = [1, 1]} : vector<4x64xf32> to vector<1x64xf32>
    %120 = vector.broadcast %118 : vector<64x1xf32> to vector<64x64xf32>
    %121 = vector.broadcast %119 : vector<1x64xf32> to vector<64x64xf32>
    %122 = arith.subf %120, %121 : vector<64x64xf32>
    %123 = arith.mulf %122, %122 : vector<64x64xf32>
    %124 = arith.addf %117, %123 : vector<64x64xf32>
    %125 = vector.extract_strided_slice %115 {offsets = [0, 1], sizes = [64, 1], strides = [1, 1]} : vector<64x4xf32> to vector<64x1xf32>
    %126 = vector.extract_strided_slice %116 {offsets = [1, 0], sizes = [1, 64], strides = [1, 1]} : vector<4x64xf32> to vector<1x64xf32>
    %127 = vector.broadcast %125 : vector<64x1xf32> to vector<64x64xf32>
    %128 = vector.broadcast %126 : vector<1x64xf32> to vector<64x64xf32>
    %129 = arith.subf %127, %128 : vector<64x64xf32>
    %130 = arith.mulf %129, %129 : vector<64x64xf32>
    %131 = arith.addf %124, %130 : vector<64x64xf32>
    %132 = vector.extract_strided_slice %115 {offsets = [0, 2], sizes = [64, 1], strides = [1, 1]} : vector<64x4xf32> to vector<64x1xf32>
    %133 = vector.extract_strided_slice %116 {offsets = [2, 0], sizes = [1, 64], strides = [1, 1]} : vector<4x64xf32> to vector<1x64xf32>
    %134 = vector.broadcast %132 : vector<64x1xf32> to vector<64x64xf32>
    %135 = vector.broadcast %133 : vector<1x64xf32> to vector<64x64xf32>
    %136 = arith.subf %134, %135 : vector<64x64xf32>
    %137 = arith.mulf %136, %136 : vector<64x64xf32>
    %138 = arith.addf %131, %137 : vector<64x64xf32>
    %139 = vector.extract_strided_slice %115 {offsets = [0, 3], sizes = [64, 1], strides = [1, 1]} : vector<64x4xf32> to vector<64x1xf32>
    %140 = vector.extract_strided_slice %116 {offsets = [3, 0], sizes = [1, 64], strides = [1, 1]} : vector<4x64xf32> to vector<1x64xf32>
    %141 = vector.broadcast %139 : vector<64x1xf32> to vector<64x64xf32>
    %142 = vector.broadcast %140 : vector<1x64xf32> to vector<64x64xf32>
    %143 = arith.subf %141, %142 : vector<64x64xf32>
    %144 = arith.mulf %143, %143 : vector<64x64xf32>
    %145 = arith.addf %138, %144 : vector<64x64xf32>
    %c0_67 = arith.constant 0 : index
    %146 = memref.load %arg5[%c0_67] : memref<1xf32, #tpu.memory_space<smem>>
    %cst_68 = arith.constant 5.000000e-01 : f32
    %147 = arith.mulf %cst_68, %146 : f32
    %cst_69 = arith.constant 9.99999996E-13 : f32
    %148 = vector.broadcast %cst_69 : f32 to vector<64x64xf32>
    %149 = arith.addf %145, %148 : vector<64x64xf32>
    %150 = math.log %149 : vector<64x64xf32>
    %151 = vector.broadcast %147 : f32 to vector<64x64xf32>
    %152 = arith.mulf %151, %150 : vector<64x64xf32>
    %153 = math.exp %152 : vector<64x64xf32>
    %cst_70 = arith.constant 9.99999997E-7 : f32
    %154 = vector.broadcast %cst_70 : f32 to vector<64x64xf32>
    %155 = arith.addf %153, %154 : vector<64x64xf32>
    %156 = tpu.reciprocal %155 {approx = true} : vector<64x64xf32> -> vector<64x64xf32>
    %c0_71 = arith.constant 0 : index
    %c0_72 = arith.constant 0 : index
    %157 = vector.load %arg34[%c0_71, %c0_72] : memref<64x64xf32, #tpu.memory_space<vmem>>, vector<64x64xf32>
    tpu.vector_store %arg34[%c0_71, %c0_72], %156 {strides = array<i32>} : memref<64x64xf32, #tpu.memory_space<vmem>>, vector<64x64xf32>,
    %cst_73 = arith.constant dense<0.000000e+00> : vector<64xf32>
    %158 = vector.multi_reduction <add>, %156, %cst_73 [1] : vector<64x64xf32> to vector<64xf32>
    %159 = vector.shape_cast %158 : vector<64xf32> to vector<64x1xf32>
    %cst_74 = arith.constant dense<0.000000e+00> : vector<64x1xf32>
    %160 = tpu.matmul %156, %112, %cst_74 {dimension_numbers = #tpu.dot_dimension_numbers<[1], [0], [0], [1], [0, 0, 1, 1], [], []>} : vector<64x64xf32>, vector<64x1xf32>, vector<64x1xf32> -> vector<64x1xf32>
    %161 = tpu.reciprocal %159 {approx = true} : vector<64x1xf32> -> vector<64x1xf32>
    %162 = arith.mulf %160, %161 : vector<64x1xf32>
    %163 = vector.broadcast %162 : vector<64x1xf32> to vector<64x64xf32>
    %164 = vector.broadcast %43 : vector<1x64xf32> to vector<64x64xf32>
    %165 = arith.mulf %163, %164 : vector<64x64xf32>
    %166 = vector.broadcast %44 : vector<1x64xf32> to vector<64x64xf32>
    %167 = arith.addf %165, %166 : vector<64x64xf32>
    %cst_75 = arith.constant 0.000000e+00 : f32
    %168 = vector.broadcast %cst_75 : f32 to vector<64x64xf32>
    %169 = arith.maximumf %167, %168 : vector<64x64xf32>
    %cst_76 = arith.constant dense<0.000000e+00> : vector<64x16xf32>
    %170 = tpu.matmul %169, %45, %cst_76 {dimension_numbers = #tpu.dot_dimension_numbers<[1], [0], [0], [1], [0, 0, 1, 1], [], []>} : vector<64x64xf32>, vector<64x16xf32>, vector<64x16xf32> -> vector<64x16xf32>
    %171 = vector.broadcast %46 : f32 to vector<64x16xf32>
    %172 = arith.addf %170, %171 : vector<64x16xf32>
    %c0_77 = arith.constant 0 : index
    %c0_78 = arith.constant 0 : index
    %173 = vector.load %arg28[%c0_77, %c0_78] : memref<64x16xf32, #tpu.memory_space<vmem>>, vector<64x16xf32>
    tpu.vector_store %arg28[%c0_77, %c0_78], %172 {strides = array<i32>} : memref<64x16xf32, #tpu.memory_space<vmem>>, vector<64x16xf32>,
    %c0_79 = arith.constant 0 : index
    %c0_80 = arith.constant 0 : index
    %174 = vector.load %arg29[%c0_79, %c0_80] : memref<64x4xf32, #tpu.memory_space<vmem>>, vector<64x4xf32>
    tpu.vector_store %arg29[%c0_79, %c0_80], %37 {strides = array<i32>} : memref<64x4xf32, #tpu.memory_space<vmem>>, vector<64x4xf32>,
    %c0_81 = arith.constant 0 : index
    %c0_82 = arith.constant 0 : index
    %175 = vector.load %arg30[%c0_81, %c0_82] : memref<64x16xf32, #tpu.memory_space<vmem>>, vector<64x16xf32>
    tpu.vector_store %arg30[%c0_81, %c0_82], %73 {strides = array<i32>} : memref<64x16xf32, #tpu.memory_space<vmem>>, vector<64x16xf32>,
    %176 = tpu.concatenate %27, %20, %24, %23 in 1 : vector<64x1xf32>, vector<64x1xf32>, vector<64x1xf32>, vector<64x1xf32> -> vector<64x4xf32>
    %c0_83 = arith.constant 0 : index
    %c0_84 = arith.constant 0 : index
    %177 = vector.load %arg31[%c0_83, %c0_84] : memref<64x4xf32, #tpu.memory_space<vmem>>, vector<64x4xf32>
    tpu.vector_store %arg31[%c0_83, %c0_84], %176 {strides = array<i32>} : memref<64x4xf32, #tpu.memory_space<vmem>>, vector<64x4xf32>,
    %178 = tpu.concatenate %63, %56, %60, %59 in 1 : vector<64x1xf32>, vector<64x1xf32>, vector<64x1xf32>, vector<64x1xf32> -> vector<64x4xf32>
    %c0_85 = arith.constant 0 : index
    %c0_86 = arith.constant 0 : index
    %179 = vector.load %arg32[%c0_85, %c0_86] : memref<64x4xf32, #tpu.memory_space<vmem>>, vector<64x4xf32>
    tpu.vector_store %arg32[%c0_85, %c0_86], %178 {strides = array<i32>} : memref<64x4xf32, #tpu.memory_space<vmem>>, vector<64x4xf32>,
    %180 = tpu.concatenate %112, %162 in 1 : vector<64x1xf32>, vector<64x1xf32> -> vector<64x2xf32>
    %c0_87 = arith.constant 0 : index
    %c0_88 = arith.constant 0 : index
    %181 = vector.load %arg33[%c0_87, %c0_88] : memref<64x2xf32, #tpu.memory_space<vmem>>, vector<64x2xf32>
    tpu.vector_store %arg33[%c0_87, %c0_88], %180 {strides = array<i32>} : memref<64x2xf32, #tpu.memory_space<vmem>>, vector<64x2xf32>,
    return
  }
}

</mosaic_0001>

<llo_original>
// kernel: deep_idw_autoencoder_conv_forward.1
$region0: #{deep_idw_autoencoder_conv_forward.1}
  #allocation0 [shape = 'u32[]', space=smem, size = 0x4, offset = 0x4, fixed_abs, tag = 'smem constant byte address 0x4 - core index']
  #allocation1 [shape = 'u32[72,128]{1,0:T(1,128)}', space=vmem, size = 0x9000, scoped, tag = 'internal scratch']
  #allocation2 [shape = 'f32[1]{0:T(128)S(6)}', space=smem, size = 0x200, scoped, tag = 'scoped memory for deep_idw_autoencoder_conv_forward.1']
  #allocation3 [shape = 'f32[1]{0:T(128)S(6)}', space=smem, size = 0x200, scoped, tag = 'scoped memory for deep_idw_autoencoder_conv_forward.1']
  #allocation4 [shape = 'f32[1]{0:T(128)S(6)}', space=smem, size = 0x200, scoped, tag = 'scoped memory for deep_idw_autoencoder_conv_forward.1']
  %s0 = inlined_call_operand.smem [shape: u32[35], index: -1, kind: input, shape index: {}]
  %s1 = sld [smem:[%s0]]
  %s2 = scalar_lea.smem %s0, 1
  %s3 = sld [smem:[%s2]]
  %s4 = scalar_lea.smem %s0, 2
  %s5 = sld [smem:[%s4]]
  %s6 = scalar_lea.smem %s0, 3
  %s7 = sld [smem:[%s6]]
  %s8 = scalar_lea.smem %s0, 4
  %s9 = sld [smem:[%s8]]
  %s10 = scalar_lea.smem %s0, 5
  %s11 = sld [smem:[%s10]]
  %s12 = scalar_lea.smem %s0, 6
  %s13 = sld [smem:[%s12]]
  %s14 = scalar_lea.smem %s0, 7
  %s15 = sld [smem:[%s14]]
  %s16 = scalar_lea.smem %s0, 8
  %s17 = sld [smem:[%s16]]
  %s18 = scalar_lea.smem %s0, 9
  %s19 = sld [smem:[%s18]]
  %s20 = scalar_lea.smem %s0, 10
  %s21 = sld [smem:[%s20]]
  %s22 = scalar_lea.smem %s0, 11
  %s23 = sld [smem:[%s22]]
  %s24 = scalar_lea.smem %s0, 12
  %s25 = sld [smem:[%s24]]
  %s26 = scalar_lea.smem %s0, 13
  %s27 = sld [smem:[%s26]]
  %s28 = scalar_lea.smem %s0, 14
  %s29 = sld [smem:[%s28]]
  %s30 = scalar_lea.smem %s0, 15
  %s31 = sld [smem:[%s30]]
  %s32 = scalar_lea.smem %s0, 16
  %s33 = sld [smem:[%s32]]
  %s34 = scalar_lea.smem %s0, 17
  %s35 = sld [smem:[%s34]]
  %s36 = scalar_lea.smem %s0, 18
  %s37 = sld [smem:[%s36]]
  %s38 = scalar_lea.smem %s0, 19
  %s39 = sld [smem:[%s38]]
  %s40 = scalar_lea.smem %s0, 20
  %s41 = sld [smem:[%s40]]
  %s42 = scalar_lea.smem %s0, 21
  %s43 = sld [smem:[%s42]]
  %s44 = scalar_lea.smem %s0, 22
  %s45 = sld [smem:[%s44]]
  %s46 = scalar_lea.smem %s0, 23
  %s47 = sld [smem:[%s46]]
  %s48 = scalar_lea.smem %s0, 24
  %s49 = sld [smem:[%s48]]
  %s50 = scalar_lea.smem %s0, 25
  %s51 = sld [smem:[%s50]]
  %s52 = scalar_lea.smem %s0, 26
  %s53 = sld [smem:[%s52]]
  %s54 = scalar_lea.smem %s0, 27
  %s55 = sld [smem:[%s54]]
  %s56 = scalar_lea.smem %s0, 28
  %s57 = sld [smem:[%s56]]
  %s58 = scalar_lea.smem %s0, 29
  %s59 = sld [smem:[%s58]]
  %s60 = scalar_lea.smem %s0, 30
  %s61 = sld [smem:[%s60]]
  %s62 = scalar_lea.smem %s0, 31
  %s63 = sld [smem:[%s62]]
  %s64 = scalar_lea.smem %s0, 32
  %s65 = sld [smem:[%s64]]
  %s66 = scalar_lea.smem %s0, 33
  %s67 = sld [smem:[%s66]]
  %s68 = scalar_lea.smem %s0, 34
  %s69 = sld [smem:[%s68]]
  %70 = xla_tuple %s57, %s59, %s61, %s63, %s65, %s67, %s69
  %s71 = sld [smem:[#allocation0]]
  $region182: #{deep_idw_autoencoder_conv_forward.1} parent=0
    _
  %s73 = ssub.s32 1, %s71
  %s74 = scalar_select 0, %s73, %s71
  %75 = sst [smem:[#allocation2]] %s11
  %76 = sst [smem:[#allocation3]] %s27
  %77 = sst [smem:[#allocation4]] %s43
  $region1: #{deep_idw_autoencoder_conv_forward.1} parent=0
    #allocation5 [shape = 'u8[512]{0}', space=smem, size = 0x200, scoped, tag = 'input window, operand 9, single buffered']
    #allocation6 [shape = 's32[1]{0}', space=sflag, size = 0x4, scoped, tag = 'scoped memory for deep_idw_autoencoder_conv_forward.1']
    #allocation7 [shape = 's32[1]{0}', space=sflag, size = 0x4, scoped, tag = 'scoped memory for deep_idw_autoencoder_conv_forward.1']
    #allocation8 [shape = 's32[1]{0}', space=sflag, size = 0x4, scoped, tag = 'scoped memory for deep_idw_autoencoder_conv_forward.1']
    #allocation9 [shape = 'u8[512]{0}', space=smem, size = 0x200, scoped, tag = 'input window, operand 17, single buffered']
    #allocation10 [shape = 's32[1]{0}', space=sflag, size = 0x4, scoped, tag = 'scoped memory for deep_idw_autoencoder_conv_forward.1']
    #allocation11 [shape = 'u8[196608]{0}', space=vmem, size = 0x30000, scoped, tag = 'input window, operand 24, single buffered']
    #allocation12 [shape = 'u8[32768]{0}', space=vmem, size = 0x8000, scoped, tag = 'output window, operand 6, single buffered']
    %78 = vsyncpa [#allocation8], 0
    %79 = vsyncpa [#allocation10], 0
    %80 = vsyncpa [#allocation6], 0
    %81 = vsyncpa [#allocation7], 0
    // Predicated region
    $region2: #{deep_idw_autoencoder_conv_forward.1} parent=1 // pred_check
      _
    $region3: #{deep_idw_autoencoder_conv_forward.1} parent=1 // pred_check_branch
      %83 = sbr.rel (0) target = $region5
    $region4: #{deep_idw_autoencoder_conv_forward.1} parent=1 // pred_region
      _
    $region5: #{deep_idw_autoencoder_conv_forward.1} parent=1 // pred_fallthru
      _
    // Predicated region
    $region6: #{deep_idw_autoencoder_conv_forward.1} parent=1 // pred_check
      _
    $region7: #{deep_idw_autoencoder_conv_forward.1} parent=1 // pred_check_branch
      %85 = sbr.rel (0) target = $region9
    $region8: #{deep_idw_autoencoder_conv_forward.1} parent=1 // pred_region
      _
    $region9: #{deep_idw_autoencoder_conv_forward.1} parent=1 // pred_fallthru
      _
    // Predicated region
    $region10: #{deep_idw_autoencoder_conv_forward.1} parent=1 // pred_check
      _
    $region11: #{deep_idw_autoencoder_conv_forward.1} parent=1 // pred_check_branch
      %87 = sbr.rel (0) target = $region13
    $region12: #{deep_idw_autoencoder_conv_forward.1} parent=1 // pred_region
      _
    $region13: #{deep_idw_autoencoder_conv_forward.1} parent=1 // pred_fallthru
      _
    // Predicated region
    $region14: #{deep_idw_autoencoder_conv_forward.1} parent=1 // pred_check
      _
    $region15: #{deep_idw_autoencoder_conv_forward.1} parent=1 // pred_check_branch
      %89 = sbr.rel (0) target = $region17
    $region16: #{deep_idw_autoencoder_conv_forward.1} parent=1 // pred_region
      _
    $region17: #{deep_idw_autoencoder_conv_forward.1} parent=1 // pred_fallthru
      _
    // Predicated region
    $region18: #{deep_idw_autoencoder_conv_forward.1} parent=1 // pred_check
      _
    $region19: #{deep_idw_autoencoder_conv_forward.1} parent=1 // pred_check_branch
      %91 = sbr.rel (0) target = $region21
    $region20: #{deep_idw_autoencoder_conv_forward.1} parent=1 // pred_region
      _
    $region21: #{deep_idw_autoencoder_conv_forward.1} parent=1 // pred_fallthru
      _
    // Predicated region
    $region22: #{deep_idw_autoencoder_conv_forward.1} parent=1 // pred_check
      _
    $region23: #{deep_idw_autoencoder_conv_forward.1} parent=1 // pred_check_branch
      %93 = sbr.rel (0) target = $region25
    $region24: #{deep_idw_autoencoder_conv_forward.1} parent=1 // pred_region
      _
    $region25: #{deep_idw_autoencoder_conv_forward.1} parent=1 // pred_fallthru
      _
    // Predicated region
    $region26: #{deep_idw_autoencoder_conv_forward.1} parent=1 // pred_check
      _
    $region27: #{deep_idw_autoencoder_conv_forward.1} parent=1 // pred_check_branch
      %95 = sbr.rel (0) target = $region29
    $region28: #{deep_idw_autoencoder_conv_forward.1} parent=1 // pred_region
      _
    $region29: #{deep_idw_autoencoder_conv_forward.1} parent=1 // pred_fallthru
      _
    // Predicated region
    $region30: #{deep_idw_autoencoder_conv_forward.1} parent=1 // pred_check
      _
    $region31: #{deep_idw_autoencoder_conv_forward.1} parent=1 // pred_check_branch
      %97 = sbr.rel (0) target = $region33
    $region32: #{deep_idw_autoencoder_conv_forward.1} parent=1 // pred_region
      _
    $region33: #{deep_idw_autoencoder_conv_forward.1} parent=1 // pred_fallthru
      _
    // Predicated region
    $region34: #{deep_idw_autoencoder_conv_forward.1} parent=1 // pred_check
      _
    $region35: #{deep_idw_autoencoder_conv_forward.1} parent=1 // pred_check_branch
      %99 = sbr.rel (0) target = $region37
    $region36: #{deep_idw_autoencoder_conv_forward.1} parent=1 // pred_region
      _
    $region37: #{deep_idw_autoencoder_conv_forward.1} parent=1 // pred_fallthru
      _
    // Predicated region
    $region38: #{deep_idw_autoencoder_conv_forward.1} parent=1 // pred_check
      _
    $region39: #{deep_idw_autoencoder_conv_forward.1} parent=1 // pred_check_branch
      %101 = sbr.rel (0) target = $region41
    $region40: #{deep_idw_autoencoder_conv_forward.1} parent=1 // pred_region
      %103 = vsyncadd [#allocation8], 0
      %s105 = sshll.u32 %s19, 4
      %s106 = int_to_ptr.vmem [resolvable:$true] %s105
      %108 = dma.vmem_to_smem %s106, 16, [#allocation5], [#allocation8]
    $region41: #{deep_idw_autoencoder_conv_forward.1} parent=1 // pred_fallthru
      _
    // Predicated region
    $region42: #{deep_idw_autoencoder_conv_forward.1} parent=1 // pred_check
      _
    $region43: #{deep_idw_autoencoder_conv_forward.1} parent=1 // pred_check_branch
      %110 = sbr.rel (0) target = $region45
    $region44: #{deep_idw_autoencoder_conv_forward.1} parent=1 // pred_region
      _
    $region45: #{deep_idw_autoencoder_conv_forward.1} parent=1 // pred_fallthru
      _
    // Predicated region
    $region46: #{deep_idw_autoencoder_conv_forward.1} parent=1 // pred_check
      _
    $region47: #{deep_idw_autoencoder_conv_forward.1} parent=1 // pred_check_branch
      %112 = sbr.rel (0) target = $region49
    $region48: #{deep_idw_autoencoder_conv_forward.1} parent=1 // pred_region
      _
    $region49: #{deep_idw_autoencoder_conv_forward.1} parent=1 // pred_fallthru
      _
    // Predicated region
    $region50: #{deep_idw_autoencoder_conv_forward.1} parent=1 // pred_check
      _
    $region51: #{deep_idw_autoencoder_conv_forward.1} parent=1 // pred_check_branch
      %114 = sbr.rel (0) target = $region53
    $region52: #{deep_idw_autoencoder_conv_forward.1} parent=1 // pred_region
      _
    $region53: #{deep_idw_autoencoder_conv_forward.1} parent=1 // pred_fallthru
      _
    // Predicated region
    $region54: #{deep_idw_autoencoder_conv_forward.1} parent=1 // pred_check
      _
    $region55: #{deep_idw_autoencoder_conv_forward.1} parent=1 // pred_check_branch
      %116 = sbr.rel (0) target = $region57
    $region56: #{deep_idw_autoencoder_conv_forward.1} parent=1 // pred_region
      _
    $region57: #{deep_idw_autoencoder_conv_forward.1} parent=1 // pred_fallthru
      _
    // Predicated region
    $region58: #{deep_idw_autoencoder_conv_forward.1} parent=1 // pred_check
      _
    $region59: #{deep_idw_autoencoder_conv_forward.1} parent=1 // pred_check_branch
      %118 = sbr.rel (0) target = $region61
    $region60: #{deep_idw_autoencoder_conv_forward.1} parent=1 // pred_region
      _
    $region61: #{deep_idw_autoencoder_conv_forward.1} parent=1 // pred_fallthru
      _
    // Predicated region
    $region62: #{deep_idw_autoencoder_conv_forward.1} parent=1 // pred_check
      _
    $region63: #{deep_idw_autoencoder_conv_forward.1} parent=1 // pred_check_branch
      %120 = sbr.rel (0) target = $region65
    $region64: #{deep_idw_autoencoder_conv_forward.1} parent=1 // pred_region
      _
    $region65: #{deep_idw_autoencoder_conv_forward.1} parent=1 // pred_fallthru
      _
    // Predicated region
    $region66: #{deep_idw_autoencoder_conv_forward.1} parent=1 // pred_check
      _
    $region67: #{deep_idw_autoencoder_conv_forward.1} parent=1 // pred_check_branch
      %122 = sbr.rel (0) target = $region69
    $region68: #{deep_idw_autoencoder_conv_forward.1} parent=1 // pred_region
      _
    $region69: #{deep_idw_autoencoder_conv_forward.1} parent=1 // pred_fallthru
      _
    // Predicated region
    $region70: #{deep_idw_autoencoder_conv_forward.1} parent=1 // pred_check
      _
    $region71: #{deep_idw_autoencoder_conv_forward.1} parent=1 // pred_check_branch
      %124 = sbr.rel (0) target = $region73
    $region72: #{deep_idw_autoencoder_conv_forward.1} parent=1 // pred_region
      %126 = vsyncadd [#allocation10], 0
      %s128 = sshll.u32 %s35, 4
      %s129 = int_to_ptr.vmem [resolvable:$true] %s128
      %131 = dma.vmem_to_smem %s129, 16, [#allocation9], [#allocation10]
    $region73: #{deep_idw_autoencoder_conv_forward.1} parent=1 // pred_fallthru
      _
    // Predicated region
    $region74: #{deep_idw_autoencoder_conv_forward.1} parent=1 // pred_check
      _
    $region75: #{deep_idw_autoencoder_conv_forward.1} parent=1 // pred_check_branch
      %133 = sbr.rel (0) target = $region77
    $region76: #{deep_idw_autoencoder_conv_forward.1} parent=1 // pred_region
      _
    $region77: #{deep_idw_autoencoder_conv_forward.1} parent=1 // pred_fallthru
      _
    // Predicated region
    $region78: #{deep_idw_autoencoder_conv_forward.1} parent=1 // pred_check
      _
    $region79: #{deep_idw_autoencoder_conv_forward.1} parent=1 // pred_check_branch
      %135 = sbr.rel (0) target = $region81
    $region80: #{deep_idw_autoencoder_conv_forward.1} parent=1 // pred_region
      _
    $region81: #{deep_idw_autoencoder_conv_forward.1} parent=1 // pred_fallthru
      _
    // Predicated region
    $region82: #{deep_idw_autoencoder_conv_forward.1} parent=1 // pred_check
      _
    $region83: #{deep_idw_autoencoder_conv_forward.1} parent=1 // pred_check_branch
      %137 = sbr.rel (0) target = $region85
    $region84: #{deep_idw_autoencoder_conv_forward.1} parent=1 // pred_region
      _
    $region85: #{deep_idw_autoencoder_conv_forward.1} parent=1 // pred_fallthru
      _
    // Predicated region
    $region86: #{deep_idw_autoencoder_conv_forward.1} parent=1 // pred_check
      _
    $region87: #{deep_idw_autoencoder_conv_forward.1} parent=1 // pred_check_branch
      %139 = sbr.rel (0) target = $region89
    $region88: #{deep_idw_autoencoder_conv_forward.1} parent=1 // pred_region
      _
    $region89: #{deep_idw_autoencoder_conv_forward.1} parent=1 // pred_fallthru
      _
    // Predicated region
    $region90: #{deep_idw_autoencoder_conv_forward.1} parent=1 // pred_check
      _
    $region91: #{deep_idw_autoencoder_conv_forward.1} parent=1 // pred_check_branch
      %141 = sbr.rel (0) target = $region93
    $region92: #{deep_idw_autoencoder_conv_forward.1} parent=1 // pred_region
      _
    $region93: #{deep_idw_autoencoder_conv_forward.1} parent=1 // pred_fallthru
      _
    // Predicated region
    $region94: #{deep_idw_autoencoder_conv_forward.1} parent=1 // pred_check
      _
    $region95: #{deep_idw_autoencoder_conv_forward.1} parent=1 // pred_check_branch
      %143 = sbr.rel (0) target = $region97
    $region96: #{deep_idw_autoencoder_conv_forward.1} parent=1 // pred_region
      _
    $region97: #{deep_idw_autoencoder_conv_forward.1} parent=1 // pred_fallthru
      _
    // Predicated region
    $region98: #{deep_idw_autoencoder_conv_forward.1} parent=1 // pred_check
      _
    $region99: #{deep_idw_autoencoder_conv_forward.1} parent=1 // pred_check_branch
      %145 = sbr.rel (0) target = $region101
    $region100: #{deep_idw_autoencoder_conv_forward.1} parent=1 // pred_region
      %147 = vsyncadd [#allocation6], 0
      %s148 = sshll.u32 %s49, 4
      %s149 = int_to_ptr.hbm [resolvable:$true] %s148
      %s150 = sshll.u32 [#allocation11], 4
      %s151 = int_to_ptr.vmem [resolvable:$true] %s150
      %156 = dma.hbm_to_vmem [thread:$0]  %s149, 6144, %s151, [#allocation6], 256, 256, 16
    $region101: #{deep_idw_autoencoder_conv_forward.1} parent=1 // pred_fallthru
      _
    // Predicated region
    $region102: #{deep_idw_autoencoder_conv_forward.1} parent=1 // pred_check
      _
    $region103: #{deep_idw_autoencoder_conv_forward.1} parent=1 // pred_check_branch
      %158 = sbr.rel (0) target = $region105
    $region104: #{deep_idw_autoencoder_conv_forward.1} parent=1 // pred_region
      _
    $region105: #{deep_idw_autoencoder_conv_forward.1} parent=1 // pred_fallthru
      _
    // Predicated region
    $region106: #{deep_idw_autoencoder_conv_forward.1} parent=1 // pred_check
      _
    $region107: #{deep_idw_autoencoder_conv_forward.1} parent=1 // pred_check_branch
      %160 = sbr.rel (0) target = $region109
    $region108: #{deep_idw_autoencoder_conv_forward.1} parent=1 // pred_region
      _
    $region109: #{deep_idw_autoencoder_conv_forward.1} parent=1 // pred_fallthru
      _
    // Predicated region
    $region110: #{deep_idw_autoencoder_conv_forward.1} parent=1 // pred_check
      _
    $region111: #{deep_idw_autoencoder_conv_forward.1} parent=1 // pred_check_branch
      %162 = sbr.rel (0) target = $region113
    $region112: #{deep_idw_autoencoder_conv_forward.1} parent=1 // pred_region
      _
    $region113: #{deep_idw_autoencoder_conv_forward.1} parent=1 // pred_fallthru
      _
    // Predicated region
    $region114: #{deep_idw_autoencoder_conv_forward.1} parent=1 // pred_check
      _
    $region115: #{deep_idw_autoencoder_conv_forward.1} parent=1 // pred_check_branch
      %164 = sbr.rel (0) target = $region117
    $region116: #{deep_idw_autoencoder_conv_forward.1} parent=1 // pred_region
      %166 = dma.done [#allocation8], 16
    $region117: #{deep_idw_autoencoder_conv_forward.1} parent=1 // pred_fallthru
      _
    // Predicated region
    $region118: #{deep_idw_autoencoder_conv_forward.1} parent=1 // pred_check
      _
    $region119: #{deep_idw_autoencoder_conv_forward.1} parent=1 // pred_check_branch
      %168 = sbr.rel (0) target = $region121
    $region120: #{deep_idw_autoencoder_conv_forward.1} parent=1 // pred_region
      %170 = dma.done [#allocation10], 16
    $region121: #{deep_idw_autoencoder_conv_forward.1} parent=1 // pred_fallthru
      _
    // Predicated region
    $region122: #{deep_idw_autoencoder_conv_forward.1} parent=1 // pred_check
      _
    $region123: #{deep_idw_autoencoder_conv_forward.1} parent=1 // pred_check_branch
      %172 = sbr.rel (0) target = $region125
    $region124: #{deep_idw_autoencoder_conv_forward.1} parent=1 // pred_region
      %174 = dma.done [#allocation6], 6144
    $region125: #{deep_idw_autoencoder_conv_forward.1} parent=1 // pred_fallthru
      _
    %175 = sfence
    %v176 = vld [vmem:[%s1] sm:$0xff]
    %v177 = vld [vmem:[%s1 + $0x8] sm:$0xff]
    %v178 = vld [vmem:[%s1 + $0x10] sm:$0xff]
    %v179 = vld [vmem:[%s1 + $0x18] sm:$0xff]
    %v180 = vld [vmem:[%s1 + $0x20] sm:$0xff]
    %v181 = vld [vmem:[%s1 + $0x28] sm:$0xff]
    %v182 = vld [vmem:[%s1 + $0x30] sm:$0xff]
    %v183 = vld [vmem:[%s1 + $0x38] sm:$0xff]
    %v184 = vld [vmem:[%s3] sm:$0xff]
    %v185 = vld [vmem:[%s3 + $0x8] sm:$0xff]
    %v186 = vld [vmem:[%s3 + $0x10] sm:$0xff]
    %v187 = vld [vmem:[%s3 + $0x18] sm:$0xff]
    %v188 = vld [vmem:[%s3 + $0x20] sm:$0xff]
    %v189 = vld [vmem:[%s3 + $0x28] sm:$0xff]
    %v190 = vld [vmem:[%s3 + $0x30] sm:$0xff]
    %v191 = vld [vmem:[%s3 + $0x38] sm:$0xff]
    %v192 = vld [vmem:[%s13] sm:$0xf]
    %v193 = vld [vmem:[%s15] sm:$0x1]
    %v194 = vld [vmem:[%s17] sm:$0xff]
    %v195 = vld [vmem:[%s17 + $0x8] sm:$0xff]
    %s196 = sld [smem:[#allocation5]]
    %s197 = sld [smem:[#allocation5 + $0x1]]
    %v198 = vld [vmem:[%s21] sm:$0x1]
    %v199 = vld [vmem:[%s23] sm:$0x1]
    %v200 = vld [vmem:[%s25] sm:$0xff]
    %v201 = vld [vmem:[%s25 + $0x8] sm:$0xff]
    %s202 = sld [smem:[#allocation3]]
    %v203 = vld [vmem:[%s5] sm:$0xff]
    %v204 = vld [vmem:[%s5 + $0x8] sm:$0xff]
    %v205 = vld [vmem:[%s5 + $0x10] sm:$0xff]
    %v206 = vld [vmem:[%s5 + $0x18] sm:$0xff]
    %v207 = vld [vmem:[%s5 + $0x20] sm:$0xff]
    %v208 = vld [vmem:[%s5 + $0x28] sm:$0xff]
    %v209 = vld [vmem:[%s5 + $0x30] sm:$0xff]
    %v210 = vld [vmem:[%s5 + $0x38] sm:$0xff]
    %v212 = vperm.slane %v193, 0
    %vm214 = vcmask 31744
    %v216 = vsel %vm214, %v176, 0
    %v219 = vsel %vm214, %v177, 0
    %v222 = vsel %vm214, %v178, 0
    %v225 = vsel %vm214, %v179, 0
    %v228 = vsel %vm214, %v180, 0
    %v231 = vsel %vm214, %v181, 0
    %v234 = vsel %vm214, %v182, 0
    %v237 = vsel %vm214, %v183, 0
    %vm239 = vcmask 1043456
    %v241 = vsel %vm239, %v192, 0
    %243 = vmatpush.msra.mxu0 0.0
    %244 = vmatpush.msra.mxu0 0.0
    %245 = vmatpush.msra.mxu0 0.0
    %246 = vmatpush.msra.mxu0 0.0
    %247 = vmatpush.msra.mxu0 0.0
    %248 = vmatpush.msra.mxu0 0.0
    %249 = vmatpush.msra.mxu0 0.0
    %250 = vmatpush.msra.mxu0 0.0
    %251 = vmatpush.msra.mxu0 0.0
    %252 = vmatpush.msra.mxu0 0.0
    %253 = vmatpush.msra.mxu0 0.0
    %254 = vmatpush.msra.mxu0 0.0
    %255 = vmatpush.msra.mxu0 0.0
    %256 = vmatpush.msra.mxu0 0.0
    %257 = vmatpush.msra.mxu0 0.0
    %258 = vmatpush.msra.mxu0 %v241
    %259 = vmatmul.f32.gmra.mxu0 %v216
    %v260 = vpop.f32.mrf.mxu0
    %v261 = vadd.f32 %v212, %v260
    %262 = vmatmul.f32.gmra.mxu0 %v219
    %v263 = vpop.f32.mrf.mxu0
    %v264 = vadd.f32 %v212, %v263
    %265 = vmatmul.f32.gmra.mxu0 %v222
    %v266 = vpop.f32.mrf.mxu0
    %v267 = vadd.f32 %v212, %v266
    %268 = vmatmul.f32.gmra.mxu0 %v225
    %v269 = vpop.f32.mrf.mxu0
    %v270 = vadd.f32 %v212, %v269
    %271 = vmatmul.f32.gmra.mxu0 %v228
    %v272 = vpop.f32.mrf.mxu0
    %v273 = vadd.f32 %v212, %v272
    %274 = vmatmul.f32.gmra.mxu0 %v231
    %v275 = vpop.f32.mrf.mxu0
    %v276 = vadd.f32 %v212, %v275
    %277 = vmatmul.f32.gmra.mxu0 %v234
    %v278 = vpop.f32.mrf.mxu0
    %v279 = vadd.f32 %v212, %v278
    %280 = vmatmul.f32.gmra.mxu0 %v237
    %v281 = vpop.f32.mrf.mxu0
    %v282 = vadd.f32 %v212, %v281
    %283 = vdwg.mxu0
    %v284 = vmax.f32 %v261, 0.0
    %v285 = vmax.f32 %v264, 0.0
    %v286 = vmax.f32 %v267, 0.0
    %v287 = vmax.f32 %v270, 0.0
    %v288 = vmax.f32 %v273, 0.0
    %v289 = vmax.f32 %v276, 0.0
    %v290 = vmax.f32 %v279, 0.0
    %v291 = vmax.f32 %v282, 0.0
    %vm292 = vcmask 130048
    %v294 = vsel %vm292, %v284, 0
    %v297 = vsel %vm292, %v285, 0
    %v300 = vsel %vm292, %v286, 0
    %v303 = vsel %vm292, %v287, 0
    %v306 = vsel %vm292, %v288, 0
    %v309 = vsel %vm292, %v289, 0
    %v312 = vsel %vm292, %v290, 0
    %v315 = vsel %vm292, %v291, 0
    %317 = vmatpush.msra.mxu0 0.0
    %318 = vmatpush.msra.mxu0 0.0
    %319 = vmatpush.msra.mxu0 0.0
    %320 = vmatpush.msra.mxu0 0.0
    %321 = vmatpush.msra.mxu0 0.0
    %322 = vmatpush.msra.mxu0 0.0
    %323 = vmatpush.msra.mxu0 0.0
    %324 = vmatpush.msra.mxu0 0.0
    %325 = vmatpush.msra.mxu0 0.0
    %326 = vmatpush.msra.mxu0 0.0
    %327 = vmatpush.msra.mxu0 0.0
    %328 = vmatpush.msra.mxu0 0.0
    %329 = vmatpush.msra.mxu0 0.0
    %330 = vmatpush.msra.mxu0 0.0
    %331 = vmatpush.msra.mxu0 %v195
    %332 = vmatpush.msra.mxu0 %v194
    %333 = vmatmul.f32.gmra.mxu0 %v294
    %v334 = vpop.f32.mrf.mxu0
    %v335 = vadd.f32 0.0, %v334
    %336 = vmatmul.f32.gmra.mxu0 %v297
    %v337 = vpop.f32.mrf.mxu0
    %v338 = vadd.f32 0.0, %v337
    %339 = vmatmul.f32.gmra.mxu0 %v300
    %v340 = vpop.f32.mrf.mxu0
    %v341 = vadd.f32 0.0, %v340
    %342 = vmatmul.f32.gmra.mxu0 %v303
    %v343 = vpop.f32.mrf.mxu0
    %v344 = vadd.f32 0.0, %v343
    %345 = vmatmul.f32.gmra.mxu0 %v306
    %v346 = vpop.f32.mrf.mxu0
    %v347 = vadd.f32 0.0, %v346
    %348 = vmatmul.f32.gmra.mxu0 %v309
    %v349 = vpop.f32.mrf.mxu0
    %v350 = vadd.f32 0.0, %v349
    %351 = vmatmul.f32.gmra.mxu0 %v312
    %v352 = vpop.f32.mrf.mxu0
    %v353 = vadd.f32 0.0, %v352
    %354 = vmatmul.f32.gmra.mxu0 %v315
    %v355 = vpop.f32.mrf.mxu0
    %v356 = vadd.f32 0.0, %v355
    %357 = vdwg.mxu0
    %v358 = vstv %s196
    %v359 = vadd.f32 %v335, %v358
    %v360 = vadd.f32 %v338, %v358
    %v361 = vadd.f32 %v341, %v358
    %v362 = vadd.f32 %v344, %v358
    %v363 = vadd.f32 %v347, %v358
    %v364 = vadd.f32 %v350, %v358
    %v365 = vadd.f32 %v353, %v358
    %v366 = vadd.f32 %v356, %v358
    %v367 = vstv %s197
    %v368 = vadd.f32 %v335, %v367
    %v369 = vadd.f32 %v338, %v367
    %v370 = vadd.f32 %v341, %v367
    %v371 = vadd.f32 %v344, %v367
    %v372 = vadd.f32 %v347, %v367
    %v373 = vadd.f32 %v350, %v367
    %v374 = vadd.f32 %v353, %v367
    %v375 = vadd.f32 %v356, %v367
    %v376 = vmul.f32 %v368, 1.442695
    %v377 = vpow.pop %v376
    %v378 = vmul.f32 %v369, 1.442695
    %v379 = vpow.pop %v378
    %v380 = vmul.f32 %v370, 1.442695
    %v381 = vpow.pop %v380
    %v382 = vmul.f32 %v371, 1.442695
    %v383 = vpow.pop %v382
    %v384 = vmul.f32 %v372, 1.442695
    %v385 = vpow.pop %v384
    %v386 = vmul.f32 %v373, 1.442695
    %v387 = vpow.pop %v386
    %v388 = vmul.f32 %v374, 1.442695
    %v389 = vpow.pop %v388
    %v390 = vmul.f32 %v375, 1.442695
    %v391 = vpow.pop %v390
    %v392 = vrsqrt.pop %v377
    %v393 = vmul.f32 %v392, %v377
    %v394 = vmul.f32 %v393, %v392
    %v395 = vmul.f32 0.5, %v394
    %v396 = vsub.f32 1.5, %v395
    %v397 = vmul.f32 %v392, %v396
    %v398 = vmul.f32 %v377, %v397
    %vm399 = vcmp.eq.f32.partialorder %v377, inf
    %v400 = vsel %vm399, %v377, %v398
    %vm401 = vcmp.eq.f32.partialorder %v377, 0.0
    %v402 = vand.u32 %v377, 2147483648
    %v403 = vsel %vm401, %v402, %v400
    %v404 = vrsqrt.pop %v379
    %v405 = vmul.f32 %v404, %v379
    %v406 = vmul.f32 %v405, %v404
    %v407 = vmul.f32 0.5, %v406
    %v408 = vsub.f32 1.5, %v407
    %v409 = vmul.f32 %v404, %v408
    %v410 = vmul.f32 %v379, %v409
    %vm411 = vcmp.eq.f32.partialorder %v379, inf
    %v412 = vsel %vm411, %v379, %v410
    %vm413 = vcmp.eq.f32.partialorder %v379, 0.0
    %v414 = vand.u32 %v379, 2147483648
    %v415 = vsel %vm413, %v414, %v412
    %v416 = vrsqrt.pop %v381
    %v417 = vmul.f32 %v416, %v381
    %v418 = vmul.f32 %v417, %v416
    %v419 = vmul.f32 0.5, %v418
    %v420 = vsub.f32 1.5, %v419
    %v421 = vmul.f32 %v416, %v420
    %v422 = vmul.f32 %v381, %v421
    %vm423 = vcmp.eq.f32.partialorder %v381, inf
    %v424 = vsel %vm423, %v381, %v422
    %vm425 = vcmp.eq.f32.partialorder %v381, 0.0
    %v426 = vand.u32 %v381, 2147483648
    %v427 = vsel %vm425, %v426, %v424
    %v428 = vrsqrt.pop %v383
    %v429 = vmul.f32 %v428, %v383
    %v430 = vmul.f32 %v429, %v428
    %v431 = vmul.f32 0.5, %v430
    %v432 = vsub.f32 1.5, %v431
    %v433 = vmul.f32 %v428, %v432
    %v434 = vmul.f32 %v383, %v433
    %vm435 = vcmp.eq.f32.partialorder %v383, inf
    %v436 = vsel %vm435, %v383, %v434
    %vm437 = vcmp.eq.f32.partialorder %v383, 0.0
    %v438 = vand.u32 %v383, 2147483648
    %v439 = vsel %vm437, %v438, %v436
    %v440 = vrsqrt.pop %v385
    %v441 = vmul.f32 %v440, %v385
    %v442 = vmul.f32 %v441, %v440
    %v443 = vmul.f32 0.5, %v442
    %v444 = vsub.f32 1.5, %v443
    %v445 = vmul.f32 %v440, %v444
    %v446 = vmul.f32 %v385, %v445
    %vm447 = vcmp.eq.f32.partialorder %v385, inf
    %v448 = vsel %vm447, %v385, %v446
    %vm449 = vcmp.eq.f32.partialorder %v385, 0.0
    %v450 = vand.u32 %v385, 2147483648
    %v451 = vsel %vm449, %v450, %v448
    %v452 = vrsqrt.pop %v387
    %v453 = vmul.f32 %v452, %v387
    %v454 = vmul.f32 %v453, %v452
    %v455 = vmul.f32 0.5, %v454
    %v456 = vsub.f32 1.5, %v455
    %v457 = vmul.f32 %v452, %v456
    %v458 = vmul.f32 %v387, %v457
    %vm459 = vcmp.eq.f32.partialorder %v387, inf
    %v460 = vsel %vm459, %v387, %v458
    %vm461 = vcmp.eq.f32.partialorder %v387, 0.0
    %v462 = vand.u32 %v387, 2147483648
    %v463 = vsel %vm461, %v462, %v460
    %v464 = vrsqrt.pop %v389
    %v465 = vmul.f32 %v464, %v389
    %v466 = vmul.f32 %v465, %v464
    %v467 = vmul.f32 0.5, %v466
    %v468 = vsub.f32 1.5, %v467
    %v469 = vmul.f32 %v464, %v468
    %v470 = vmul.f32 %v389, %v469
    %vm471 = vcmp.eq.f32.partialorder %v389, inf
    %v472 = vsel %vm471, %v389, %v470
    %vm473 = vcmp.eq.f32.partialorder %v389, 0.0
    %v474 = vand.u32 %v389, 2147483648
    %v475 = vsel %vm473, %v474, %v472
    %v476 = vrsqrt.pop %v391
    %v477 = vmul.f32 %v476, %v391
    %v478 = vmul.f32 %v477, %v476
    %v479 = vmul.f32 0.5, %v478
    %v480 = vsub.f32 1.5, %v479
    %v481 = vmul.f32 %v476, %v480
    %v482 = vmul.f32 %v391, %v481
    %vm483 = vcmp.eq.f32.partialorder %v391, inf
    %v484 = vsel %vm483, %v391, %v482
    %vm485 = vcmp.eq.f32.partialorder %v391, 0.0
    %v486 = vand.u32 %v391, 2147483648
    %v487 = vsel %vm485, %v486, %v484
    %496 = vrot.lane.b32.xlu0 %v203, 1
    %v497 = vpop.permute.xlu0 %496
    %498 = vrot.lane.b32.xlu0 %v204, 1
    %v499 = vpop.permute.xlu0 %498
    %500 = vrot.lane.b32.xlu0 %v205, 1
    %v501 = vpop.permute.xlu0 %500
    %502 = vrot.lane.b32.xlu0 %v206, 1
    %v503 = vpop.permute.xlu0 %502
    %504 = vrot.lane.b32.xlu0 %v207, 1
    %v505 = vpop.permute.xlu0 %504
    %506 = vrot.lane.b32.xlu0 %v208, 1
    %v507 = vpop.permute.xlu0 %506
    %508 = vrot.lane.b32.xlu0 %v209, 1
    %v509 = vpop.permute.xlu0 %508
    %510 = vrot.lane.b32.xlu0 %v210, 1
    %v511 = vpop.permute.xlu0 %510
    %v520 = vmul.f32 %v403, %v497
    %v521 = vmul.f32 %v415, %v499
    %v522 = vmul.f32 %v427, %v501
    %v523 = vmul.f32 %v439, %v503
    %v524 = vmul.f32 %v451, %v505
    %v525 = vmul.f32 %v463, %v507
    %v526 = vmul.f32 %v475, %v509
    %v527 = vmul.f32 %v487, %v511
    %536 = vrot.lane.b32.xlu0 %v520, 127
    %v537 = vpop.permute.xlu0 %536
    %538 = vrot.lane.b32.xlu0 %v521, 127
    %v539 = vpop.permute.xlu0 %538
    %540 = vrot.lane.b32.xlu0 %v522, 127
    %v541 = vpop.permute.xlu0 %540
    %542 = vrot.lane.b32.xlu0 %v523, 127
    %v543 = vpop.permute.xlu0 %542
    %544 = vrot.lane.b32.xlu0 %v524, 127
    %v545 = vpop.permute.xlu0 %544
    %546 = vrot.lane.b32.xlu0 %v525, 127
    %v547 = vpop.permute.xlu0 %546
    %548 = vrot.lane.b32.xlu0 %v526, 127
    %v549 = vpop.permute.xlu0 %548
    %550 = vrot.lane.b32.xlu0 %v527, 127
    %v551 = vpop.permute.xlu0 %550
    %v560 = vadd.f32 %v359, %v537
    %v561 = vadd.f32 %v360, %v539
    %v562 = vadd.f32 %v361, %v541
    %v563 = vadd.f32 %v362, %v543
    %v564 = vadd.f32 %v363, %v545
    %v565 = vadd.f32 %v364, %v547
    %v566 = vadd.f32 %v365, %v549
    %v567 = vadd.f32 %v366, %v551
    %569 = vset.pattern.permute.xlu0 0
    %570 = vperm.xlu0 %569, %v560
    %v571 = vpop.permute.xlu0 %570
    %574 = vset.pattern.permute.xlu0 0
    %575 = vperm.xlu0 %574, %v561
    %v576 = vpop.permute.xlu0 %575
    %579 = vset.pattern.permute.xlu0 0
    %580 = vperm.xlu0 %579, %v562
    %v581 = vpop.permute.xlu0 %580
    %584 = vset.pattern.permute.xlu0 0
    %585 = vperm.xlu0 %584, %v563
    %v586 = vpop.permute.xlu0 %585
    %589 = vset.pattern.permute.xlu0 0
    %590 = vperm.xlu0 %589, %v564
    %v591 = vpop.permute.xlu0 %590
    %594 = vset.pattern.permute.xlu0 0
    %595 = vperm.xlu0 %594, %v565
    %v596 = vpop.permute.xlu0 %595
    %599 = vset.pattern.permute.xlu0 0
    %600 = vperm.xlu0 %599, %v566
    %v601 = vpop.permute.xlu0 %600
    %604 = vset.pattern.permute.xlu0 0
    %605 = vperm.xlu0 %604, %v567
    %v606 = vpop.permute.xlu0 %605
    %v609 = vperm.slane %v198, 0
    %v611 = vmul.f32 %v571, %v609
    %v612 = vmul.f32 %v576, %v609
    %v613 = vmul.f32 %v581, %v609
    %v614 = vmul.f32 %v586, %v609
    %v615 = vmul.f32 %v591, %v609
    %v616 = vmul.f32 %v596, %v609
    %v617 = vmul.f32 %v601, %v609
    %v618 = vmul.f32 %v606, %v609
    %v620 = vperm.slane %v199, 0
    %v622 = vadd.f32 %v611, %v620
    %v623 = vadd.f32 %v612, %v620
    %v624 = vadd.f32 %v613, %v620
    %v625 = vadd.f32 %v614, %v620
    %v626 = vadd.f32 %v615, %v620
    %v627 = vadd.f32 %v616, %v620
    %v628 = vadd.f32 %v617, %v620
    %v629 = vadd.f32 %v618, %v620
    %v630 = vmax.f32 %v622, 0.0
    %v631 = vmax.f32 %v623, 0.0
    %v632 = vmax.f32 %v624, 0.0
    %v633 = vmax.f32 %v625, 0.0
    %v634 = vmax.f32 %v626, 0.0
    %v635 = vmax.f32 %v627, 0.0
    %v636 = vmax.f32 %v628, 0.0
    %v637 = vmax.f32 %v629, 0.0
    %v638 = vstv %s202
    %v640 = vsel %vm292, %v630, 0
    %v643 = vsel %vm292, %v631, 0
    %v646 = vsel %vm292, %v632, 0
    %v649 = vsel %vm292, %v633, 0
    %v652 = vsel %vm292, %v634, 0
    %v655 = vsel %vm292, %v635, 0
    %v658 = vsel %vm292, %v636, 0
    %v661 = vsel %vm292, %v637, 0
    %663 = vmatpush.msra.mxu0 0.0
    %664 = vmatpush.msra.mxu0 0.0
    %665 = vmatpush.msra.mxu0 0.0
    %666 = vmatpush.msra.mxu0 0.0
    %667 = vmatpush.msra.mxu0 0.0
    %668 = vmatpush.msra.mxu0 0.0
    %669 = vmatpush.msra.mxu0 0.0
    %670 = vmatpush.msra.mxu0 0.0
    %671 = vmatpush.msra.mxu0 0.0
    %672 = vmatpush.msra.mxu0 0.0
    %673 = vmatpush.msra.mxu0 0.0
    %674 = vmatpush.msra.mxu0 0.0
    %675 = vmatpush.msra.mxu0 0.0
    %676 = vmatpush.msra.mxu0 0.0
    %677 = vmatpush.msra.mxu0 %v201
    %678 = vmatpush.msra.mxu0 %v200
    %679 = vmatmul.f32.gmra.mxu0 %v640
    %v680 = vpop.f32.mrf.mxu0
    %v681 = vadd.f32 %v638, %v680
    %682 = vmatmul.f32.gmra.mxu0 %v643
    %v683 = vpop.f32.mrf.mxu0
    %v684 = vadd.f32 %v638, %v683
    %685 = vmatmul.f32.gmra.mxu0 %v646
    %v686 = vpop.f32.mrf.mxu0
    %v687 = vadd.f32 %v638, %v686
    %688 = vmatmul.f32.gmra.mxu0 %v649
    %v689 = vpop.f32.mrf.mxu0
    %v690 = vadd.f32 %v638, %v689
    %691 = vmatmul.f32.gmra.mxu0 %v652
    %v692 = vpop.f32.mrf.mxu0
    %v693 = vadd.f32 %v638, %v692
    %694 = vmatmul.f32.gmra.mxu0 %v655
    %v695 = vpop.f32.mrf.mxu0
    %v696 = vadd.f32 %v638, %v695
    %697 = vmatmul.f32.gmra.mxu0 %v658
    %v698 = vpop.f32.mrf.mxu0
    %v699 = vadd.f32 %v638, %v698
    %700 = vmatmul.f32.gmra.mxu0 %v661
    %v701 = vpop.f32.mrf.mxu0
    %v702 = vadd.f32 %v638, %v701
    %703 = vdwg.mxu0
    %v704 = vld [vmem:[%s29] sm:$0xff]
    %v705 = vld [vmem:[%s29 + $0x8] sm:$0xff]
    %v706 = vld [vmem:[%s31] sm:$0x1]
    %v707 = vld [vmem:[%s33] sm:$0xff]
    %v708 = vld [vmem:[%s33 + $0x8] sm:$0xff]
    %v709 = vld [vmem:[%s33 + $0x10] sm:$0xff]
    %v710 = vld [vmem:[%s33 + $0x18] sm:$0xff]
    %v711 = vld [vmem:[%s33 + $0x20] sm:$0xff]
    %v712 = vld [vmem:[%s33 + $0x28] sm:$0xff]
    %v713 = vld [vmem:[%s33 + $0x30] sm:$0xff]
    %v714 = vld [vmem:[%s33 + $0x38] sm:$0xff]
    %s715 = sld [smem:[#allocation9]]
    %s716 = sld [smem:[#allocation9 + $0x1]]
    %v717 = vld [vmem:[%s37] sm:$0x1]
    %v718 = vld [vmem:[%s39] sm:$0x1]
    %v719 = vld [vmem:[%s41] sm:$0xff]
    %v720 = vld [vmem:[%s41 + $0x8] sm:$0xff]
    %v721 = vld [vmem:[%s41 + $0x10] sm:$0xff]
    %v722 = vld [vmem:[%s41 + $0x18] sm:$0xff]
    %v723 = vld [vmem:[%s41 + $0x20] sm:$0xff]
    %v724 = vld [vmem:[%s41 + $0x28] sm:$0xff]
    %v725 = vld [vmem:[%s41 + $0x30] sm:$0xff]
    %v726 = vld [vmem:[%s41 + $0x38] sm:$0xff]
    %s727 = sld [smem:[#allocation4]]
    %v728 = vld [vmem:[%s7] sm:$0xff]
    %v729 = vld [vmem:[%s7 + $0x8] sm:$0xff]
    %v730 = vld [vmem:[%s7 + $0x10] sm:$0xff]
    %v731 = vld [vmem:[%s7 + $0x18] sm:$0xff]
    %v732 = vld [vmem:[%s7 + $0x20] sm:$0xff]
    %v733 = vld [vmem:[%s7 + $0x28] sm:$0xff]
    %v734 = vld [vmem:[%s7 + $0x30] sm:$0xff]
    %v735 = vld [vmem:[%s7 + $0x38] sm:$0xff]
    %v737 = vperm.slane %v706, 0
    %v740 = vsel %vm292, %v184, 0
    %v743 = vsel %vm292, %v185, 0
    %v746 = vsel %vm292, %v186, 0
    %v749 = vsel %vm292, %v187, 0
    %v752 = vsel %vm292, %v188, 0
    %v755 = vsel %vm292, %v189, 0
    %v758 = vsel %vm292, %v190, 0
    %v761 = vsel %vm292, %v191, 0
    %763 = vmatpush.msra.mxu0 0.0
    %764 = vmatpush.msra.mxu0 0.0
    %765 = vmatpush.msra.mxu0 0.0
    %766 = vmatpush.msra.mxu0 0.0
    %767 = vmatpush.msra.mxu0 0.0
    %768 = vmatpush.msra.mxu0 0.0
    %769 = vmatpush.msra.mxu0 0.0
    %770 = vmatpush.msra.mxu0 0.0
    %771 = vmatpush.msra.mxu0 0.0
    %772 = vmatpush.msra.mxu0 0.0
    %773 = vmatpush.msra.mxu0 0.0
    %774 = vmatpush.msra.mxu0 0.0
    %775 = vmatpush.msra.mxu0 0.0
    %776 = vmatpush.msra.mxu0 0.0
    %777 = vmatpush.msra.mxu0 %v705
    %778 = vmatpush.msra.mxu0 %v704
    %779 = vmatmul.f32.gmra.mxu0 %v740
    %v780 = vpop.f32.mrf.mxu0
    %v781 = vadd.f32 %v737, %v780
    %782 = vmatmul.f32.gmra.mxu0 %v743
    %v783 = vpop.f32.mrf.mxu0
    %v784 = vadd.f32 %v737, %v783
    %785 = vmatmul.f32.gmra.mxu0 %v746
    %v786 = vpop.f32.mrf.mxu0
    %v787 = vadd.f32 %v737, %v786
    %788 = vmatmul.f32.gmra.mxu0 %v749
    %v789 = vpop.f32.mrf.mxu0
    %v790 = vadd.f32 %v737, %v789
    %791 = vmatmul.f32.gmra.mxu0 %v752
    %v792 = vpop.f32.mrf.mxu0
    %v793 = vadd.f32 %v737, %v792
    %794 = vmatmul.f32.gmra.mxu0 %v755
    %v795 = vpop.f32.mrf.mxu0
    %v796 = vadd.f32 %v737, %v795
    %797 = vmatmul.f32.gmra.mxu0 %v758
    %v798 = vpop.f32.mrf.mxu0
    %v799 = vadd.f32 %v737, %v798
    %800 = vmatmul.f32.gmra.mxu0 %v761
    %v801 = vpop.f32.mrf.mxu0
    %v802 = vadd.f32 %v737, %v801
    %803 = vdwg.mxu0
    %v804 = vmax.f32 %v781, 0.0
    %v805 = vmax.f32 %v784, 0.0
    %v806 = vmax.f32 %v787, 0.0
    %v807 = vmax.f32 %v790, 0.0
    %v808 = vmax.f32 %v793, 0.0
    %v809 = vmax.f32 %v796, 0.0
    %v810 = vmax.f32 %v799, 0.0
    %v811 = vmax.f32 %v802, 0.0
    %vm812 = vcmask 523264
    %v814 = vsel %vm812, %v804, 0
    %v817 = vsel %vm812, %v805, 0
    %v820 = vsel %vm812, %v806, 0
    %v823 = vsel %vm812, %v807, 0
    %v826 = vsel %vm812, %v808, 0
    %v829 = vsel %vm812, %v809, 0
    %v832 = vsel %vm812, %v810, 0
    %v835 = vsel %vm812, %v811, 0
    %837 = vmatpush.msra.mxu0 0.0
    %838 = vmatpush.msra.mxu0 0.0
    %839 = vmatpush.msra.mxu0 0.0
    %840 = vmatpush.msra.mxu0 0.0
    %841 = vmatpush.msra.mxu0 0.0
    %842 = vmatpush.msra.mxu0 0.0
    %843 = vmatpush.msra.mxu0 0.0
    %844 = vmatpush.msra.mxu0 0.0
    %845 = vmatpush.msra.mxu0 %v714
    %846 = vmatpush.msra.mxu0 %v713
    %847 = vmatpush.msra.mxu0 %v712
    %848 = vmatpush.msra.mxu0 %v711
    %849 = vmatpush.msra.mxu0 %v710
    %850 = vmatpush.msra.mxu0 %v709
    %851 = vmatpush.msra.mxu0 %v708
    %852 = vmatpush.msra.mxu0 %v707
    %853 = vmatmul.f32.gmra.mxu0 %v814
    %v854 = vpop.f32.mrf.mxu0
    %v855 = vadd.f32 0.0, %v854
    %856 = vmatmul.f32.gmra.mxu0 %v817
    %v857 = vpop.f32.mrf.mxu0
    %v858 = vadd.f32 0.0, %v857
    %859 = vmatmul.f32.gmra.mxu0 %v820
    %v860 = vpop.f32.mrf.mxu0
    %v861 = vadd.f32 0.0, %v860
    %862 = vmatmul.f32.gmra.mxu0 %v823
    %v863 = vpop.f32.mrf.mxu0
    %v864 = vadd.f32 0.0, %v863
    %865 = vmatmul.f32.gmra.mxu0 %v826
    %v866 = vpop.f32.mrf.mxu0
    %v867 = vadd.f32 0.0, %v866
    %868 = vmatmul.f32.gmra.mxu0 %v829
    %v869 = vpop.f32.mrf.mxu0
    %v870 = vadd.f32 0.0, %v869
    %871 = vmatmul.f32.gmra.mxu0 %v832
    %v872 = vpop.f32.mrf.mxu0
    %v873 = vadd.f32 0.0, %v872
    %874 = vmatmul.f32.gmra.mxu0 %v835
    %v875 = vpop.f32.mrf.mxu0
    %v876 = vadd.f32 0.0, %v875
    %877 = vdwg.mxu0
    %v878 = vstv %s715
    %v879 = vadd.f32 %v855, %v878
    %v880 = vadd.f32 %v858, %v878
    %v881 = vadd.f32 %v861, %v878
    %v882 = vadd.f32 %v864, %v878
    %v883 = vadd.f32 %v867, %v878
    %v884 = vadd.f32 %v870, %v878
    %v885 = vadd.f32 %v873, %v878
    %v886 = vadd.f32 %v876, %v878
    %v887 = vstv %s716
    %v888 = vadd.f32 %v855, %v887
    %v889 = vadd.f32 %v858, %v887
    %v890 = vadd.f32 %v861, %v887
    %v891 = vadd.f32 %v864, %v887
    %v892 = vadd.f32 %v867, %v887
    %v893 = vadd.f32 %v870, %v887
    %v894 = vadd.f32 %v873, %v887
    %v895 = vadd.f32 %v876, %v887
    %v896 = vmul.f32 %v888, 1.442695
    %v897 = vpow.pop %v896
    %v898 = vmul.f32 %v889, 1.442695
    %v899 = vpow.pop %v898
    %v900 = vmul.f32 %v890, 1.442695
    %v901 = vpow.pop %v900
    %v902 = vmul.f32 %v891, 1.442695
    %v903 = vpow.pop %v902
    %v904 = vmul.f32 %v892, 1.442695
    %v905 = vpow.pop %v904
    %v906 = vmul.f32 %v893, 1.442695
    %v907 = vpow.pop %v906
    %v908 = vmul.f32 %v894, 1.442695
    %v909 = vpow.pop %v908
    %v910 = vmul.f32 %v895, 1.442695
    %v911 = vpow.pop %v910
    %v912 = vrsqrt.pop %v897
    %v913 = vmul.f32 %v912, %v897
    %v914 = vmul.f32 %v913, %v912
    %v915 = vmul.f32 0.5, %v914
    %v916 = vsub.f32 1.5, %v915
    %v917 = vmul.f32 %v912, %v916
    %v918 = vmul.f32 %v897, %v917
    %vm919 = vcmp.eq.f32.partialorder %v897, inf
    %v920 = vsel %vm919, %v897, %v918
    %vm921 = vcmp.eq.f32.partialorder %v897, 0.0
    %v922 = vand.u32 %v897, 2147483648
    %v923 = vsel %vm921, %v922, %v920
    %v924 = vrsqrt.pop %v899
    %v925 = vmul.f32 %v924, %v899
    %v926 = vmul.f32 %v925, %v924
    %v927 = vmul.f32 0.5, %v926
    %v928 = vsub.f32 1.5, %v927
    %v929 = vmul.f32 %v924, %v928
    %v930 = vmul.f32 %v899, %v929
    %vm931 = vcmp.eq.f32.partialorder %v899, inf
    %v932 = vsel %vm931, %v899, %v930
    %vm933 = vcmp.eq.f32.partialorder %v899, 0.0
    %v934 = vand.u32 %v899, 2147483648
    %v935 = vsel %vm933, %v934, %v932
    %v936 = vrsqrt.pop %v901
    %v937 = vmul.f32 %v936, %v901
    %v938 = vmul.f32 %v937, %v936
    %v939 = vmul.f32 0.5, %v938
    %v940 = vsub.f32 1.5, %v939
    %v941 = vmul.f32 %v936, %v940
    %v942 = vmul.f32 %v901, %v941
    %vm943 = vcmp.eq.f32.partialorder %v901, inf
    %v944 = vsel %vm943, %v901, %v942
    %vm945 = vcmp.eq.f32.partialorder %v901, 0.0
    %v946 = vand.u32 %v901, 2147483648
    %v947 = vsel %vm945, %v946, %v944
    %v948 = vrsqrt.pop %v903
    %v949 = vmul.f32 %v948, %v903
    %v950 = vmul.f32 %v949, %v948
    %v951 = vmul.f32 0.5, %v950
    %v952 = vsub.f32 1.5, %v951
    %v953 = vmul.f32 %v948, %v952
    %v954 = vmul.f32 %v903, %v953
    %vm955 = vcmp.eq.f32.partialorder %v903, inf
    %v956 = vsel %vm955, %v903, %v954
    %vm957 = vcmp.eq.f32.partialorder %v903, 0.0
    %v958 = vand.u32 %v903, 2147483648
    %v959 = vsel %vm957, %v958, %v956
    %v960 = vrsqrt.pop %v905
    %v961 = vmul.f32 %v960, %v905
    %v962 = vmul.f32 %v961, %v960
    %v963 = vmul.f32 0.5, %v962
    %v964 = vsub.f32 1.5, %v963
    %v965 = vmul.f32 %v960, %v964
    %v966 = vmul.f32 %v905, %v965
    %vm967 = vcmp.eq.f32.partialorder %v905, inf
    %v968 = vsel %vm967, %v905, %v966
    %vm969 = vcmp.eq.f32.partialorder %v905, 0.0
    %v970 = vand.u32 %v905, 2147483648
    %v971 = vsel %vm969, %v970, %v968
    %v972 = vrsqrt.pop %v907
    %v973 = vmul.f32 %v972, %v907
    %v974 = vmul.f32 %v973, %v972
    %v975 = vmul.f32 0.5, %v974
    %v976 = vsub.f32 1.5, %v975
    %v977 = vmul.f32 %v972, %v976
    %v978 = vmul.f32 %v907, %v977
    %vm979 = vcmp.eq.f32.partialorder %v907, inf
    %v980 = vsel %vm979, %v907, %v978
    %vm981 = vcmp.eq.f32.partialorder %v907, 0.0
    %v982 = vand.u32 %v907, 2147483648
    %v983 = vsel %vm981, %v982, %v980
    %v984 = vrsqrt.pop %v909
    %v985 = vmul.f32 %v984, %v909
    %v986 = vmul.f32 %v985, %v984
    %v987 = vmul.f32 0.5, %v986
    %v988 = vsub.f32 1.5, %v987
    %v989 = vmul.f32 %v984, %v988
    %v990 = vmul.f32 %v909, %v989
    %vm991 = vcmp.eq.f32.partialorder %v909, inf
    %v992 = vsel %vm991, %v909, %v990
    %vm993 = vcmp.eq.f32.partialorder %v909, 0.0
    %v994 = vand.u32 %v909, 2147483648
    %v995 = vsel %vm993, %v994, %v992
    %v996 = vrsqrt.pop %v911
    %v997 = vmul.f32 %v996, %v911
    %v998 = vmul.f32 %v997, %v996
    %v999 = vmul.f32 0.5, %v998
    %v1000 = vsub.f32 1.5, %v999
    %v1001 = vmul.f32 %v996, %v1000
    %v1002 = vmul.f32 %v911, %v1001
    %vm1003 = vcmp.eq.f32.partialorder %v911, inf
    %v1004 = vsel %vm1003, %v911, %v1002
    %vm1005 = vcmp.eq.f32.partialorder %v911, 0.0
    %v1006 = vand.u32 %v911, 2147483648
    %v1007 = vsel %vm1005, %v1006, %v1004
    %1016 = vrot.lane.b32.xlu0 %v728, 1
    %v1017 = vpop.permute.xlu0 %1016
    %1018 = vrot.lane.b32.xlu0 %v729, 1
    %v1019 = vpop.permute.xlu0 %1018
    %1020 = vrot.lane.b32.xlu0 %v730, 1
    %v1021 = vpop.permute.xlu0 %1020
    %1022 = vrot.lane.b32.xlu0 %v731, 1
    %v1023 = vpop.permute.xlu0 %1022
    %1024 = vrot.lane.b32.xlu0 %v732, 1
    %v1025 = vpop.permute.xlu0 %1024
    %1026 = vrot.lane.b32.xlu0 %v733, 1
    %v1027 = vpop.permute.xlu0 %1026
    %1028 = vrot.lane.b32.xlu0 %v734, 1
    %v1029 = vpop.permute.xlu0 %1028
    %1030 = vrot.lane.b32.xlu0 %v735, 1
    %v1031 = vpop.permute.xlu0 %1030
    %v1040 = vmul.f32 %v923, %v1017
    %v1041 = vmul.f32 %v935, %v1019
    %v1042 = vmul.f32 %v947, %v1021
    %v1043 = vmul.f32 %v959, %v1023
    %v1044 = vmul.f32 %v971, %v1025
    %v1045 = vmul.f32 %v983, %v1027
    %v1046 = vmul.f32 %v995, %v1029
    %v1047 = vmul.f32 %v1007, %v1031
    %1056 = vrot.lane.b32.xlu0 %v1040, 127
    %v1057 = vpop.permute.xlu0 %1056
    %1058 = vrot.lane.b32.xlu0 %v1041, 127
    %v1059 = vpop.permute.xlu0 %1058
    %1060 = vrot.lane.b32.xlu0 %v1042, 127
    %v1061 = vpop.permute.xlu0 %1060
    %1062 = vrot.lane.b32.xlu0 %v1043, 127
    %v1063 = vpop.permute.xlu0 %1062
    %1064 = vrot.lane.b32.xlu0 %v1044, 127
    %v1065 = vpop.permute.xlu0 %1064
    %1066 = vrot.lane.b32.xlu0 %v1045, 127
    %v1067 = vpop.permute.xlu0 %1066
    %1068 = vrot.lane.b32.xlu0 %v1046, 127
    %v1069 = vpop.permute.xlu0 %1068
    %1070 = vrot.lane.b32.xlu0 %v1047, 127
    %v1071 = vpop.permute.xlu0 %1070
    %v1080 = vadd.f32 %v879, %v1057
    %v1081 = vadd.f32 %v880, %v1059
    %v1082 = vadd.f32 %v881, %v1061
    %v1083 = vadd.f32 %v882, %v1063
    %v1084 = vadd.f32 %v883, %v1065
    %v1085 = vadd.f32 %v884, %v1067
    %v1086 = vadd.f32 %v885, %v1069
    %v1087 = vadd.f32 %v886, %v1071
    %1089 = vset.pattern.permute.xlu0 0
    %1090 = vperm.xlu0 %1089, %v1080
    %v1091 = vpop.permute.xlu0 %1090
    %1094 = vset.pattern.permute.xlu0 0
    %1095 = vperm.xlu0 %1094, %v1081
    %v1096 = vpop.permute.xlu0 %1095
    %1099 = vset.pattern.permute.xlu0 0
    %1100 = vperm.xlu0 %1099, %v1082
    %v1101 = vpop.permute.xlu0 %1100
    %1104 = vset.pattern.permute.xlu0 0
    %1105 = vperm.xlu0 %1104, %v1083
    %v1106 = vpop.permute.xlu0 %1105
    %1109 = vset.pattern.permute.xlu0 0
    %1110 = vperm.xlu0 %1109, %v1084
    %v1111 = vpop.permute.xlu0 %1110
    %1114 = vset.pattern.permute.xlu0 0
    %1115 = vperm.xlu0 %1114, %v1085
    %v1116 = vpop.permute.xlu0 %1115
    %1119 = vset.pattern.permute.xlu0 0
    %1120 = vperm.xlu0 %1119, %v1086
    %v1121 = vpop.permute.xlu0 %1120
    %1124 = vset.pattern.permute.xlu0 0
    %1125 = vperm.xlu0 %1124, %v1087
    %v1126 = vpop.permute.xlu0 %1125
    %v1129 = vperm.slane %v717, 0
    %v1131 = vmul.f32 %v1091, %v1129
    %v1132 = vmul.f32 %v1096, %v1129
    %v1133 = vmul.f32 %v1101, %v1129
    %v1134 = vmul.f32 %v1106, %v1129
    %v1135 = vmul.f32 %v1111, %v1129
    %v1136 = vmul.f32 %v1116, %v1129
    %v1137 = vmul.f32 %v1121, %v1129
    %v1138 = vmul.f32 %v1126, %v1129
    %v1140 = vperm.slane %v718, 0
    %v1142 = vadd.f32 %v1131, %v1140
    %v1143 = vadd.f32 %v1132, %v1140
    %v1144 = vadd.f32 %v1133, %v1140
    %v1145 = vadd.f32 %v1134, %v1140
    %v1146 = vadd.f32 %v1135, %v1140
    %v1147 = vadd.f32 %v1136, %v1140
    %v1148 = vadd.f32 %v1137, %v1140
    %v1149 = vadd.f32 %v1138, %v1140
    %v1150 = vmax.f32 %v1142, 0.0
    %v1151 = vmax.f32 %v1143, 0.0
    %v1152 = vmax.f32 %v1144, 0.0
    %v1153 = vmax.f32 %v1145, 0.0
    %v1154 = vmax.f32 %v1146, 0.0
    %v1155 = vmax.f32 %v1147, 0.0
    %v1156 = vmax.f32 %v1148, 0.0
    %v1157 = vmax.f32 %v1149, 0.0
    %v1158 = vstv %s727
    %v1160 = vsel %vm812, %v1150, 0
    %v1163 = vsel %vm812, %v1151, 0
    %v1166 = vsel %vm812, %v1152, 0
    %v1169 = vsel %vm812, %v1153, 0
    %v1172 = vsel %vm812, %v1154, 0
    %v1175 = vsel %vm812, %v1155, 0
    %v1178 = vsel %vm812, %v1156, 0
    %v1181 = vsel %vm812, %v1157, 0
    %1183 = vmatpush.msra.mxu0 0.0
    %1184 = vmatpush.msra.mxu0 0.0
    %1185 = vmatpush.msra.mxu0 0.0
    %1186 = vmatpush.msra.mxu0 0.0
    %1187 = vmatpush.msra.mxu0 0.0
    %1188 = vmatpush.msra.mxu0 0.0
    %1189 = vmatpush.msra.mxu0 0.0
    %1190 = vmatpush.msra.mxu0 0.0
    %1191 = vmatpush.msra.mxu0 %v726
    %1192 = vmatpush.msra.mxu0 %v725
    %1193 = vmatpush.msra.mxu0 %v724
    %1194 = vmatpush.msra.mxu0 %v723
    %1195 = vmatpush.msra.mxu0 %v722
    %1196 = vmatpush.msra.mxu0 %v721
    %1197 = vmatpush.msra.mxu0 %v720
    %1198 = vmatpush.msra.mxu0 %v719
    %1199 = vmatmul.f32.gmra.mxu0 %v1160
    %v1200 = vpop.f32.mrf.mxu0
    %v1201 = vadd.f32 %v1158, %v1200
    %1202 = vmatmul.f32.gmra.mxu0 %v1163
    %v1203 = vpop.f32.mrf.mxu0
    %v1204 = vadd.f32 %v1158, %v1203
    %1205 = vmatmul.f32.gmra.mxu0 %v1166
    %v1206 = vpop.f32.mrf.mxu0
    %v1207 = vadd.f32 %v1158, %v1206
    %1208 = vmatmul.f32.gmra.mxu0 %v1169
    %v1209 = vpop.f32.mrf.mxu0
    %v1210 = vadd.f32 %v1158, %v1209
    %1211 = vmatmul.f32.gmra.mxu0 %v1172
    %v1212 = vpop.f32.mrf.mxu0
    %v1213 = vadd.f32 %v1158, %v1212
    %1214 = vmatmul.f32.gmra.mxu0 %v1175
    %v1215 = vpop.f32.mrf.mxu0
    %v1216 = vadd.f32 %v1158, %v1215
    %1217 = vmatmul.f32.gmra.mxu0 %v1178
    %v1218 = vpop.f32.mrf.mxu0
    %v1219 = vadd.f32 %v1158, %v1218
    %1220 = vmatmul.f32.gmra.mxu0 %v1181
    %v1221 = vpop.f32.mrf.mxu0
    %v1222 = vadd.f32 %v1158, %v1221
    %1223 = vdwg.mxu0
    %v1224 = vld [vmem:[%s45] sm:$0xff]
    %v1225 = vld [vmem:[%s47] sm:$0x3]
    %v1227 = vperm.slane %v1225, 0
    %v1228 = vperm.slane %v1225, 1
    %1232 = vst [vmem:[#allocation1] ss:$2 sm:$0xff] %v1224
    %v1233 = vld.sshfl [vmem:[#allocation1] sm:$0xff pattern:$0x75316420]
    %v1234 = vld.sshfl [vmem:[#allocation1 + $0x8] sm:$0xff pattern:$0x75316420]
    %v1235 = vsel %vm239, %v1233, 0
    %v1237 = vsel %vm239, %v1234, 0
    %1239 = vmatpush.msra.mxu0 0.0
    %1240 = vmatpush.msra.mxu0 0.0
    %1241 = vmatpush.msra.mxu0 0.0
    %1242 = vmatpush.msra.mxu0 0.0
    %1243 = vmatpush.msra.mxu0 0.0
    %1244 = vmatpush.msra.mxu0 0.0
    %1245 = vmatpush.msra.mxu0 0.0
    %1246 = vmatpush.msra.mxu0 0.0
    %1247 = vmatpush.msra.mxu0 0.0
    %1248 = vmatpush.msra.mxu0 0.0
    %1249 = vmatpush.msra.mxu0 0.0
    %1250 = vmatpush.msra.mxu0 0.0
    %1251 = vmatpush.msra.mxu0 0.0
    %1252 = vmatpush.msra.mxu0 0.0
    %1253 = vmatpush.msra.mxu0 0.0
    %1254 = vmatpush.msra.mxu0 %v1235
    %1255 = vmatmul.f32.gmra.mxu0 %v216
    %v1256 = vpop.f32.mrf.mxu0
    %v1257 = vadd.f32 %v1227, %v1256
    %1258 = vmatmul.f32.gmra.mxu0 %v219
    %v1259 = vpop.f32.mrf.mxu0
    %v1260 = vadd.f32 %v1227, %v1259
    %1261 = vmatmul.f32.gmra.mxu0 %v222
    %v1262 = vpop.f32.mrf.mxu0
    %v1263 = vadd.f32 %v1227, %v1262
    %1264 = vmatmul.f32.gmra.mxu0 %v225
    %v1265 = vpop.f32.mrf.mxu0
    %v1266 = vadd.f32 %v1227, %v1265
    %1267 = vmatmul.f32.gmra.mxu0 %v228
    %v1268 = vpop.f32.mrf.mxu0
    %v1269 = vadd.f32 %v1227, %v1268
    %1270 = vmatmul.f32.gmra.mxu0 %v231
    %v1271 = vpop.f32.mrf.mxu0
    %v1272 = vadd.f32 %v1227, %v1271
    %1273 = vmatmul.f32.gmra.mxu0 %v234
    %v1274 = vpop.f32.mrf.mxu0
    %v1275 = vadd.f32 %v1227, %v1274
    %1276 = vmatmul.f32.gmra.mxu0 %v237
    %v1277 = vpop.f32.mrf.mxu0
    %v1278 = vadd.f32 %v1227, %v1277
    %1279 = vdwg.mxu0
    %1280 = vmatpush.msra.mxu0 0.0
    %1281 = vmatpush.msra.mxu0 0.0
    %1282 = vmatpush.msra.mxu0 0.0
    %1283 = vmatpush.msra.mxu0 0.0
    %1284 = vmatpush.msra.mxu0 0.0
    %1285 = vmatpush.msra.mxu0 0.0
    %1286 = vmatpush.msra.mxu0 0.0
    %1287 = vmatpush.msra.mxu0 0.0
    %1288 = vmatpush.msra.mxu0 0.0
    %1289 = vmatpush.msra.mxu0 0.0
    %1290 = vmatpush.msra.mxu0 0.0
    %1291 = vmatpush.msra.mxu0 0.0
    %1292 = vmatpush.msra.mxu0 0.0
    %1293 = vmatpush.msra.mxu0 0.0
    %1294 = vmatpush.msra.mxu0 0.0
    %1295 = vmatpush.msra.mxu0 %v1237
    %1296 = vmatmul.f32.gmra.mxu0 %v216
    %v1297 = vpop.f32.mrf.mxu0
    %v1298 = vadd.f32 %v1228, %v1297
    %1299 = vmatmul.f32.gmra.mxu0 %v219
    %v1300 = vpop.f32.mrf.mxu0
    %v1301 = vadd.f32 %v1228, %v1300
    %1302 = vmatmul.f32.gmra.mxu0 %v222
    %v1303 = vpop.f32.mrf.mxu0
    %v1304 = vadd.f32 %v1228, %v1303
    %1305 = vmatmul.f32.gmra.mxu0 %v225
    %v1306 = vpop.f32.mrf.mxu0
    %v1307 = vadd.f32 %v1228, %v1306
    %1308 = vmatmul.f32.gmra.mxu0 %v228
    %v1309 = vpop.f32.mrf.mxu0
    %v1310 = vadd.f32 %v1228, %v1309
    %1311 = vmatmul.f32.gmra.mxu0 %v231
    %v1312 = vpop.f32.mrf.mxu0
    %v1313 = vadd.f32 %v1228, %v1312
    %1314 = vmatmul.f32.gmra.mxu0 %v234
    %v1315 = vpop.f32.mrf.mxu0
    %v1316 = vadd.f32 %v1228, %v1315
    %1317 = vmatmul.f32.gmra.mxu0 %v237
    %v1318 = vpop.f32.mrf.mxu0
    %v1319 = vadd.f32 %v1228, %v1318
    %1320 = vdwg.mxu0
    %v1321 = vmax.f32 %v1257, 0.0
    %v1322 = vmax.f32 %v1298, 0.0
    %v1323 = vmax.f32 %v1260, 0.0
    %v1324 = vmax.f32 %v1301, 0.0
    %v1325 = vmax.f32 %v1263, 0.0
    %v1326 = vmax.f32 %v1304, 0.0
    %v1327 = vmax.f32 %v1266, 0.0
    %v1328 = vmax.f32 %v1307, 0.0
    %v1329 = vmax.f32 %v1269, 0.0
    %v1330 = vmax.f32 %v1310, 0.0
    %v1331 = vmax.f32 %v1272, 0.0
    %v1332 = vmax.f32 %v1313, 0.0
    %v1333 = vmax.f32 %v1275, 0.0
    %v1334 = vmax.f32 %v1316, 0.0
    %v1335 = vmax.f32 %v1278, 0.0
    %v1336 = vmax.f32 %v1319, 0.0
    %v1337 = vld [vmem:[#allocation11] sm:$0xff]
    %v1338 = vld [vmem:[#allocation11 + $0x8] sm:$0xff]
    %v1339 = vld [vmem:[#allocation11 + $0x10] sm:$0xff]
    %v1340 = vld [vmem:[#allocation11 + $0x18] sm:$0xff]
    %v1341 = vld [vmem:[#allocation11 + $0x20] sm:$0xff]
    %v1342 = vld [vmem:[#allocation11 + $0x28] sm:$0xff]
    %v1343 = vld [vmem:[#allocation11 + $0x30] sm:$0xff]
    %v1344 = vld [vmem:[#allocation11 + $0x38] sm:$0xff]
    %v1345 = vld [vmem:[#allocation11 + $0x40] sm:$0xff]
    %v1346 = vld [vmem:[#allocation11 + $0x48] sm:$0xff]
    %v1347 = vld [vmem:[#allocation11 + $0x50] sm:$0xff]
    %v1348 = vld [vmem:[#allocation11 + $0x58] sm:$0xff]
    %v1349 = vld [vmem:[#allocation11 + $0x60] sm:$0xff]
    %v1350 = vld [vmem:[#allocation11 + $0x68] sm:$0xff]
    %v1351 = vld [vmem:[#allocation11 + $0x70] sm:$0xff]
    %v1352 = vld [vmem:[#allocation11 + $0x78] sm:$0xff]
    %v1353 = vld [vmem:[#allocation11 + $0x80] sm:$0xff]
    %v1354 = vld [vmem:[#allocation11 + $0x88] sm:$0xff]
    %v1355 = vld [vmem:[#allocation11 + $0x90] sm:$0xff]
    %v1356 = vld [vmem:[#allocation11 + $0x98] sm:$0xff]
    %v1357 = vld [vmem:[#allocation11 + $0xa0] sm:$0xff]
    %v1358 = vld [vmem:[#allocation11 + $0xa8] sm:$0xff]
    %v1359 = vld [vmem:[#allocation11 + $0xb0] sm:$0xff]
    %v1360 = vld [vmem:[#allocation11 + $0xb8] sm:$0xff]
    %v1361 = vld [vmem:[#allocation11 + $0xc0] sm:$0xff]
    %v1362 = vld [vmem:[#allocation11 + $0xc8] sm:$0xff]
    %v1363 = vld [vmem:[#allocation11 + $0xd0] sm:$0xff]
    %v1364 = vld [vmem:[#allocation11 + $0xd8] sm:$0xff]
    %v1365 = vld [vmem:[#allocation11 + $0xe0] sm:$0xff]
    %v1366 = vld [vmem:[#allocation11 + $0xe8] sm:$0xff]
    %v1367 = vld [vmem:[#allocation11 + $0xf0] sm:$0xff]
    %v1368 = vld [vmem:[#allocation11 + $0xf8] sm:$0xff]
    %v1369 = vld [vmem:[#allocation11 + $0x100] sm:$0xff]
    %v1370 = vld [vmem:[#allocation11 + $0x108] sm:$0xff]
    %v1371 = vld [vmem:[#allocation11 + $0x110] sm:$0xff]
    %v1372 = vld [vmem:[#allocation11 + $0x118] sm:$0xff]
    %v1373 = vld [vmem:[#allocation11 + $0x120] sm:$0xff]
    %v1374 = vld [vmem:[#allocation11 + $0x128] sm:$0xff]
    %v1375 = vld [vmem:[#allocation11 + $0x130] sm:$0xff]
    %v1376 = vld [vmem:[#allocation11 + $0x138] sm:$0xff]
    %v1377 = vld [vmem:[#allocation11 + $0x140] sm:$0xff]
    %v1378 = vld [vmem:[#allocation11 + $0x148] sm:$0xff]
    %v1379 = vld [vmem:[#allocation11 + $0x150] sm:$0xff]
    %v1380 = vld [vmem:[#allocation11 + $0x158] sm:$0xff]
    %v1381 = vld [vmem:[#allocation11 + $0x160] sm:$0xff]
    %v1382 = vld [vmem:[#allocation11 + $0x168] sm:$0xff]
    %v1383 = vld [vmem:[#allocation11 + $0x170] sm:$0xff]
    %v1384 = vld [vmem:[#allocation11 + $0x178] sm:$0xff]
    %v1385 = vld [vmem:[%s51] sm:$0x3]
    %v1387 = vperm.slane %v1385, 0
    %v1388 = vperm.slane %v1385, 1
    %v1392 = vsel %vm812, %v1322, 0
    %v1395 = vsel %vm812, %v1324, 0
    %v1398 = vsel %vm812, %v1326, 0
    %v1401 = vsel %vm812, %v1328, 0
    %v1404 = vsel %vm812, %v1330, 0
    %v1407 = vsel %vm812, %v1332, 0
    %v1410 = vsel %vm812, %v1334, 0
    %v1413 = vsel %vm812, %v1336, 0
    %1415 = vmatpush.msra.mxu0 %v1367
    %1416 = vmatpush.msra.mxu0 %v1365
    %1417 = vmatpush.msra.mxu0 %v1363
    %1418 = vmatpush.msra.mxu0 %v1361
    %1419 = vmatpush.msra.mxu0 %v1359
    %1420 = vmatpush.msra.mxu0 %v1357
    %1421 = vmatpush.msra.mxu0 %v1355
    %1422 = vmatpush.msra.mxu0 %v1353
    %1423 = vmatpush.msra.mxu0 %v1351
    %1424 = vmatpush.msra.mxu0 %v1349
    %1425 = vmatpush.msra.mxu0 %v1347
    %1426 = vmatpush.msra.mxu0 %v1345
    %1427 = vmatpush.msra.mxu0 %v1343
    %1428 = vmatpush.msra.mxu0 %v1341
    %1429 = vmatpush.msra.mxu0 %v1339
    %1430 = vmatpush.msra.mxu0 %v1337
    %1431 = vmatmul.f32.gmra.mxu0 %v1321
    %v1432 = vpop.f32.mrf.mxu0
    %v1433 = vadd.f32 %v1387, %v1432
    %1434 = vmatmul.f32.gmra.mxu0 %v1323
    %v1435 = vpop.f32.mrf.mxu0
    %v1436 = vadd.f32 %v1387, %v1435
    %1437 = vmatmul.f32.gmra.mxu0 %v1325
    %v1438 = vpop.f32.mrf.mxu0
    %v1439 = vadd.f32 %v1387, %v1438
    %1440 = vmatmul.f32.gmra.mxu0 %v1327
    %v1441 = vpop.f32.mrf.mxu0
    %v1442 = vadd.f32 %v1387, %v1441
    %1443 = vmatmul.f32.gmra.mxu0 %v1329
    %v1444 = vpop.f32.mrf.mxu0
    %v1445 = vadd.f32 %v1387, %v1444
    %1446 = vmatmul.f32.gmra.mxu0 %v1331
    %v1447 = vpop.f32.mrf.mxu0
    %v1448 = vadd.f32 %v1387, %v1447
    %1449 = vmatmul.f32.gmra.mxu0 %v1333
    %v1450 = vpop.f32.mrf.mxu0
    %v1451 = vadd.f32 %v1387, %v1450
    %1452 = vmatmul.f32.gmra.mxu0 %v1335
    %v1453 = vpop.f32.mrf.mxu0
    %v1454 = vadd.f32 %v1387, %v1453
    %1455 = vdwg.mxu0
    %1456 = vmatpush.msra.mxu0 0.0
    %1457 = vmatpush.msra.mxu0 0.0
    %1458 = vmatpush.msra.mxu0 0.0
    %1459 = vmatpush.msra.mxu0 0.0
    %1460 = vmatpush.msra.mxu0 0.0
    %1461 = vmatpush.msra.mxu0 0.0
    %1462 = vmatpush.msra.mxu0 0.0
    %1463 = vmatpush.msra.mxu0 0.0
    %1464 = vmatpush.msra.mxu0 %v1383
    %1465 = vmatpush.msra.mxu0 %v1381
    %1466 = vmatpush.msra.mxu0 %v1379
    %1467 = vmatpush.msra.mxu0 %v1377
    %1468 = vmatpush.msra.mxu0 %v1375
    %1469 = vmatpush.msra.mxu0 %v1373
    %1470 = vmatpush.msra.mxu0 %v1371
    %1471 = vmatpush.msra.mxu0 %v1369
    %1472 = vmatmul.f32.gmra.mxu0 %v1392
    %v1473 = vpop.f32.mrf.mxu0
    %v1474 = vadd.f32 %v1433, %v1473
    %1475 = vmatmul.f32.gmra.mxu0 %v1395
    %v1476 = vpop.f32.mrf.mxu0
    %v1477 = vadd.f32 %v1436, %v1476
    %1478 = vmatmul.f32.gmra.mxu0 %v1398
    %v1479 = vpop.f32.mrf.mxu0
    %v1480 = vadd.f32 %v1439, %v1479
    %1481 = vmatmul.f32.gmra.mxu0 %v1401
    %v1482 = vpop.f32.mrf.mxu0
    %v1483 = vadd.f32 %v1442, %v1482
    %1484 = vmatmul.f32.gmra.mxu0 %v1404
    %v1485 = vpop.f32.mrf.mxu0
    %v1486 = vadd.f32 %v1445, %v1485
    %1487 = vmatmul.f32.gmra.mxu0 %v1407
    %v1488 = vpop.f32.mrf.mxu0
    %v1489 = vadd.f32 %v1448, %v1488
    %1490 = vmatmul.f32.gmra.mxu0 %v1410
    %v1491 = vpop.f32.mrf.mxu0
    %v1492 = vadd.f32 %v1451, %v1491
    %1493 = vmatmul.f32.gmra.mxu0 %v1413
    %v1494 = vpop.f32.mrf.mxu0
    %v1495 = vadd.f32 %v1454, %v1494
    %1496 = vdwg.mxu0
    %1497 = vmatpush.msra.mxu0 %v1368
    %1498 = vmatpush.msra.mxu0 %v1366
    %1499 = vmatpush.msra.mxu0 %v1364
    %1500 = vmatpush.msra.mxu0 %v1362
    %1501 = vmatpush.msra.mxu0 %v1360
    %1502 = vmatpush.msra.mxu0 %v1358
    %1503 = vmatpush.msra.mxu0 %v1356
    %1504 = vmatpush.msra.mxu0 %v1354
    %1505 = vmatpush.msra.mxu0 %v1352
    %1506 = vmatpush.msra.mxu0 %v1350
    %1507 = vmatpush.msra.mxu0 %v1348
    %1508 = vmatpush.msra.mxu0 %v1346
    %1509 = vmatpush.msra.mxu0 %v1344
    %1510 = vmatpush.msra.mxu0 %v1342
    %1511 = vmatpush.msra.mxu0 %v1340
    %1512 = vmatpush.msra.mxu0 %v1338
    %1513 = vmatmul.f32.gmra.mxu0 %v1321
    %v1514 = vpop.f32.mrf.mxu0
    %v1515 = vadd.f32 %v1388, %v1514
    %1516 = vmatmul.f32.gmra.mxu0 %v1323
    %v1517 = vpop.f32.mrf.mxu0
    %v1518 = vadd.f32 %v1388, %v1517
    %1519 = vmatmul.f32.gmra.mxu0 %v1325
    %v1520 = vpop.f32.mrf.mxu0
    %v1521 = vadd.f32 %v1388, %v1520
    %1522 = vmatmul.f32.gmra.mxu0 %v1327
    %v1523 = vpop.f32.mrf.mxu0
    %v1524 = vadd.f32 %v1388, %v1523
    %1525 = vmatmul.f32.gmra.mxu0 %v1329
    %v1526 = vpop.f32.mrf.mxu0
    %v1527 = vadd.f32 %v1388, %v1526
    %1528 = vmatmul.f32.gmra.mxu0 %v1331
    %v1529 = vpop.f32.mrf.mxu0
    %v1530 = vadd.f32 %v1388, %v1529
    %1531 = vmatmul.f32.gmra.mxu0 %v1333
    %v1532 = vpop.f32.mrf.mxu0
    %v1533 = vadd.f32 %v1388, %v1532
    %1534 = vmatmul.f32.gmra.mxu0 %v1335
    %v1535 = vpop.f32.mrf.mxu0
    %v1536 = vadd.f32 %v1388, %v1535
    %1537 = vdwg.mxu0
    %1538 = vmatpush.msra.mxu0 0.0
    %1539 = vmatpush.msra.mxu0 0.0
    %1540 = vmatpush.msra.mxu0 0.0
    %1541 = vmatpush.msra.mxu0 0.0
    %1542 = vmatpush.msra.mxu0 0.0
    %1543 = vmatpush.msra.mxu0 0.0
    %1544 = vmatpush.msra.mxu0 0.0
    %1545 = vmatpush.msra.mxu0 0.0
    %1546 = vmatpush.msra.mxu0 %v1384
    %1547 = vmatpush.msra.mxu0 %v1382
    %1548 = vmatpush.msra.mxu0 %v1380
    %1549 = vmatpush.msra.mxu0 %v1378
    %1550 = vmatpush.msra.mxu0 %v1376
    %1551 = vmatpush.msra.mxu0 %v1374
    %1552 = vmatpush.msra.mxu0 %v1372
    %1553 = vmatpush.msra.mxu0 %v1370
    %1554 = vmatmul.f32.gmra.mxu0 %v1392
    %v1555 = vpop.f32.mrf.mxu0
    %v1556 = vadd.f32 %v1515, %v1555
    %1557 = vmatmul.f32.gmra.mxu0 %v1395
    %v1558 = vpop.f32.mrf.mxu0
    %v1559 = vadd.f32 %v1518, %v1558
    %1560 = vmatmul.f32.gmra.mxu0 %v1398
    %v1561 = vpop.f32.mrf.mxu0
    %v1562 = vadd.f32 %v1521, %v1561
    %1563 = vmatmul.f32.gmra.mxu0 %v1401
    %v1564 = vpop.f32.mrf.mxu0
    %v1565 = vadd.f32 %v1524, %v1564
    %1566 = vmatmul.f32.gmra.mxu0 %v1404
    %v1567 = vpop.f32.mrf.mxu0
    %v1568 = vadd.f32 %v1527, %v1567
    %1569 = vmatmul.f32.gmra.mxu0 %v1407
    %v1570 = vpop.f32.mrf.mxu0
    %v1571 = vadd.f32 %v1530, %v1570
    %1572 = vmatmul.f32.gmra.mxu0 %v1410
    %v1573 = vpop.f32.mrf.mxu0
    %v1574 = vadd.f32 %v1533, %v1573
    %1575 = vmatmul.f32.gmra.mxu0 %v1413
    %v1576 = vpop.f32.mrf.mxu0
    %v1577 = vadd.f32 %v1536, %v1576
    %1578 = vdwg.mxu0
    %v1579 = vmax.f32 %v1474, 0.0
    %v1580 = vmax.f32 %v1556, 0.0
    %v1581 = vmax.f32 %v1477, 0.0
    %v1582 = vmax.f32 %v1559, 0.0
    %v1583 = vmax.f32 %v1480, 0.0
    %v1584 = vmax.f32 %v1562, 0.0
    %v1585 = vmax.f32 %v1483, 0.0
    %v1586 = vmax.f32 %v1565, 0.0
    %v1587 = vmax.f32 %v1486, 0.0
    %v1588 = vmax.f32 %v1568, 0.0
    %v1589 = vmax.f32 %v1489, 0.0
    %v1590 = vmax.f32 %v1571, 0.0
    %v1591 = vmax.f32 %v1492, 0.0
    %v1592 = vmax.f32 %v1574, 0.0
    %v1593 = vmax.f32 %v1495, 0.0
    %v1594 = vmax.f32 %v1577, 0.0
    %v1595 = vld [vmem:[%s53] sm:$0xff]
    %v1596 = vld [vmem:[%s53 + $0x8] sm:$0xff]
    %v1597 = vld [vmem:[%s53 + $0x10] sm:$0xff]
    %v1598 = vld [vmem:[%s53 + $0x18] sm:$0xff]
    %v1599 = vld [vmem:[%s53 + $0x20] sm:$0xff]
    %v1600 = vld [vmem:[%s53 + $0x28] sm:$0xff]
    %v1601 = vld [vmem:[%s53 + $0x30] sm:$0xff]
    %v1602 = vld [vmem:[%s53 + $0x38] sm:$0xff]
    %v1603 = vld [vmem:[%s53 + $0x40] sm:$0xff]
    %v1604 = vld [vmem:[%s53 + $0x48] sm:$0xff]
    %v1605 = vld [vmem:[%s53 + $0x50] sm:$0xff]
    %v1606 = vld [vmem:[%s53 + $0x58] sm:$0xff]
    %v1607 = vld [vmem:[%s53 + $0x60] sm:$0xff]
    %v1608 = vld [vmem:[%s53 + $0x68] sm:$0xff]
    %v1609 = vld [vmem:[%s53 + $0x70] sm:$0xff]
    %v1610 = vld [vmem:[%s53 + $0x78] sm:$0xff]
    %v1611 = vld [vmem:[%s53 + $0x80] sm:$0xff]
    %v1612 = vld [vmem:[%s53 + $0x88] sm:$0xff]
    %v1613 = vld [vmem:[%s53 + $0x90] sm:$0xff]
    %v1614 = vld [vmem:[%s53 + $0x98] sm:$0xff]
    %v1615 = vld [vmem:[%s53 + $0xa0] sm:$0xff]
    %v1616 = vld [vmem:[%s53 + $0xa8] sm:$0xff]
    %v1617 = vld [vmem:[%s53 + $0xb0] sm:$0xff]
    %v1618 = vld [vmem:[%s53 + $0xb8] sm:$0xff]
    %v1619 = vld [vmem:[%s55] sm:$0x1]
    %v1621 = vperm.slane %v1619, 0
    %v1624 = vsel %vm812, %v1580, 0
    %v1627 = vsel %vm812, %v1582, 0
    %v1630 = vsel %vm812, %v1584, 0
    %v1633 = vsel %vm812, %v1586, 0
    %v1636 = vsel %vm812, %v1588, 0
    %v1639 = vsel %vm812, %v1590, 0
    %v1642 = vsel %vm812, %v1592, 0
    %v1645 = vsel %vm812, %v1594, 0
    %1647 = vmatpush.msra.mxu0 %v1610
    %1648 = vmatpush.msra.mxu0 %v1609
    %1649 = vmatpush.msra.mxu0 %v1608
    %1650 = vmatpush.msra.mxu0 %v1607
    %1651 = vmatpush.msra.mxu0 %v1606
    %1652 = vmatpush.msra.mxu0 %v1605
    %1653 = vmatpush.msra.mxu0 %v1604
    %1654 = vmatpush.msra.mxu0 %v1603
    %1655 = vmatpush.msra.mxu0 %v1602
    %1656 = vmatpush.msra.mxu0 %v1601
    %1657 = vmatpush.msra.mxu0 %v1600
    %1658 = vmatpush.msra.mxu0 %v1599
    %1659 = vmatpush.msra.mxu0 %v1598
    %1660 = vmatpush.msra.mxu0 %v1597
    %1661 = vmatpush.msra.mxu0 %v1596
    %1662 = vmatpush.msra.mxu0 %v1595
    %1663 = vmatmul.f32.gmra.mxu0 %v1579
    %v1664 = vpop.f32.mrf.mxu0
    %v1665 = vadd.f32 %v1621, %v1664
    %1666 = vmatmul.f32.gmra.mxu0 %v1581
    %v1667 = vpop.f32.mrf.mxu0
    %v1668 = vadd.f32 %v1621, %v1667
    %1669 = vmatmul.f32.gmra.mxu0 %v1583
    %v1670 = vpop.f32.mrf.mxu0
    %v1671 = vadd.f32 %v1621, %v1670
    %1672 = vmatmul.f32.gmra.mxu0 %v1585
    %v1673 = vpop.f32.mrf.mxu0
    %v1674 = vadd.f32 %v1621, %v1673
    %1675 = vmatmul.f32.gmra.mxu0 %v1587
    %v1676 = vpop.f32.mrf.mxu0
    %v1677 = vadd.f32 %v1621, %v1676
    %1678 = vmatmul.f32.gmra.mxu0 %v1589
    %v1679 = vpop.f32.mrf.mxu0
    %v1680 = vadd.f32 %v1621, %v1679
    %1681 = vmatmul.f32.gmra.mxu0 %v1591
    %v1682 = vpop.f32.mrf.mxu0
    %v1683 = vadd.f32 %v1621, %v1682
    %1684 = vmatmul.f32.gmra.mxu0 %v1593
    %v1685 = vpop.f32.mrf.mxu0
    %v1686 = vadd.f32 %v1621, %v1685
    %1687 = vdwg.mxu0
    %1688 = vmatpush.msra.mxu0 0.0
    %1689 = vmatpush.msra.mxu0 0.0
    %1690 = vmatpush.msra.mxu0 0.0
    %1691 = vmatpush.msra.mxu0 0.0
    %1692 = vmatpush.msra.mxu0 0.0
    %1693 = vmatpush.msra.mxu0 0.0
    %1694 = vmatpush.msra.mxu0 0.0
    %1695 = vmatpush.msra.mxu0 0.0
    %1696 = vmatpush.msra.mxu0 %v1618
    %1697 = vmatpush.msra.mxu0 %v1617
    %1698 = vmatpush.msra.mxu0 %v1616
    %1699 = vmatpush.msra.mxu0 %v1615
    %1700 = vmatpush.msra.mxu0 %v1614
    %1701 = vmatpush.msra.mxu0 %v1613
    %1702 = vmatpush.msra.mxu0 %v1612
    %1703 = vmatpush.msra.mxu0 %v1611
    %1704 = vmatmul.f32.gmra.mxu0 %v1624
    %v1705 = vpop.f32.mrf.mxu0
    %v1706 = vadd.f32 %v1665, %v1705
    %1707 = vmatmul.f32.gmra.mxu0 %v1627
    %v1708 = vpop.f32.mrf.mxu0
    %v1709 = vadd.f32 %v1668, %v1708
    %1710 = vmatmul.f32.gmra.mxu0 %v1630
    %v1711 = vpop.f32.mrf.mxu0
    %v1712 = vadd.f32 %v1671, %v1711
    %1713 = vmatmul.f32.gmra.mxu0 %v1633
    %v1714 = vpop.f32.mrf.mxu0
    %v1715 = vadd.f32 %v1674, %v1714
    %1716 = vmatmul.f32.gmra.mxu0 %v1636
    %v1717 = vpop.f32.mrf.mxu0
    %v1718 = vadd.f32 %v1677, %v1717
    %1719 = vmatmul.f32.gmra.mxu0 %v1639
    %v1720 = vpop.f32.mrf.mxu0
    %v1721 = vadd.f32 %v1680, %v1720
    %1722 = vmatmul.f32.gmra.mxu0 %v1642
    %v1723 = vpop.f32.mrf.mxu0
    %v1724 = vadd.f32 %v1683, %v1723
    %1725 = vmatmul.f32.gmra.mxu0 %v1645
    %v1726 = vpop.f32.mrf.mxu0
    %v1727 = vadd.f32 %v1686, %v1726
    %1728 = vdwg.mxu0
    %v1729 = vmul.f32 %v1706, %v1080
    %v1730 = vmul.f32 %v1709, %v1081
    %v1731 = vmul.f32 %v1712, %v1082
    %v1732 = vmul.f32 %v1715, %v1083
    %v1733 = vmul.f32 %v1718, %v1084
    %v1734 = vmul.f32 %v1721, %v1085
    %v1735 = vmul.f32 %v1724, %v1086
    %v1736 = vmul.f32 %v1727, %v1087
    %1745 = vrot.lane.b32.xlu0 %v1706, 125
    %v1746 = vpop.permute.xlu0 %1745
    %1747 = vrot.lane.b32.xlu0 %v1709, 125
    %v1748 = vpop.permute.xlu0 %1747
    %1749 = vrot.lane.b32.xlu0 %v1712, 125
    %v1750 = vpop.permute.xlu0 %1749
    %1751 = vrot.lane.b32.xlu0 %v1715, 125
    %v1752 = vpop.permute.xlu0 %1751
    %1753 = vrot.lane.b32.xlu0 %v1718, 125
    %v1754 = vpop.permute.xlu0 %1753
    %1755 = vrot.lane.b32.xlu0 %v1721, 125
    %v1756 = vpop.permute.xlu0 %1755
    %1757 = vrot.lane.b32.xlu0 %v1724, 125
    %v1758 = vpop.permute.xlu0 %1757
    %1759 = vrot.lane.b32.xlu0 %v1727, 125
    %v1760 = vpop.permute.xlu0 %1759
    %v1769 = vadd.f32 %v1729, %v1746
    %v1770 = vadd.f32 %v1730, %v1748
    %v1771 = vadd.f32 %v1731, %v1750
    %v1772 = vadd.f32 %v1732, %v1752
    %v1773 = vadd.f32 %v1733, %v1754
    %v1774 = vadd.f32 %v1734, %v1756
    %v1775 = vadd.f32 %v1735, %v1758
    %v1776 = vadd.f32 %v1736, %v1760
    %v1777 = vmax.f32 %v1769, 0.0
    %v1778 = vmax.f32 %v1770, 0.0
    %v1779 = vmax.f32 %v1771, 0.0
    %v1780 = vmax.f32 %v1772, 0.0
    %v1781 = vmax.f32 %v1773, 0.0
    %v1782 = vmax.f32 %v1774, 0.0
    %v1783 = vmax.f32 %v1775, 0.0
    %v1784 = vmax.f32 %v1776, 0.0
    %1793 = vrot.lane.b32.xlu0 %v1777, 1
    %v1794 = vpop.permute.xlu0 %1793
    %1795 = vrot.lane.b32.xlu0 %v1778, 1
    %v1796 = vpop.permute.xlu0 %1795
    %1797 = vrot.lane.b32.xlu0 %v1779, 1
    %v1798 = vpop.permute.xlu0 %1797
    %1799 = vrot.lane.b32.xlu0 %v1780, 1
    %v1800 = vpop.permute.xlu0 %1799
    %1801 = vrot.lane.b32.xlu0 %v1781, 1
    %v1802 = vpop.permute.xlu0 %1801
    %1803 = vrot.lane.b32.xlu0 %v1782, 1
    %v1804 = vpop.permute.xlu0 %1803
    %1805 = vrot.lane.b32.xlu0 %v1783, 1
    %v1806 = vpop.permute.xlu0 %1805
    %1807 = vrot.lane.b32.xlu0 %v1784, 1
    %v1808 = vpop.permute.xlu0 %1807
    %v1817 = vmul.f32 %v1706, %v1794
    %v1818 = vmul.f32 %v1709, %v1796
    %v1819 = vmul.f32 %v1712, %v1798
    %v1820 = vmul.f32 %v1715, %v1800
    %v1821 = vmul.f32 %v1718, %v1802
    %v1822 = vmul.f32 %v1721, %v1804
    %v1823 = vmul.f32 %v1724, %v1806
    %v1824 = vmul.f32 %v1727, %v1808
    %v1825 = vadd.f32 %v1817, %v1746
    %v1826 = vadd.f32 %v1818, %v1748
    %v1827 = vadd.f32 %v1819, %v1750
    %v1828 = vadd.f32 %v1820, %v1752
    %v1829 = vadd.f32 %v1821, %v1754
    %v1830 = vadd.f32 %v1822, %v1756
    %v1831 = vadd.f32 %v1823, %v1758
    %v1832 = vadd.f32 %v1824, %v1760
    %1833 = vrot.lane.b32.xlu0 %v1080, 1
    %v1834 = vpop.permute.xlu0 %1833
    %1835 = vrot.lane.b32.xlu0 %v1081, 1
    %v1836 = vpop.permute.xlu0 %1835
    %1837 = vrot.lane.b32.xlu0 %v1082, 1
    %v1838 = vpop.permute.xlu0 %1837
    %1839 = vrot.lane.b32.xlu0 %v1083, 1
    %v1840 = vpop.permute.xlu0 %1839
    %1841 = vrot.lane.b32.xlu0 %v1084, 1
    %v1842 = vpop.permute.xlu0 %1841
    %1843 = vrot.lane.b32.xlu0 %v1085, 1
    %v1844 = vpop.permute.xlu0 %1843
    %1845 = vrot.lane.b32.xlu0 %v1086, 1
    %v1846 = vpop.permute.xlu0 %1845
    %1847 = vrot.lane.b32.xlu0 %v1087, 1
    %v1848 = vpop.permute.xlu0 %1847
    %v1857 = vadd.f32 %v1825, %v1834
    %v1858 = vadd.f32 %v1826, %v1836
    %v1859 = vadd.f32 %v1827, %v1838
    %v1860 = vadd.f32 %v1828, %v1840
    %v1861 = vadd.f32 %v1829, %v1842
    %v1862 = vadd.f32 %v1830, %v1844
    %v1863 = vadd.f32 %v1831, %v1846
    %v1864 = vadd.f32 %v1832, %v1848
    %v1865 = vmul.f32 %v1706, %v1857
    %v1866 = vmul.f32 %v1709, %v1858
    %v1867 = vmul.f32 %v1712, %v1859
    %v1868 = vmul.f32 %v1715, %v1860
    %v1869 = vmul.f32 %v1718, %v1861
    %v1870 = vmul.f32 %v1721, %v1862
    %v1871 = vmul.f32 %v1724, %v1863
    %v1872 = vmul.f32 %v1727, %v1864
    %v1873 = vadd.f32 %v1865, %v1746
    %v1874 = vadd.f32 %v1866, %v1748
    %v1875 = vadd.f32 %v1867, %v1750
    %v1876 = vadd.f32 %v1868, %v1752
    %v1877 = vadd.f32 %v1869, %v1754
    %v1878 = vadd.f32 %v1870, %v1756
    %v1879 = vadd.f32 %v1871, %v1758
    %v1880 = vadd.f32 %v1872, %v1760
    %v1881 = vmax.f32 %v1873, 0.0
    %v1882 = vmax.f32 %v1874, 0.0
    %v1883 = vmax.f32 %v1875, 0.0
    %v1884 = vmax.f32 %v1876, 0.0
    %v1885 = vmax.f32 %v1877, 0.0
    %v1886 = vmax.f32 %v1878, 0.0
    %v1887 = vmax.f32 %v1879, 0.0
    %v1888 = vmax.f32 %v1880, 0.0
    %1897 = vrot.lane.b32.xlu0 %v1881, 1
    %v1898 = vpop.permute.xlu0 %1897
    %1899 = vrot.lane.b32.xlu0 %v1882, 1
    %v1900 = vpop.permute.xlu0 %1899
    %1901 = vrot.lane.b32.xlu0 %v1883, 1
    %v1902 = vpop.permute.xlu0 %1901
    %1903 = vrot.lane.b32.xlu0 %v1884, 1
    %v1904 = vpop.permute.xlu0 %1903
    %1905 = vrot.lane.b32.xlu0 %v1885, 1
    %v1906 = vpop.permute.xlu0 %1905
    %1907 = vrot.lane.b32.xlu0 %v1886, 1
    %v1908 = vpop.permute.xlu0 %1907
    %1909 = vrot.lane.b32.xlu0 %v1887, 1
    %v1910 = vpop.permute.xlu0 %1909
    %1911 = vrot.lane.b32.xlu0 %v1888, 1
    %v1912 = vpop.permute.xlu0 %1911
    %v1921 = vmul.f32 %v1706, %v1898
    %v1922 = vmul.f32 %v1709, %v1900
    %v1923 = vmul.f32 %v1712, %v1902
    %v1924 = vmul.f32 %v1715, %v1904
    %v1925 = vmul.f32 %v1718, %v1906
    %v1926 = vmul.f32 %v1721, %v1908
    %v1927 = vmul.f32 %v1724, %v1910
    %v1928 = vmul.f32 %v1727, %v1912
    %v1929 = vadd.f32 %v1921, %v1746
    %v1930 = vadd.f32 %v1922, %v1748
    %v1931 = vadd.f32 %v1923, %v1750
    %v1932 = vadd.f32 %v1924, %v1752
    %v1933 = vadd.f32 %v1925, %v1754
    %v1934 = vadd.f32 %v1926, %v1756
    %v1935 = vadd.f32 %v1927, %v1758
    %v1936 = vadd.f32 %v1928, %v1760
    %1945 = vrot.lane.b32.xlu0 %v1857, 1
    %v1946 = vpop.permute.xlu0 %1945
    %1947 = vrot.lane.b32.xlu0 %v1858, 1
    %v1948 = vpop.permute.xlu0 %1947
    %1949 = vrot.lane.b32.xlu0 %v1859, 1
    %v1950 = vpop.permute.xlu0 %1949
    %1951 = vrot.lane.b32.xlu0 %v1860, 1
    %v1952 = vpop.permute.xlu0 %1951
    %1953 = vrot.lane.b32.xlu0 %v1861, 1
    %v1954 = vpop.permute.xlu0 %1953
    %1955 = vrot.lane.b32.xlu0 %v1862, 1
    %v1956 = vpop.permute.xlu0 %1955
    %1957 = vrot.lane.b32.xlu0 %v1863, 1
    %v1958 = vpop.permute.xlu0 %1957
    %1959 = vrot.lane.b32.xlu0 %v1864, 1
    %v1960 = vpop.permute.xlu0 %1959
    %v1969 = vadd.f32 %v1929, %v1946
    %v1970 = vadd.f32 %v1930, %v1948
    %v1971 = vadd.f32 %v1931, %v1950
    %v1972 = vadd.f32 %v1932, %v1952
    %v1973 = vadd.f32 %v1933, %v1954
    %v1974 = vadd.f32 %v1934, %v1956
    %v1975 = vadd.f32 %v1935, %v1958
    %v1976 = vadd.f32 %v1936, %v1960
    %v1977 = vld [vmem:[%s9] sm:$0x1]
    %v1979 = vperm.slane %v1977, 0
    %v1981 = vrcp.pop %v1979
    %v1982 = vmul.f32 %v1979, %v1981
    %v1983 = vsub.f32 1.0, %v1982
    %v1984 = vmul.f32 %v1981, %v1983
    %v1985 = vadd.f32 %v1981, %v1984
    %vm1986 = vweird.f32 %v1979
    %vm1987 = vweird.f32 %v1981
    %vm1988 = vmor %vm1986, %vm1987
    %v1989 = vsel %vm1988, %v1981, %v1985
    %v1990 = vand.u32 2147483647, %v1979
    %vm1991 = vcmp.eq.f32.partialorder %v1990, 8.507059e+37
    %v1992 = vand.u32 %v1979, 2147483648
    %v1993 = vor.u32 1.1754944e-38, %v1992
    %v1994 = vsel %vm1991, %v1993, %v1989
    %v1995 = vmul.f32 %v176, %v1994
    %v1996 = vmul.f32 %v177, %v1994
    %v1997 = vmul.f32 %v178, %v1994
    %v1998 = vmul.f32 %v179, %v1994
    %v1999 = vmul.f32 %v180, %v1994
    %v2000 = vmul.f32 %v181, %v1994
    %v2001 = vmul.f32 %v182, %v1994
    %v2002 = vmul.f32 %v183, %v1994
    %2003 = vxpose.xlu0.b32.start [1/16] %v1995, 128
    %2004 = vxpose.xlu0.b32.cont [2/16] %v1996, 128
    %2005 = vxpose.xlu0.b32.cont [3/16] %v1997, 128
    %2006 = vxpose.xlu0.b32.cont [4/16] %v1998, 128
    %2007 = vxpose.xlu0.b32.cont [5/16] %v1999, 128
    %2008 = vxpose.xlu0.b32.cont [6/16] %v2000, 128
    %2009 = vxpose.xlu0.b32.cont [7/16] %v2001, 128
    %2010 = vxpose.xlu0.b32.cont [8/16] %v2002, 128
    %2011 = vxpose.xlu0.b32.cont [9/16] 0.0, 128
    %2012 = vxpose.xlu0.b32.cont [10/16] 0.0, 128
    %2013 = vxpose.xlu0.b32.cont [11/16] 0.0, 128
    %2014 = vxpose.xlu0.b32.cont [12/16] 0.0, 128
    %2015 = vxpose.xlu0.b32.cont [13/16] 0.0, 128
    %2016 = vxpose.xlu0.b32.cont [14/16] 0.0, 128
    %2017 = vxpose.xlu0.b32.cont [15/16] 0.0, 128
    %2018 = vxpose.xlu0.b32.end [16/16] 0.0, 128
    %v2019 = vpop.trf.xlu0
    %v2020 = vpop.trf.xlu0
    %v2021 = vpop.trf.xlu0
    %v2022 = vpop.trf.xlu0
    %v2023 = vpop.trf.xlu0
    %v2024 = vpop.trf.xlu0
    %v2025 = vpop.trf.xlu0
    %v2026 = vpop.trf.xlu0
    %v2027 = vpop.trf.xlu0
    %v2028 = vpop.trf.xlu0
    %v2029 = vpop.trf.xlu0
    %v2030 = vpop.trf.xlu0
    %v2031 = vpop.trf.xlu0
    %v2032 = vpop.trf.xlu0
    %v2033 = vpop.trf.xlu0
    %v2034 = vpop.trf.xlu0
    %2036 = vset.pattern.permute.xlu0 0
    %2037 = vperm.xlu0 %2036, %v1995
    %v2038 = vpop.permute.xlu0 %2037
    %2041 = vset.pattern.permute.xlu0 0
    %2042 = vperm.xlu0 %2041, %v1996
    %v2043 = vpop.permute.xlu0 %2042
    %2046 = vset.pattern.permute.xlu0 0
    %2047 = vperm.xlu0 %2046, %v1997
    %v2048 = vpop.permute.xlu0 %2047
    %2051 = vset.pattern.permute.xlu0 0
    %2052 = vperm.xlu0 %2051, %v1998
    %v2053 = vpop.permute.xlu0 %2052
    %2056 = vset.pattern.permute.xlu0 0
    %2057 = vperm.xlu0 %2056, %v1999
    %v2058 = vpop.permute.xlu0 %2057
    %2061 = vset.pattern.permute.xlu0 0
    %2062 = vperm.xlu0 %2061, %v2000
    %v2063 = vpop.permute.xlu0 %2062
    %2066 = vset.pattern.permute.xlu0 0
    %2067 = vperm.xlu0 %2066, %v2001
    %v2068 = vpop.permute.xlu0 %2067
    %2071 = vset.pattern.permute.xlu0 0
    %2072 = vperm.xlu0 %2071, %v2002
    %v2073 = vpop.permute.xlu0 %2072
    %v2075 = vperm.slane %v2019, 0
    %v2076 = vsub.f32 %v2038, %v2075
    %v2077 = vsub.f32 %v2043, %v2075
    %v2078 = vsub.f32 %v2048, %v2075
    %v2079 = vsub.f32 %v2053, %v2075
    %v2080 = vsub.f32 %v2058, %v2075
    %v2081 = vsub.f32 %v2063, %v2075
    %v2082 = vsub.f32 %v2068, %v2075
    %v2083 = vsub.f32 %v2073, %v2075
    %v2084 = vmul.f32 %v2076, %v2076
    %v2085 = vmul.f32 %v2077, %v2077
    %v2086 = vmul.f32 %v2078, %v2078
    %v2087 = vmul.f32 %v2079, %v2079
    %v2088 = vmul.f32 %v2080, %v2080
    %v2089 = vmul.f32 %v2081, %v2081
    %v2090 = vmul.f32 %v2082, %v2082
    %v2091 = vmul.f32 %v2083, %v2083
    %v2092 = vadd.f32 %v2084, 0.0
    %v2093 = vadd.f32 %v2085, 0.0
    %v2094 = vadd.f32 %v2086, 0.0
    %v2095 = vadd.f32 %v2087, 0.0
    %v2096 = vadd.f32 %v2088, 0.0
    %v2097 = vadd.f32 %v2089, 0.0
    %v2098 = vadd.f32 %v2090, 0.0
    %v2099 = vadd.f32 %v2091, 0.0
    %2100 = vset.pattern.permute.xlu0 1
    %2101 = vperm.xlu0 %2100, %v1995
    %v2102 = vpop.permute.xlu0 %2101
    %2104 = vset.pattern.permute.xlu0 1
    %2105 = vperm.xlu0 %2104, %v1996
    %v2106 = vpop.permute.xlu0 %2105
    %2108 = vset.pattern.permute.xlu0 1
    %2109 = vperm.xlu0 %2108, %v1997
    %v2110 = vpop.permute.xlu0 %2109
    %2112 = vset.pattern.permute.xlu0 1
    %2113 = vperm.xlu0 %2112, %v1998
    %v2114 = vpop.permute.xlu0 %2113
    %2116 = vset.pattern.permute.xlu0 1
    %2117 = vperm.xlu0 %2116, %v1999
    %v2118 = vpop.permute.xlu0 %2117
    %2120 = vset.pattern.permute.xlu0 1
    %2121 = vperm.xlu0 %2120, %v2000
    %v2122 = vpop.permute.xlu0 %2121
    %2124 = vset.pattern.permute.xlu0 1
    %2125 = vperm.xlu0 %2124, %v2001
    %v2126 = vpop.permute.xlu0 %2125
    %2128 = vset.pattern.permute.xlu0 1
    %2129 = vperm.xlu0 %2128, %v2002
    %v2130 = vpop.permute.xlu0 %2129
    %v2132 = vperm.slane %v2019, 1
    %v2133 = vsub.f32 %v2102, %v2132
    %v2134 = vsub.f32 %v2106, %v2132
    %v2135 = vsub.f32 %v2110, %v2132
    %v2136 = vsub.f32 %v2114, %v2132
    %v2137 = vsub.f32 %v2118, %v2132
    %v2138 = vsub.f32 %v2122, %v2132
    %v2139 = vsub.f32 %v2126, %v2132
    %v2140 = vsub.f32 %v2130, %v2132
    %v2141 = vmul.f32 %v2133, %v2133
    %v2142 = vmul.f32 %v2134, %v2134
    %v2143 = vmul.f32 %v2135, %v2135
    %v2144 = vmul.f32 %v2136, %v2136
    %v2145 = vmul.f32 %v2137, %v2137
    %v2146 = vmul.f32 %v2138, %v2138
    %v2147 = vmul.f32 %v2139, %v2139
    %v2148 = vmul.f32 %v2140, %v2140
    %v2149 = vadd.f32 %v2092, %v2141
    %v2150 = vadd.f32 %v2093, %v2142
    %v2151 = vadd.f32 %v2094, %v2143
    %v2152 = vadd.f32 %v2095, %v2144
    %v2153 = vadd.f32 %v2096, %v2145
    %v2154 = vadd.f32 %v2097, %v2146
    %v2155 = vadd.f32 %v2098, %v2147
    %v2156 = vadd.f32 %v2099, %v2148
    %2157 = vset.pattern.permute.xlu0 2
    %2158 = vperm.xlu0 %2157, %v1995
    %v2159 = vpop.permute.xlu0 %2158
    %2161 = vset.pattern.permute.xlu0 2
    %2162 = vperm.xlu0 %2161, %v1996
    %v2163 = vpop.permute.xlu0 %2162
    %2165 = vset.pattern.permute.xlu0 2
    %2166 = vperm.xlu0 %2165, %v1997
    %v2167 = vpop.permute.xlu0 %2166
    %2169 = vset.pattern.permute.xlu0 2
    %2170 = vperm.xlu0 %2169, %v1998
    %v2171 = vpop.permute.xlu0 %2170
    %2173 = vset.pattern.permute.xlu0 2
    %2174 = vperm.xlu0 %2173, %v1999
    %v2175 = vpop.permute.xlu0 %2174
    %2177 = vset.pattern.permute.xlu0 2
    %2178 = vperm.xlu0 %2177, %v2000
    %v2179 = vpop.permute.xlu0 %2178
    %2181 = vset.pattern.permute.xlu0 2
    %2182 = vperm.xlu0 %2181, %v2001
    %v2183 = vpop.permute.xlu0 %2182
    %2185 = vset.pattern.permute.xlu0 2
    %2186 = vperm.xlu0 %2185, %v2002
    %v2187 = vpop.permute.xlu0 %2186
    %v2189 = vperm.slane %v2019, 2
    %v2190 = vsub.f32 %v2159, %v2189
    %v2191 = vsub.f32 %v2163, %v2189
    %v2192 = vsub.f32 %v2167, %v2189
    %v2193 = vsub.f32 %v2171, %v2189
    %v2194 = vsub.f32 %v2175, %v2189
    %v2195 = vsub.f32 %v2179, %v2189
    %v2196 = vsub.f32 %v2183, %v2189
    %v2197 = vsub.f32 %v2187, %v2189
    %v2198 = vmul.f32 %v2190, %v2190
    %v2199 = vmul.f32 %v2191, %v2191
    %v2200 = vmul.f32 %v2192, %v2192
    %v2201 = vmul.f32 %v2193, %v2193
    %v2202 = vmul.f32 %v2194, %v2194
    %v2203 = vmul.f32 %v2195, %v2195
    %v2204 = vmul.f32 %v2196, %v2196
    %v2205 = vmul.f32 %v2197, %v2197
    %v2206 = vadd.f32 %v2149, %v2198
    %v2207 = vadd.f32 %v2150, %v2199
    %v2208 = vadd.f32 %v2151, %v2200
    %v2209 = vadd.f32 %v2152, %v2201
    %v2210 = vadd.f32 %v2153, %v2202
    %v2211 = vadd.f32 %v2154, %v2203
    %v2212 = vadd.f32 %v2155, %v2204
    %v2213 = vadd.f32 %v2156, %v2205
    %2214 = vset.pattern.permute.xlu0 3
    %2215 = vperm.xlu0 %2214, %v1995
    %v2216 = vpop.permute.xlu0 %2215
    %2218 = vset.pattern.permute.xlu0 3
    %2219 = vperm.xlu0 %2218, %v1996
    %v2220 = vpop.permute.xlu0 %2219
    %2222 = vset.pattern.permute.xlu0 3
    %2223 = vperm.xlu0 %2222, %v1997
    %v2224 = vpop.permute.xlu0 %2223
    %2226 = vset.pattern.permute.xlu0 3
    %2227 = vperm.xlu0 %2226, %v1998
    %v2228 = vpop.permute.xlu0 %2227
    %2230 = vset.pattern.permute.xlu0 3
    %2231 = vperm.xlu0 %2230, %v1999
    %v2232 = vpop.permute.xlu0 %2231
    %2234 = vset.pattern.permute.xlu0 3
    %2235 = vperm.xlu0 %2234, %v2000
    %v2236 = vpop.permute.xlu0 %2235
    %2238 = vset.pattern.permute.xlu0 3
    %2239 = vperm.xlu0 %2238, %v2001
    %v2240 = vpop.permute.xlu0 %2239
    %2242 = vset.pattern.permute.xlu0 3
    %2243 = vperm.xlu0 %2242, %v2002
    %v2244 = vpop.permute.xlu0 %2243
    %v2246 = vperm.slane %v2019, 3
    %v2247 = vsub.f32 %v2216, %v2246
    %v2248 = vsub.f32 %v2220, %v2246
    %v2249 = vsub.f32 %v2224, %v2246
    %v2250 = vsub.f32 %v2228, %v2246
    %v2251 = vsub.f32 %v2232, %v2246
    %v2252 = vsub.f32 %v2236, %v2246
    %v2253 = vsub.f32 %v2240, %v2246
    %v2254 = vsub.f32 %v2244, %v2246
    %v2255 = vmul.f32 %v2247, %v2247
    %v2256 = vmul.f32 %v2248, %v2248
    %v2257 = vmul.f32 %v2249, %v2249
    %v2258 = vmul.f32 %v2250, %v2250
    %v2259 = vmul.f32 %v2251, %v2251
    %v2260 = vmul.f32 %v2252, %v2252
    %v2261 = vmul.f32 %v2253, %v2253
    %v2262 = vmul.f32 %v2254, %v2254
    %v2263 = vadd.f32 %v2206, %v2255
    %v2264 = vadd.f32 %v2207, %v2256
    %v2265 = vadd.f32 %v2208, %v2257
    %v2266 = vadd.f32 %v2209, %v2258
    %v2267 = vadd.f32 %v2210, %v2259
    %v2268 = vadd.f32 %v2211, %v2260
    %v2269 = vadd.f32 %v2212, %v2261
    %v2270 = vadd.f32 %v2213, %v2262
    %s2271 = sld [smem:[#allocation2]]
    %s2272 = smul.f32 %s2271, 0.5
    %v2273 = vadd.f32 %v2263, 1e-12
    %v2274 = vadd.f32 %v2264, 1e-12
    %v2275 = vadd.f32 %v2265, 1e-12
    %v2276 = vadd.f32 %v2266, 1e-12
    %v2277 = vadd.f32 %v2267, 1e-12
    %v2278 = vadd.f32 %v2268, 1e-12
    %v2279 = vadd.f32 %v2269, 1e-12
    %v2280 = vadd.f32 %v2270, 1e-12
    %v2281 = vlog2.pop %v2273
    %v2282 = vmul.f32 %v2281, 0.6931472
    %v2283 = vlog2.pop %v2274
    %v2284 = vmul.f32 %v2283, 0.6931472
    %v2285 = vlog2.pop %v2275
    %v2286 = vmul.f32 %v2285, 0.6931472
    %v2287 = vlog2.pop %v2276
    %v2288 = vmul.f32 %v2287, 0.6931472
    %v2289 = vlog2.pop %v2277
    %v2290 = vmul.f32 %v2289, 0.6931472
    %v2291 = vlog2.pop %v2278
    %v2292 = vmul.f32 %v2291, 0.6931472
    %v2293 = vlog2.pop %v2279
    %v2294 = vmul.f32 %v2293, 0.6931472
    %v2295 = vlog2.pop %v2280
    %v2296 = vmul.f32 %v2295, 0.6931472
    %v2297 = vstv %s2272
    %v2298 = vmul.f32 %v2297, %v2282
    %v2299 = vmul.f32 %v2297, %v2284
    %v2300 = vmul.f32 %v2297, %v2286
    %v2301 = vmul.f32 %v2297, %v2288
    %v2302 = vmul.f32 %v2297, %v2290
    %v2303 = vmul.f32 %v2297, %v2292
    %v2304 = vmul.f32 %v2297, %v2294
    %v2305 = vmul.f32 %v2297, %v2296
    %v2306 = vmul.f32 %v2298, 1.442695
    %v2307 = vpow.pop %v2306
    %v2308 = vmul.f32 %v2299, 1.442695
    %v2309 = vpow.pop %v2308
    %v2310 = vmul.f32 %v2300, 1.442695
    %v2311 = vpow.pop %v2310
    %v2312 = vmul.f32 %v2301, 1.442695
    %v2313 = vpow.pop %v2312
    %v2314 = vmul.f32 %v2302, 1.442695
    %v2315 = vpow.pop %v2314
    %v2316 = vmul.f32 %v2303, 1.442695
    %v2317 = vpow.pop %v2316
    %v2318 = vmul.f32 %v2304, 1.442695
    %v2319 = vpow.pop %v2318
    %v2320 = vmul.f32 %v2305, 1.442695
    %v2321 = vpow.pop %v2320
    %v2322 = vadd.f32 %v2307, 1e-06
    %v2323 = vadd.f32 %v2309, 1e-06
    %v2324 = vadd.f32 %v2311, 1e-06
    %v2325 = vadd.f32 %v2313, 1e-06
    %v2326 = vadd.f32 %v2315, 1e-06
    %v2327 = vadd.f32 %v2317, 1e-06
    %v2328 = vadd.f32 %v2319, 1e-06
    %v2329 = vadd.f32 %v2321, 1e-06
    %v2330 = vrcp.pop %v2322
    %v2331 = vrcp.pop %v2323
    %v2332 = vrcp.pop %v2324
    %v2333 = vrcp.pop %v2325
    %v2334 = vrcp.pop %v2326
    %v2335 = vrcp.pop %v2327
    %v2336 = vrcp.pop %v2328
    %v2337 = vrcp.pop %v2329
    %2338 = vst.msk [vmem:[#allocation12] sm:$0xff] %vm812, %v2330
    %2339 = vst.msk [vmem:[#allocation12 + $0x8] sm:$0xff] %vm812, %v2331
    %2340 = vst.msk [vmem:[#allocation12 + $0x10] sm:$0xff] %vm812, %v2332
    %2341 = vst.msk [vmem:[#allocation12 + $0x18] sm:$0xff] %vm812, %v2333
    %2342 = vst.msk [vmem:[#allocation12 + $0x20] sm:$0xff] %vm812, %v2334
    %2343 = vst.msk [vmem:[#allocation12 + $0x28] sm:$0xff] %vm812, %v2335
    %2344 = vst.msk [vmem:[#allocation12 + $0x30] sm:$0xff] %vm812, %v2336
    %2345 = vst.msk [vmem:[#allocation12 + $0x38] sm:$0xff] %vm812, %v2337
    %v2346 = vsel %vm812, %v2330, 0.0
    %2347 = vadd.xlane.f32.xlu0 %v2346
    %v2348 = vpop.xlane.xlu0 %2347
    %v2349 = vsel %vm812, %v2331, 0.0
    %2350 = vadd.xlane.f32.xlu0 %v2349
    %v2351 = vpop.xlane.xlu0 %2350
    %v2352 = vsel %vm812, %v2332, 0.0
    %2353 = vadd.xlane.f32.xlu0 %v2352
    %v2354 = vpop.xlane.xlu0 %2353
    %v2355 = vsel %vm812, %v2333, 0.0
    %2356 = vadd.xlane.f32.xlu0 %v2355
    %v2357 = vpop.xlane.xlu0 %2356
    %v2358 = vsel %vm812, %v2334, 0.0
    %2359 = vadd.xlane.f32.xlu0 %v2358
    %v2360 = vpop.xlane.xlu0 %2359
    %v2361 = vsel %vm812, %v2335, 0.0
    %2362 = vadd.xlane.f32.xlu0 %v2361
    %v2363 = vpop.xlane.xlu0 %2362
    %v2364 = vsel %vm812, %v2336, 0.0
    %2365 = vadd.xlane.f32.xlu0 %v2364
    %v2366 = vpop.xlane.xlu0 %2365
    %v2367 = vsel %vm812, %v2337, 0.0
    %2368 = vadd.xlane.f32.xlu0 %v2367
    %v2369 = vpop.xlane.xlu0 %2368
    %2378 = vrot.lane.b32.xlu0 %v1969, 126
    %v2379 = vpop.permute.xlu0 %2378
    %2380 = vrot.lane.b32.xlu0 %v1970, 126
    %v2381 = vpop.permute.xlu0 %2380
    %2382 = vrot.lane.b32.xlu0 %v1971, 126
    %v2383 = vpop.permute.xlu0 %2382
    %2384 = vrot.lane.b32.xlu0 %v1972, 126
    %v2385 = vpop.permute.xlu0 %2384
    %2386 = vrot.lane.b32.xlu0 %v1973, 126
    %v2387 = vpop.permute.xlu0 %2386
    %2388 = vrot.lane.b32.xlu0 %v1974, 126
    %v2389 = vpop.permute.xlu0 %2388
    %2390 = vrot.lane.b32.xlu0 %v1975, 126
    %v2391 = vpop.permute.xlu0 %2390
    %2392 = vrot.lane.b32.xlu0 %v1976, 126
    %v2393 = vpop.permute.xlu0 %2392
    %v2403 = vsel %vm812, %v2330, 0
    %v2406 = vsel %vm812, %v2331, 0
    %v2409 = vsel %vm812, %v2332, 0
    %v2412 = vsel %vm812, %v2333, 0
    %v2415 = vsel %vm812, %v2334, 0
    %v2418 = vsel %vm812, %v2335, 0
    %v2421 = vsel %vm812, %v2336, 0
    %v2424 = vsel %vm812, %v2337, 0
    %2426 = vmatpush.msra.mxu0 0.0
    %2427 = vmatpush.msra.mxu0 0.0
    %2428 = vmatpush.msra.mxu0 0.0
    %2429 = vmatpush.msra.mxu0 0.0
    %2430 = vmatpush.msra.mxu0 0.0
    %2431 = vmatpush.msra.mxu0 0.0
    %2432 = vmatpush.msra.mxu0 0.0
    %2433 = vmatpush.msra.mxu0 0.0
    %2434 = vmatpush.msra.mxu0 %v2393
    %2435 = vmatpush.msra.mxu0 %v2391
    %2436 = vmatpush.msra.mxu0 %v2389
    %2437 = vmatpush.msra.mxu0 %v2387
    %2438 = vmatpush.msra.mxu0 %v2385
    %2439 = vmatpush.msra.mxu0 %v2383
    %2440 = vmatpush.msra.mxu0 %v2381
    %2441 = vmatpush.msra.mxu0 %v2379
    %2442 = vmatmul.f32.gmra.mxu0 %v2403
    %v2443 = vpop.f32.mrf.mxu0
    %v2444 = vadd.f32 0.0, %v2443
    %2445 = vmatmul.f32.gmra.mxu0 %v2406
    %v2446 = vpop.f32.mrf.mxu0
    %v2447 = vadd.f32 0.0, %v2446
    %2448 = vmatmul.f32.gmra.mxu0 %v2409
    %v2449 = vpop.f32.mrf.mxu0
    %v2450 = vadd.f32 0.0, %v2449
    %2451 = vmatmul.f32.gmra.mxu0 %v2412
    %v2452 = vpop.f32.mrf.mxu0
    %v2453 = vadd.f32 0.0, %v2452
    %2454 = vmatmul.f32.gmra.mxu0 %v2415
    %v2455 = vpop.f32.mrf.mxu0
    %v2456 = vadd.f32 0.0, %v2455
    %2457 = vmatmul.f32.gmra.mxu0 %v2418
    %v2458 = vpop.f32.mrf.mxu0
    %v2459 = vadd.f32 0.0, %v2458
    %2460 = vmatmul.f32.gmra.mxu0 %v2421
    %v2461 = vpop.f32.mrf.mxu0
    %v2462 = vadd.f32 0.0, %v2461
    %2463 = vmatmul.f32.gmra.mxu0 %v2424
    %v2464 = vpop.f32.mrf.mxu0
    %v2465 = vadd.f32 0.0, %v2464
    %2466 = vdwg.mxu0
    %v2467 = vrcp.pop %v2348
    %v2468 = vrcp.pop %v2351
    %v2469 = vrcp.pop %v2354
    %v2470 = vrcp.pop %v2357
    %v2471 = vrcp.pop %v2360
    %v2472 = vrcp.pop %v2363
    %v2473 = vrcp.pop %v2366
    %v2474 = vrcp.pop %v2369
    %v2475 = vmul.f32 %v2444, %v2467
    %v2476 = vmul.f32 %v2447, %v2468
    %v2477 = vmul.f32 %v2450, %v2469
    %v2478 = vmul.f32 %v2453, %v2470
    %v2479 = vmul.f32 %v2456, %v2471
    %v2480 = vmul.f32 %v2459, %v2472
    %v2481 = vmul.f32 %v2462, %v2473
    %v2482 = vmul.f32 %v2465, %v2474
    %2484 = vset.pattern.permute.xlu0 0
    %2485 = vperm.xlu0 %2484, %v2475
    %v2486 = vpop.permute.xlu0 %2485
    %2489 = vset.pattern.permute.xlu0 0
    %2490 = vperm.xlu0 %2489, %v2476
    %v2491 = vpop.permute.xlu0 %2490
    %2494 = vset.pattern.permute.xlu0 0
    %2495 = vperm.xlu0 %2494, %v2477
    %v2496 = vpop.permute.xlu0 %2495
    %2499 = vset.pattern.permute.xlu0 0
    %2500 = vperm.xlu0 %2499, %v2478
    %v2501 = vpop.permute.xlu0 %2500
    %2504 = vset.pattern.permute.xlu0 0
    %2505 = vperm.xlu0 %2504, %v2479
    %v2506 = vpop.permute.xlu0 %2505
    %2509 = vset.pattern.permute.xlu0 0
    %2510 = vperm.xlu0 %2509, %v2480
    %v2511 = vpop.permute.xlu0 %2510
    %2514 = vset.pattern.permute.xlu0 0
    %2515 = vperm.xlu0 %2514, %v2481
    %v2516 = vpop.permute.xlu0 %2515
    %2519 = vset.pattern.permute.xlu0 0
    %2520 = vperm.xlu0 %2519, %v2482
    %v2521 = vpop.permute.xlu0 %2520
    %v2523 = vmul.f32 %v2486, %v1129
    %v2524 = vmul.f32 %v2491, %v1129
    %v2525 = vmul.f32 %v2496, %v1129
    %v2526 = vmul.f32 %v2501, %v1129
    %v2527 = vmul.f32 %v2506, %v1129
    %v2528 = vmul.f32 %v2511, %v1129
    %v2529 = vmul.f32 %v2516, %v1129
    %v2530 = vmul.f32 %v2521, %v1129
    %v2531 = vadd.f32 %v2523, %v1140
    %v2532 = vadd.f32 %v2524, %v1140
    %v2533 = vadd.f32 %v2525, %v1140
    %v2534 = vadd.f32 %v2526, %v1140
    %v2535 = vadd.f32 %v2527, %v1140
    %v2536 = vadd.f32 %v2528, %v1140
    %v2537 = vadd.f32 %v2529, %v1140
    %v2538 = vadd.f32 %v2530, %v1140
    %v2539 = vmax.f32 %v2531, 0.0
    %v2540 = vmax.f32 %v2532, 0.0
    %v2541 = vmax.f32 %v2533, 0.0
    %v2542 = vmax.f32 %v2534, 0.0
    %v2543 = vmax.f32 %v2535, 0.0
    %v2544 = vmax.f32 %v2536, 0.0
    %v2545 = vmax.f32 %v2537, 0.0
    %v2546 = vmax.f32 %v2538, 0.0
    %v2548 = vsel %vm812, %v2539, 0
    %v2551 = vsel %vm812, %v2540, 0
    %v2554 = vsel %vm812, %v2541, 0
    %v2557 = vsel %vm812, %v2542, 0
    %v2560 = vsel %vm812, %v2543, 0
    %v2563 = vsel %vm812, %v2544, 0
    %v2566 = vsel %vm812, %v2545, 0
    %v2569 = vsel %vm812, %v2546, 0
    %2571 = vmatpush.msra.mxu0 0.0
    %2572 = vmatpush.msra.mxu0 0.0
    %2573 = vmatpush.msra.mxu0 0.0
    %2574 = vmatpush.msra.mxu0 0.0
    %2575 = vmatpush.msra.mxu0 0.0
    %2576 = vmatpush.msra.mxu0 0.0
    %2577 = vmatpush.msra.mxu0 0.0
    %2578 = vmatpush.msra.mxu0 0.0
    %2579 = vmatpush.msra.mxu0 %v726
    %2580 = vmatpush.msra.mxu0 %v725
    %2581 = vmatpush.msra.mxu0 %v724
    %2582 = vmatpush.msra.mxu0 %v723
    %2583 = vmatpush.msra.mxu0 %v722
    %2584 = vmatpush.msra.mxu0 %v721
    %2585 = vmatpush.msra.mxu0 %v720
    %2586 = vmatpush.msra.mxu0 %v719
    %2587 = vmatmul.f32.gmra.mxu0 %v2548
    %v2588 = vpop.f32.mrf.mxu0
    %v2589 = vadd.f32 %v1158, %v2588
    %2590 = vmatmul.f32.gmra.mxu0 %v2551
    %v2591 = vpop.f32.mrf.mxu0
    %v2592 = vadd.f32 %v1158, %v2591
    %2593 = vmatmul.f32.gmra.mxu0 %v2554
    %v2594 = vpop.f32.mrf.mxu0
    %v2595 = vadd.f32 %v1158, %v2594
    %2596 = vmatmul.f32.gmra.mxu0 %v2557
    %v2597 = vpop.f32.mrf.mxu0
    %v2598 = vadd.f32 %v1158, %v2597
    %2599 = vmatmul.f32.gmra.mxu0 %v2560
    %v2600 = vpop.f32.mrf.mxu0
    %v2601 = vadd.f32 %v1158, %v2600
    %2602 = vmatmul.f32.gmra.mxu0 %v2563
    %v2603 = vpop.f32.mrf.mxu0
    %v2604 = vadd.f32 %v1158, %v2603
    %2605 = vmatmul.f32.gmra.mxu0 %v2566
    %v2606 = vpop.f32.mrf.mxu0
    %v2607 = vadd.f32 %v1158, %v2606
    %2608 = vmatmul.f32.gmra.mxu0 %v2569
    %v2609 = vpop.f32.mrf.mxu0
    %v2610 = vadd.f32 %v1158, %v2609
    %2611 = vdwg.mxu0
    %2612 = vst.msk [vmem:[%s57] sm:$0xff] %vm292, %v2589
    %2613 = vst.msk [vmem:[%s57 + $0x8] sm:$0xff] %vm292, %v2592
    %2614 = vst.msk [vmem:[%s57 + $0x10] sm:$0xff] %vm292, %v2595
    %2615 = vst.msk [vmem:[%s57 + $0x18] sm:$0xff] %vm292, %v2598
    %2616 = vst.msk [vmem:[%s57 + $0x20] sm:$0xff] %vm292, %v2601
    %2617 = vst.msk [vmem:[%s57 + $0x28] sm:$0xff] %vm292, %v2604
    %2618 = vst.msk [vmem:[%s57 + $0x30] sm:$0xff] %vm292, %v2607
    %2619 = vst.msk [vmem:[%s57 + $0x38] sm:$0xff] %vm292, %v2610
    %2620 = vst.msk [vmem:[%s59] sm:$0xff] %vm214, %v681
    %2621 = vst.msk [vmem:[%s59 + $0x8] sm:$0xff] %vm214, %v684
    %2622 = vst.msk [vmem:[%s59 + $0x10] sm:$0xff] %vm214, %v687
    %2623 = vst.msk [vmem:[%s59 + $0x18] sm:$0xff] %vm214, %v690
    %2624 = vst.msk [vmem:[%s59 + $0x20] sm:$0xff] %vm214, %v693
    %2625 = vst.msk [vmem:[%s59 + $0x28] sm:$0xff] %vm214, %v696
    %2626 = vst.msk [vmem:[%s59 + $0x30] sm:$0xff] %vm214, %v699
    %2627 = vst.msk [vmem:[%s59 + $0x38] sm:$0xff] %vm214, %v702
    %2628 = vst.msk [vmem:[%s61] sm:$0xff] %vm292, %v1201
    %2629 = vst.msk [vmem:[%s61 + $0x8] sm:$0xff] %vm292, %v1204
    %2630 = vst.msk [vmem:[%s61 + $0x10] sm:$0xff] %vm292, %v1207
    %2631 = vst.msk [vmem:[%s61 + $0x18] sm:$0xff] %vm292, %v1210
    %2632 = vst.msk [vmem:[%s61 + $0x20] sm:$0xff] %vm292, %v1213
    %2633 = vst.msk [vmem:[%s61 + $0x28] sm:$0xff] %vm292, %v1216
    %2634 = vst.msk [vmem:[%s61 + $0x30] sm:$0xff] %vm292, %v1219
    %2635 = vst.msk [vmem:[%s61 + $0x38] sm:$0xff] %vm292, %v1222
    %2644 = vrot.lane.b32.xlu0 %v359, 1
    %v2645 = vpop.permute.xlu0 %2644
    %2646 = vrot.lane.b32.xlu0 %v360, 1
    %v2647 = vpop.permute.xlu0 %2646
    %2648 = vrot.lane.b32.xlu0 %v361, 1
    %v2649 = vpop.permute.xlu0 %2648
    %2650 = vrot.lane.b32.xlu0 %v362, 1
    %v2651 = vpop.permute.xlu0 %2650
    %2652 = vrot.lane.b32.xlu0 %v363, 1
    %v2653 = vpop.permute.xlu0 %2652
    %2654 = vrot.lane.b32.xlu0 %v364, 1
    %v2655 = vpop.permute.xlu0 %2654
    %2656 = vrot.lane.b32.xlu0 %v365, 1
    %v2657 = vpop.permute.xlu0 %2656
    %2658 = vrot.lane.b32.xlu0 %v366, 1
    %v2659 = vpop.permute.xlu0 %2658
    %2676 = vrot.lane.b32.xlu0 %v377, 1
    %v2677 = vpop.permute.xlu0 %2676
    %2678 = vrot.lane.b32.xlu0 %v379, 1
    %v2679 = vpop.permute.xlu0 %2678
    %2680 = vrot.lane.b32.xlu0 %v381, 1
    %v2681 = vpop.permute.xlu0 %2680
    %2682 = vrot.lane.b32.xlu0 %v383, 1
    %v2683 = vpop.permute.xlu0 %2682
    %2684 = vrot.lane.b32.xlu0 %v385, 1
    %v2685 = vpop.permute.xlu0 %2684
    %2686 = vrot.lane.b32.xlu0 %v387, 1
    %v2687 = vpop.permute.xlu0 %2686
    %2688 = vrot.lane.b32.xlu0 %v389, 1
    %v2689 = vpop.permute.xlu0 %2688
    %2690 = vrot.lane.b32.xlu0 %v391, 1
    %v2691 = vpop.permute.xlu0 %2690
    %2708 = vrot.lane.b32.xlu0 %v368, 2
    %v2709 = vpop.permute.xlu0 %2708
    %2710 = vrot.lane.b32.xlu0 %v369, 2
    %v2711 = vpop.permute.xlu0 %2710
    %2712 = vrot.lane.b32.xlu0 %v370, 2
    %v2713 = vpop.permute.xlu0 %2712
    %2714 = vrot.lane.b32.xlu0 %v371, 2
    %v2715 = vpop.permute.xlu0 %2714
    %2716 = vrot.lane.b32.xlu0 %v372, 2
    %v2717 = vpop.permute.xlu0 %2716
    %2718 = vrot.lane.b32.xlu0 %v373, 2
    %v2719 = vpop.permute.xlu0 %2718
    %2720 = vrot.lane.b32.xlu0 %v374, 2
    %v2721 = vpop.permute.xlu0 %2720
    %2722 = vrot.lane.b32.xlu0 %v375, 2
    %v2723 = vpop.permute.xlu0 %2722
    %vm2732 = vcmask 7168
    %v2733 = vsel %vm2732, %v560, %v2645
    %v2734 = vsel %vm2732, %v561, %v2647
    %v2735 = vsel %vm2732, %v562, %v2649
    %v2736 = vsel %vm2732, %v563, %v2651
    %v2737 = vsel %vm2732, %v564, %v2653
    %v2738 = vsel %vm2732, %v565, %v2655
    %v2739 = vsel %vm2732, %v566, %v2657
    %v2740 = vsel %vm2732, %v567, %v2659
    %vm2741 = vcmask 15360
    %v2742 = vsel %vm2741, %v2733, %v2677
    %v2743 = vsel %vm2741, %v2734, %v2679
    %v2744 = vsel %vm2741, %v2735, %v2681
    %v2745 = vsel %vm2741, %v2736, %v2683
    %v2746 = vsel %vm2741, %v2737, %v2685
    %v2747 = vsel %vm2741, %v2738, %v2687
    %v2748 = vsel %vm2741, %v2739, %v2689
    %v2749 = vsel %vm2741, %v2740, %v2691
    %vm2750 = vcmask 23552
    %v2751 = vsel %vm2750, %v2742, %v2709
    %v2752 = vsel %vm2750, %v2743, %v2711
    %v2753 = vsel %vm2750, %v2744, %v2713
    %v2754 = vsel %vm2750, %v2745, %v2715
    %v2755 = vsel %vm2750, %v2746, %v2717
    %v2756 = vsel %vm2750, %v2747, %v2719
    %v2757 = vsel %vm2750, %v2748, %v2721
    %v2758 = vsel %vm2750, %v2749, %v2723
    %2759 = vst.msk [vmem:[%s63] sm:$0xff] %vm214, %v2751
    %2760 = vst.msk [vmem:[%s63 + $0x8] sm:$0xff] %vm214, %v2752
    %2761 = vst.msk [vmem:[%s63 + $0x10] sm:$0xff] %vm214, %v2753
    %2762 = vst.msk [vmem:[%s63 + $0x18] sm:$0xff] %vm214, %v2754
    %2763 = vst.msk [vmem:[%s63 + $0x20] sm:$0xff] %vm214, %v2755
    %2764 = vst.msk [vmem:[%s63 + $0x28] sm:$0xff] %vm214, %v2756
    %2765 = vst.msk [vmem:[%s63 + $0x30] sm:$0xff] %vm214, %v2757
    %2766 = vst.msk [vmem:[%s63 + $0x38] sm:$0xff] %vm214, %v2758
    %2775 = vrot.lane.b32.xlu0 %v879, 1
    %v2776 = vpop.permute.xlu0 %2775
    %2777 = vrot.lane.b32.xlu0 %v880, 1
    %v2778 = vpop.permute.xlu0 %2777
    %2779 = vrot.lane.b32.xlu0 %v881, 1
    %v2780 = vpop.permute.xlu0 %2779
    %2781 = vrot.lane.b32.xlu0 %v882, 1
    %v2782 = vpop.permute.xlu0 %2781
    %2783 = vrot.lane.b32.xlu0 %v883, 1
    %v2784 = vpop.permute.xlu0 %2783
    %2785 = vrot.lane.b32.xlu0 %v884, 1
    %v2786 = vpop.permute.xlu0 %2785
    %2787 = vrot.lane.b32.xlu0 %v885, 1
    %v2788 = vpop.permute.xlu0 %2787
    %2789 = vrot.lane.b32.xlu0 %v886, 1
    %v2790 = vpop.permute.xlu0 %2789
    %2807 = vrot.lane.b32.xlu0 %v897, 1
    %v2808 = vpop.permute.xlu0 %2807
    %2809 = vrot.lane.b32.xlu0 %v899, 1
    %v2810 = vpop.permute.xlu0 %2809
    %2811 = vrot.lane.b32.xlu0 %v901, 1
    %v2812 = vpop.permute.xlu0 %2811
    %2813 = vrot.lane.b32.xlu0 %v903, 1
    %v2814 = vpop.permute.xlu0 %2813
    %2815 = vrot.lane.b32.xlu0 %v905, 1
    %v2816 = vpop.permute.xlu0 %2815
    %2817 = vrot.lane.b32.xlu0 %v907, 1
    %v2818 = vpop.permute.xlu0 %2817
    %2819 = vrot.lane.b32.xlu0 %v909, 1
    %v2820 = vpop.permute.xlu0 %2819
    %2821 = vrot.lane.b32.xlu0 %v911, 1
    %v2822 = vpop.permute.xlu0 %2821
    %2839 = vrot.lane.b32.xlu0 %v888, 2
    %v2840 = vpop.permute.xlu0 %2839
    %2841 = vrot.lane.b32.xlu0 %v889, 2
    %v2842 = vpop.permute.xlu0 %2841
    %2843 = vrot.lane.b32.xlu0 %v890, 2
    %v2844 = vpop.permute.xlu0 %2843
    %2845 = vrot.lane.b32.xlu0 %v891, 2
    %v2846 = vpop.permute.xlu0 %2845
    %2847 = vrot.lane.b32.xlu0 %v892, 2
    %v2848 = vpop.permute.xlu0 %2847
    %2849 = vrot.lane.b32.xlu0 %v893, 2
    %v2850 = vpop.permute.xlu0 %2849
    %2851 = vrot.lane.b32.xlu0 %v894, 2
    %v2852 = vpop.permute.xlu0 %2851
    %2853 = vrot.lane.b32.xlu0 %v895, 2
    %v2854 = vpop.permute.xlu0 %2853
    %v2863 = vsel %vm2732, %v1080, %v2776
    %v2864 = vsel %vm2732, %v1081, %v2778
    %v2865 = vsel %vm2732, %v1082, %v2780
    %v2866 = vsel %vm2732, %v1083, %v2782
    %v2867 = vsel %vm2732, %v1084, %v2784
    %v2868 = vsel %vm2732, %v1085, %v2786
    %v2869 = vsel %vm2732, %v1086, %v2788
    %v2870 = vsel %vm2732, %v1087, %v2790
    %v2871 = vsel %vm2741, %v2863, %v2808
    %v2872 = vsel %vm2741, %v2864, %v2810
    %v2873 = vsel %vm2741, %v2865, %v2812
    %v2874 = vsel %vm2741, %v2866, %v2814
    %v2875 = vsel %vm2741, %v2867, %v2816
    %v2876 = vsel %vm2741, %v2868, %v2818
    %v2877 = vsel %vm2741, %v2869, %v2820
    %v2878 = vsel %vm2741, %v2870, %v2822
    %v2879 = vsel %vm2750, %v2871, %v2840
    %v2880 = vsel %vm2750, %v2872, %v2842
    %v2881 = vsel %vm2750, %v2873, %v2844
    %v2882 = vsel %vm2750, %v2874, %v2846
    %v2883 = vsel %vm2750, %v2875, %v2848
    %v2884 = vsel %vm2750, %v2876, %v2850
    %v2885 = vsel %vm2750, %v2877, %v2852
    %v2886 = vsel %vm2750, %v2878, %v2854
    %2887 = vst.msk [vmem:[%s65] sm:$0xff] %vm214, %v2879
    %2888 = vst.msk [vmem:[%s65 + $0x8] sm:$0xff] %vm214, %v2880
    %2889 = vst.msk [vmem:[%s65 + $0x10] sm:$0xff] %vm214, %v2881
    %2890 = vst.msk [vmem:[%s65 + $0x18] sm:$0xff] %vm214, %v2882
    %2891 = vst.msk [vmem:[%s65 + $0x20] sm:$0xff] %vm214, %v2883
    %2892 = vst.msk [vmem:[%s65 + $0x28] sm:$0xff] %vm214, %v2884
    %2893 = vst.msk [vmem:[%s65 + $0x30] sm:$0xff] %vm214, %v2885
    %2894 = vst.msk [vmem:[%s65 + $0x38] sm:$0xff] %vm214, %v2886
    %2895 = vrot.lane.b32.xlu0 %v2475, 1
    %v2896 = vpop.permute.xlu0 %2895
    %2897 = vrot.lane.b32.xlu0 %v2476, 1
    %v2898 = vpop.permute.xlu0 %2897
    %2899 = vrot.lane.b32.xlu0 %v2477, 1
    %v2900 = vpop.permute.xlu0 %2899
    %2901 = vrot.lane.b32.xlu0 %v2478, 1
    %v2902 = vpop.permute.xlu0 %2901
    %2903 = vrot.lane.b32.xlu0 %v2479, 1
    %v2904 = vpop.permute.xlu0 %2903
    %2905 = vrot.lane.b32.xlu0 %v2480, 1
    %v2906 = vpop.permute.xlu0 %2905
    %2907 = vrot.lane.b32.xlu0 %v2481, 1
    %v2908 = vpop.permute.xlu0 %2907
    %2909 = vrot.lane.b32.xlu0 %v2482, 1
    %v2910 = vpop.permute.xlu0 %2909
    %v2919 = vsel %vm2732, %v2379, %v2896
    %v2920 = vsel %vm2732, %v2381, %v2898
    %v2921 = vsel %vm2732, %v2383, %v2900
    %v2922 = vsel %vm2732, %v2385, %v2902
    %v2923 = vsel %vm2732, %v2387, %v2904
    %v2924 = vsel %vm2732, %v2389, %v2906
    %v2925 = vsel %vm2732, %v2391, %v2908
    %v2926 = vsel %vm2732, %v2393, %v2910
    %2927 = vst.msk [vmem:[%s67] sm:$0xff] %vm2741, %v2919
    %2928 = vst.msk [vmem:[%s67 + $0x8] sm:$0xff] %vm2741, %v2920
    %2929 = vst.msk [vmem:[%s67 + $0x10] sm:$0xff] %vm2741, %v2921
    %2930 = vst.msk [vmem:[%s67 + $0x18] sm:$0xff] %vm2741, %v2922
    %2931 = vst.msk [vmem:[%s67 + $0x20] sm:$0xff] %vm2741, %v2923
    %2932 = vst.msk [vmem:[%s67 + $0x28] sm:$0xff] %vm2741, %v2924
    %2933 = vst.msk [vmem:[%s67 + $0x30] sm:$0xff] %vm2741, %v2925
    %2934 = vst.msk [vmem:[%s67 + $0x38] sm:$0xff] %vm2741, %v2926
    // Predicated region
    $region126: #{deep_idw_autoencoder_conv_forward.1} parent=1 // pred_check
      _
    $region127: #{deep_idw_autoencoder_conv_forward.1} parent=1 // pred_check_branch
      %2936 = sbr.rel (0) target = $region129
    $region128: #{deep_idw_autoencoder_conv_forward.1} parent=1 // pred_region
      _
    $region129: #{deep_idw_autoencoder_conv_forward.1} parent=1 // pred_fallthru
      _
    // Predicated region
    $region130: #{deep_idw_autoencoder_conv_forward.1} parent=1 // pred_check
      _
    $region131: #{deep_idw_autoencoder_conv_forward.1} parent=1 // pred_check_branch
      %2938 = sbr.rel (0) target = $region133
    $region132: #{deep_idw_autoencoder_conv_forward.1} parent=1 // pred_region
      _
    $region133: #{deep_idw_autoencoder_conv_forward.1} parent=1 // pred_fallthru
      _
    // Predicated region
    $region134: #{deep_idw_autoencoder_conv_forward.1} parent=1 // pred_check
      _
    $region135: #{deep_idw_autoencoder_conv_forward.1} parent=1 // pred_check_branch
      %2940 = sbr.rel (0) target = $region137
    $region136: #{deep_idw_autoencoder_conv_forward.1} parent=1 // pred_region
      _
    $region137: #{deep_idw_autoencoder_conv_forward.1} parent=1 // pred_fallthru
      _
    // Predicated region
    $region138: #{deep_idw_autoencoder_conv_forward.1} parent=1 // pred_check
      _
    $region139: #{deep_idw_autoencoder_conv_forward.1} parent=1 // pred_check_branch
      %2942 = sbr.rel (0) target = $region141
    $region140: #{deep_idw_autoencoder_conv_forward.1} parent=1 // pred_region
      _
    $region141: #{deep_idw_autoencoder_conv_forward.1} parent=1 // pred_fallthru
      _
    // Predicated region
    $region142: #{deep_idw_autoencoder_conv_forward.1} parent=1 // pred_check
      _
    $region143: #{deep_idw_autoencoder_conv_forward.1} parent=1 // pred_check_branch
      %2944 = sbr.rel (0) target = $region145
    $region144: #{deep_idw_autoencoder_conv_forward.1} parent=1 // pred_region
      _
    $region145: #{deep_idw_autoencoder_conv_forward.1} parent=1 // pred_fallthru
      _
    // Predicated region
    $region146: #{deep_idw_autoencoder_conv_forward.1} parent=1 // pred_check
      _
    $region147: #{deep_idw_autoencoder_conv_forward.1} parent=1 // pred_check_branch
      %2946 = sbr.rel (0) target = $region149
    $region148: #{deep_idw_autoencoder_conv_forward.1} parent=1 // pred_region
      _
    $region149: #{deep_idw_autoencoder_conv_forward.1} parent=1 // pred_fallthru
      _
    // Predicated region
    $region150: #{deep_idw_autoencoder_conv_forward.1} parent=1 // pred_check
      _
    $region151: #{deep_idw_autoencoder_conv_forward.1} parent=1 // pred_check_branch
      %2948 = sbr.rel (0) target = $region153
    $region152: #{deep_idw_autoencoder_conv_forward.1} parent=1 // pred_region
      %2950 = vsyncadd [#allocation7], 0
      %s2951 = sshll.u32 [#allocation12], 4
      %s2952 = int_to_ptr.vmem [resolvable:$true] %s2951
      %s2953 = sshll.u32 %s69, 4
      %s2954 = int_to_ptr.hbm [resolvable:$true] %s2953
      %2959 = dma.vmem_to_hbm [thread:$0]  %s2952, 1024, %s2954, [#allocation7], 128, 128, 8
    $region153: #{deep_idw_autoencoder_conv_forward.1} parent=1 // pred_fallthru
      _
    // Predicated region
    $region154: #{deep_idw_autoencoder_conv_forward.1} parent=1 // pred_check
      _
    $region155: #{deep_idw_autoencoder_conv_forward.1} parent=1 // pred_check_branch
      %2961 = sbr.rel (0) target = $region157
    $region156: #{deep_idw_autoencoder_conv_forward.1} parent=1 // pred_region
      _
    $region157: #{deep_idw_autoencoder_conv_forward.1} parent=1 // pred_fallthru
      _
    // Predicated region
    $region158: #{deep_idw_autoencoder_conv_forward.1} parent=1 // pred_check
      _
    $region159: #{deep_idw_autoencoder_conv_forward.1} parent=1 // pred_check_branch
      %2963 = sbr.rel (0) target = $region161
    $region160: #{deep_idw_autoencoder_conv_forward.1} parent=1 // pred_region
      _
    $region161: #{deep_idw_autoencoder_conv_forward.1} parent=1 // pred_fallthru
      _
    // Predicated region
    $region162: #{deep_idw_autoencoder_conv_forward.1} parent=1 // pred_check
      _
    $region163: #{deep_idw_autoencoder_conv_forward.1} parent=1 // pred_check_branch
      %2965 = sbr.rel (0) target = $region165
    $region164: #{deep_idw_autoencoder_conv_forward.1} parent=1 // pred_region
      _
    $region165: #{deep_idw_autoencoder_conv_forward.1} parent=1 // pred_fallthru
      _
    // Predicated region
    $region166: #{deep_idw_autoencoder_conv_forward.1} parent=1 // pred_check
      _
    $region167: #{deep_idw_autoencoder_conv_forward.1} parent=1 // pred_check_branch
      %2967 = sbr.rel (0) target = $region169
    $region168: #{deep_idw_autoencoder_conv_forward.1} parent=1 // pred_region
      _
    $region169: #{deep_idw_autoencoder_conv_forward.1} parent=1 // pred_fallthru
      _
    // Predicated region
    $region170: #{deep_idw_autoencoder_conv_forward.1} parent=1 // pred_check
      _
    $region171: #{deep_idw_autoencoder_conv_forward.1} parent=1 // pred_check_branch
      %2969 = sbr.rel (0) target = $region173
    $region172: #{deep_idw_autoencoder_conv_forward.1} parent=1 // pred_region
      _
    $region173: #{deep_idw_autoencoder_conv_forward.1} parent=1 // pred_fallthru
      _
    // Predicated region
    $region174: #{deep_idw_autoencoder_conv_forward.1} parent=1 // pred_check
      _
    $region175: #{deep_idw_autoencoder_conv_forward.1} parent=1 // pred_check_branch
      %2971 = sbr.rel (0) target = $region177
    $region176: #{deep_idw_autoencoder_conv_forward.1} parent=1 // pred_region
      _
    $region177: #{deep_idw_autoencoder_conv_forward.1} parent=1 // pred_fallthru
      _
    // Predicated region
    $region178: #{deep_idw_autoencoder_conv_forward.1} parent=1 // pred_check
      _
    $region179: #{deep_idw_autoencoder_conv_forward.1} parent=1 // pred_check_branch
      %2973 = sbr.rel (0) target = $region181
    $region180: #{deep_idw_autoencoder_conv_forward.1} parent=1 // pred_region
      %2975 = dma.done [#allocation7], 1024
    $region181: #{deep_idw_autoencoder_conv_forward.1} parent=1 // pred_fallthru
      _
    %2976 = vsyncpa [#allocation6], 1
    %2977 = vsyncpa [#allocation7], 1
    %2978 = vsyncpa [#allocation8], 1
    %2979 = vsyncpa [#allocation10], 1

</llo_original>
